<compile_context>
chip_gen: v7x
topology: tpu7x:2x2x1
jax: 0.10.0
libtpu: 0.0.40
codegen_flags: <defaults>
</compile_context>

<pallas_src>
import numpy as np

import jax
import jax.numpy as jnp
from jax import lax
from jax.experimental import pallas as pl
from jax.experimental.pallas import tpu as pltpu

# ----- module hyper-parameters (tp_size == 1) --------------------------------
HIDDEN = 32
NUM_HEADS = 4
NUM_KV_HEADS = 2
HEAD_DIM = HIDDEN // NUM_HEADS          # 8
Q_SIZE = NUM_HEADS * HEAD_DIM           # 32
KV_SIZE = NUM_KV_HEADS * HEAD_DIM       # 16
QK_SIZE = Q_SIZE + KV_SIZE              # 48  (q|k slab width)
QKV_OUT = Q_SIZE + 2 * KV_SIZE          # 64  (fused qkv projection width)
GROUP = NUM_HEADS // NUM_KV_HEADS       # 2   (query heads per KV head)
SCALING = HEAD_DIM ** -0.5
EPS = 1e-5
ROPE_THETA = 10000.0

# ----- constant-slab row layout (lane width = 64) -----------------------------
CONST_LANES = QKV_OUT                   # 64
ROWS_WQKV = 0                           # (32, 64) qkv_proj weight (transposed)
ROWS_WO = ROWS_WQKV + HIDDEN            # (32, 32) o_proj weight (transposed)
ROWS_AVG = ROWS_WO + Q_SIZE             # (48, 48) block-diag per-head 1/D
ROWS_SWAP = ROWS_AVG + QK_SIZE          # (48, 48) signed neox half-swap perm
ROWS_NORM = ROWS_SWAP + QK_SIZE         # (2, 48)  per-head LN weight / bias
ROW_INVFREQ = ROWS_NORM + 2             # (1, 48)  per-lane RoPE inv-freq
ROWS_CAUSAL = ((ROW_INVFREQ + 1 + 7) // 8) * 8   # (GROUP*T, T) additive bias


# ----- the fused kernel -------------------------------------------------------
def chameleon_attn_kernel(xp_ref, c_ref, out_ref):
    T = xp_ref.shape[0]
    D = HEAD_DIM
    HIGH = lax.Precision.HIGHEST

    x = xp_ref[:, :HIDDEN]                                     # (T, 32)
    pos = xp_ref[:, HIDDEN:HIDDEN + 1]                         # (T, 1)

    # ---- fused QKV projection (MXU) -----------------------------------------
    wqkv = c_ref[ROWS_WQKV:ROWS_WQKV + HIDDEN, :]              # (32, 64)
    qkv = jnp.dot(x, wqkv, preferred_element_type=jnp.float32)  # (T, 64)
    qk = qkv[:, :QK_SIZE]                                      # (T, 48)
    v = qkv[:, QK_SIZE:]                                       # (T, 16)

    # ---- per-head LayerNorm on the whole q|k slab (block-diag avg matmuls) ---
    avg = c_ref[ROWS_AVG:ROWS_AVG + QK_SIZE, :QK_SIZE]         # (48, 48) const
    mean = jnp.dot(qk, avg, preferred_element_type=jnp.float32, precision=HIGH)
    xc = qk - mean
    var = jnp.dot(xc * xc, avg, preferred_element_type=jnp.float32,
                  precision=HIGH)
    ln_wb = c_ref[ROWS_NORM:ROWS_NORM + 3, :QK_SIZE]           # w | b | inv_freq
    qkn = xc * lax.rsqrt(var + EPS) * ln_wb[0:1, :] + ln_wb[1:2, :]

    # ---- neox RoPE via the signed half-swap permutation matmul ---------------
    swap = c_ref[ROWS_SWAP:ROWS_SWAP + QK_SIZE, :QK_SIZE]      # signed perm
    qkn_swap = jnp.dot(qkn, swap, preferred_element_type=jnp.float32,
                       precision=HIGH)
    ang = pos * ln_wb[2:3, :]                                  # (T,1)*(1,48)
    qkr = qkn * jnp.cos(ang) + qkn_swap * jnp.sin(ang)

    # ---- stack heads along sublanes once (outside the KV loop) ---------------
    q_all = jnp.concatenate(
        [qkr[:, h * D:(h + 1) * D] for h in range(NUM_HEADS)], axis=0)  # (H*T,D)
    k_all = jnp.concatenate(
        [qkr[:, Q_SIZE + n * D:Q_SIZE + (n + 1) * D]
         for n in range(NUM_KV_HEADS)], axis=0)                         # (KV*T,D)
    v_all = jnp.concatenate(
        [v[:, n * D:(n + 1) * D] for n in range(NUM_KV_HEADS)], axis=0)  # (KV*T,D)

    causal = c_ref[ROWS_CAUSAL:ROWS_CAUSAL + GROUP * T, :T]    # 0 / -1e30 bias

    # ---- causal GQA attention with o_proj folded into the loop ---------------
    out_acc = jnp.zeros((T, HIDDEN), jnp.float32)
    for kv in range(NUM_KV_HEADS):
        q_grp = q_all[kv * GROUP * T:(kv + 1) * GROUP * T, :]   # (G*T, D)
        k_kv = k_all[kv * T:(kv + 1) * T, :]                    # (T, D)
        v_kv = v_all[kv * T:(kv + 1) * T, :]                    # (T, D)
        # q . k^T contracting the last dims of both operands (no transposes)
        s = lax.dot_general(q_grp, k_kv, (((1,), (1,)), ((), ())),
                            preferred_element_type=jnp.float32) * SCALING
        s = s + causal
        p = jnp.exp(s - jnp.max(s, axis=-1, keepdims=True))
        p = p * pl.reciprocal(jnp.sum(p, axis=-1, keepdims=True), approx=True)
        pv = jnp.dot(p, v_kv, preferred_element_type=jnp.float32)  # (G*T, D)
        for g in range(GROUP):
            h = kv * GROUP + g
            wo_h = c_ref[ROWS_WO + h * D:ROWS_WO + (h + 1) * D, :HIDDEN]  # (D,32)
            out_acc = out_acc + jnp.dot(pv[g * T:(g + 1) * T, :], wo_h,
                                        preferred_element_type=jnp.float32)
    out_ref[...] = out_acc


# ----- parameter + constant packing (one-time glue) ---------------------------
def pack_consts(params, T):
    """Pack weights, LN affine, RoPE inv-freq, the LN averaging matrix, the
    signed neox half-swap permutation and the additive causal bias into one
    lane-aligned f32 slab (row layout per the ROWS_* constants)."""
    D = HEAD_DIM
    rows = ROWS_CAUSAL + GROUP * T
    slab = np.zeros((rows, CONST_LANES), np.float32)

    slab[ROWS_WQKV:ROWS_WQKV + HIDDEN, :QKV_OUT] = np.asarray(params["wqkv_t"])
    slab[ROWS_WO:ROWS_WO + Q_SIZE, :HIDDEN] = np.asarray(params["wo_t"])

    r = np.arange(QK_SIZE)[:, None]
    c = np.arange(QK_SIZE)[None, :]
    slab[ROWS_AVG:ROWS_AVG + QK_SIZE, :QK_SIZE] = np.where(
        (r // D) == (c // D), 1.0 / D, 0.0)

    perm = (c // D) * D + (c + D // 2) % D            # source lane for lane c
    sign = np.where((c % D) < D // 2, -1.0, 1.0)      # -sin | +sin halves
    slab[ROWS_SWAP:ROWS_SWAP + QK_SIZE, :QK_SIZE] = (
        np.where(r == perm, 1.0, 0.0) * sign)

    norm_w = np.concatenate([np.asarray(params["q_norm_w"]).reshape(-1),
                             np.asarray(params["k_norm_w"]).reshape(-1)])
    norm_b = np.concatenate([np.asarray(params["q_norm_b"]).reshape(-1),
                             np.asarray(params["k_norm_b"]).reshape(-1)])
    slab[ROWS_NORM, :QK_SIZE] = norm_w
    slab[ROWS_NORM + 1, :QK_SIZE] = norm_b

    lane = np.arange(QK_SIZE)
    slab[ROW_INVFREQ, :QK_SIZE] = ROPE_THETA ** (-2.0 * (lane % (D // 2)) / D)

    rr = np.arange(GROUP * T)[:, None] % T
    cc = np.arange(T)[None, :]
    slab[ROWS_CAUSAL:ROWS_CAUSAL + GROUP * T, :T] = np.where(rr >= cc, 0.0, -1e30)

    return jnp.asarray(slab)


# ----- wrapper -----------------------------------------------------------------
def chameleon_attention(positions, hidden_states, consts):
    T = hidden_states.shape[0]
    # positions ride along as one extra lane -> a single activation DMA.
    xp = jnp.concatenate([hidden_states.astype(jnp.float32),
                          positions.astype(jnp.float32)[:, None]], axis=1)
    vmem = pl.BlockSpec(memory_space=pltpu.MemorySpace.VMEM)
    return pl.pallas_call(
        chameleon_attn_kernel,
        out_shape=jax.ShapeDtypeStruct((T, HIDDEN), jnp.float32),
        in_specs=[vmem, vmem],
        out_specs=vmem,
    )(xp, consts)


# ----- pure-JAX reference (for correctness check) ------------------------------
def chameleon_attention_ref(positions, x, params):
    T = x.shape[0]
    qkv = x @ params["wqkv_t"]
    q = qkv[:, :Q_SIZE].reshape(T, NUM_HEADS, HEAD_DIM)
    k = qkv[:, Q_SIZE:Q_SIZE + KV_SIZE].reshape(T, NUM_KV_HEADS, HEAD_DIM)
    v = qkv[:, Q_SIZE + KV_SIZE:].reshape(T, NUM_KV_HEADS, HEAD_DIM)

    def ln(t, w, b):
        mean = t.mean(-1, keepdims=True)
        var = ((t - mean) ** 2).mean(-1, keepdims=True)
        return (t - mean) / jnp.sqrt(var + EPS) * w + b

    q = ln(q, params["q_norm_w"], params["q_norm_b"])
    k = ln(k, params["k_norm_w"], params["k_norm_b"])

    inv_freq = 1.0 / (ROPE_THETA ** (
        jnp.arange(0, HEAD_DIM, 2, dtype=jnp.float32) / HEAD_DIM))
    freqs = positions.astype(jnp.float32)[:, None] * inv_freq[None, :]
    cos = jnp.cos(freqs)[:, None, :]
    sin = jnp.sin(freqs)[:, None, :]

    def rope(t):
        t1, t2 = t[..., :HEAD_DIM // 2], t[..., HEAD_DIM // 2:]
        return jnp.concatenate([t1 * cos - t2 * sin, t2 * cos + t1 * sin], -1)

    q, k = rope(q), rope(k)
    rep = NUM_HEADS // NUM_KV_HEADS
    k = jnp.repeat(k, rep, axis=1)
    v = jnp.repeat(v, rep, axis=1)

    s = jnp.einsum('qhd,khd->hqk', q, k) * SCALING
    mask = jnp.tril(jnp.ones((T, T), bool))
    s = jnp.where(mask[None], s, -jnp.inf)
    p = jax.nn.softmax(s, axis=-1)
    o = jnp.einsum('hqk,khd->qhd', p, v).reshape(T, Q_SIZE)
    return o @ params["wo_t"]


# ----- main ---------------------------------------------------------------------
if __name__ == "__main__":
    # True-f32 matmuls on both sides (reference XLA dots and in-kernel Mosaic
    # dots) so the comparison is tight; the MXU is <1% utilized at this size so
    # the extra passes are free.
    jax.config.update("jax_default_matmul_precision", "highest")

    key = jax.random.PRNGKey(0)
    ks = jax.random.split(key, 7)
    T = 8

    hidden_states = jax.random.normal(ks[0], (T, HIDDEN), jnp.float32)
    positions = jnp.arange(T, dtype=jnp.int32)

    params = {
        # qkv_proj.weight is (Q+2KV, H) in torch; stored transposed here.
        "wqkv_t": 0.05 * jax.random.normal(ks[1], (HIDDEN, QKV_OUT), jnp.float32),
        # o_proj.weight is (H, Q_SIZE) in torch; stored transposed here.
        "wo_t": 0.05 * jax.random.normal(ks[2], (Q_SIZE, HIDDEN), jnp.float32),
        "q_norm_w": 1.0 + 0.1 * jax.random.normal(ks[3], (NUM_HEADS, HEAD_DIM),
                                                  jnp.float32),
        "q_norm_b": 0.1 * jax.random.normal(ks[4], (NUM_HEADS, HEAD_DIM),
                                            jnp.float32),
        "k_norm_w": 1.0 + 0.1 * jax.random.normal(ks[5], (NUM_KV_HEADS, HEAD_DIM),
                                                  jnp.float32),
        "k_norm_b": 0.1 * jax.random.normal(ks[6], (NUM_KV_HEADS, HEAD_DIM),
                                            jnp.float32),
    }
    consts = pack_consts(params, T)

    out = jax.block_until_ready(chameleon_attention(positions, hidden_states,
                                                    consts))
    ref = jax.block_until_ready(
        chameleon_attention_ref(positions, hidden_states, params))

    assert out.shape == (T, HIDDEN)
    err = jnp.max(jnp.abs(out - ref))
    # Tolerance covers the EUP approximate reciprocal in the softmax
    # normalization (rows do not sum to exactly 1); everything else is f32.
    assert jnp.allclose(out, ref, rtol=2e-3, atol=2e-3), f"max abs err {err}"

    print("KERNEL_OK")
</pallas_src>

<mosaic_0001>
module attributes {stable_mosaic.version = 11 : i64} {
  func.func @chameleon_attn_kernel(%arg0: memref<8x33xf32, #tpu.memory_space<vmem>>, %arg1: memref<184x64xf32, #tpu.memory_space<vmem>>, %arg2: memref<8x32xf32, #tpu.memory_space<vmem>>) attributes {dimension_semantics = [], scalar_prefetch = 0 : i64, scratch_operands = 0 : i64, tpu.core_type = #tpu.core_type<tc>} {
    %c0 = arith.constant 0 : index
    %c0_0 = arith.constant 0 : index
    %0 = vector.load %arg0[%c0, %c0_0] : memref<8x33xf32, #tpu.memory_space<vmem>>, vector<8x32xf32>
    %c0_1 = arith.constant 0 : index
    %c32 = arith.constant 32 : index
    %1 = vector.load %arg0[%c0_1, %c32] : memref<8x33xf32, #tpu.memory_space<vmem>>, vector<8x1xf32>
    %c0_2 = arith.constant 0 : index
    %c0_3 = arith.constant 0 : index
    %2 = vector.load %arg1[%c0_2, %c0_3] : memref<184x64xf32, #tpu.memory_space<vmem>>, vector<32x64xf32>
    %cst = arith.constant dense<0.000000e+00> : vector<8x64xf32>
    %3 = tpu.matmul %0, %2, %cst {dimension_numbers = #tpu.dot_dimension_numbers<[1], [0], [0], [1], [0, 0, 1, 1], [], []>, precision = #tpu.contract_precision<fp32>} : vector<8x32xf32>, vector<32x64xf32>, vector<8x64xf32> -> vector<8x64xf32>
    %4 = vector.extract_strided_slice %3 {offsets = [0, 0], sizes = [8, 48], strides = [1, 1]} : vector<8x64xf32> to vector<8x48xf32>
    %5 = vector.extract_strided_slice %3 {offsets = [0, 48], sizes = [8, 16], strides = [1, 1]} : vector<8x64xf32> to vector<8x16xf32>
    %c64 = arith.constant 64 : index
    %c0_4 = arith.constant 0 : index
    %6 = vector.load %arg1[%c64, %c0_4] : memref<184x64xf32, #tpu.memory_space<vmem>>, vector<48x48xf32>
    %cst_5 = arith.constant dense<0.000000e+00> : vector<8x48xf32>
    %7 = tpu.matmul %4, %6, %cst_5 {dimension_numbers = #tpu.dot_dimension_numbers<[1], [0], [0], [1], [0, 0, 1, 1], [], []>, precision = #tpu.contract_precision<fp32>} : vector<8x48xf32>, vector<48x48xf32>, vector<8x48xf32> -> vector<8x48xf32>
    %8 = arith.subf %4, %7 : vector<8x48xf32>
    %9 = arith.mulf %8, %8 : vector<8x48xf32>
    %cst_6 = arith.constant dense<0.000000e+00> : vector<8x48xf32>
    %10 = tpu.matmul %9, %6, %cst_6 {dimension_numbers = #tpu.dot_dimension_numbers<[1], [0], [0], [1], [0, 0, 1, 1], [], []>, precision = #tpu.contract_precision<fp32>} : vector<8x48xf32>, vector<48x48xf32>, vector<8x48xf32> -> vector<8x48xf32>
    %c160 = arith.constant 160 : index
    %c0_7 = arith.constant 0 : index
    %11 = vector.load %arg1[%c160, %c0_7] : memref<184x64xf32, #tpu.memory_space<vmem>>, vector<3x48xf32>
    %cst_8 = arith.constant 9.99999974E-6 : f32
    %12 = vector.broadcast %cst_8 : f32 to vector<8x48xf32>
    %13 = arith.addf %10, %12 : vector<8x48xf32>
    %14 = math.rsqrt %13 : vector<8x48xf32>
    %15 = arith.mulf %8, %14 : vector<8x48xf32>
    %16 = vector.extract_strided_slice %11 {offsets = [0, 0], sizes = [1, 48], strides = [1, 1]} : vector<3x48xf32> to vector<1x48xf32>
    %17 = vector.broadcast %16 : vector<1x48xf32> to vector<8x48xf32>
    %18 = arith.mulf %15, %17 : vector<8x48xf32>
    %19 = vector.extract_strided_slice %11 {offsets = [1, 0], sizes = [1, 48], strides = [1, 1]} : vector<3x48xf32> to vector<1x48xf32>
    %20 = vector.broadcast %19 : vector<1x48xf32> to vector<8x48xf32>
    %21 = arith.addf %18, %20 : vector<8x48xf32>
    %c112 = arith.constant 112 : index
    %c0_9 = arith.constant 0 : index
    %22 = vector.load %arg1[%c112, %c0_9] : memref<184x64xf32, #tpu.memory_space<vmem>>, vector<48x48xf32>
    %cst_10 = arith.constant dense<0.000000e+00> : vector<8x48xf32>
    %23 = tpu.matmul %21, %22, %cst_10 {dimension_numbers = #tpu.dot_dimension_numbers<[1], [0], [0], [1], [0, 0, 1, 1], [], []>, precision = #tpu.contract_precision<fp32>} : vector<8x48xf32>, vector<48x48xf32>, vector<8x48xf32> -> vector<8x48xf32>
    %24 = vector.extract_strided_slice %11 {offsets = [2, 0], sizes = [1, 48], strides = [1, 1]} : vector<3x48xf32> to vector<1x48xf32>
    %25 = vector.broadcast %1 : vector<8x1xf32> to vector<8x48xf32>
    %26 = vector.broadcast %24 : vector<1x48xf32> to vector<8x48xf32>
    %27 = arith.mulf %25, %26 : vector<8x48xf32>
    %28 = math.cos %27 : vector<8x48xf32>
    %29 = arith.mulf %21, %28 : vector<8x48xf32>
    %30 = math.sin %27 : vector<8x48xf32>
    %31 = arith.mulf %23, %30 : vector<8x48xf32>
    %32 = arith.addf %29, %31 : vector<8x48xf32>
    %33 = vector.extract_strided_slice %32 {offsets = [0, 0], sizes = [8, 8], strides = [1, 1]} : vector<8x48xf32> to vector<8x8xf32>
    %34 = vector.extract_strided_slice %32 {offsets = [0, 8], sizes = [8, 8], strides = [1, 1]} : vector<8x48xf32> to vector<8x8xf32>
    %35 = vector.extract_strided_slice %32 {offsets = [0, 16], sizes = [8, 8], strides = [1, 1]} : vector<8x48xf32> to vector<8x8xf32>
    %36 = vector.extract_strided_slice %32 {offsets = [0, 24], sizes = [8, 8], strides = [1, 1]} : vector<8x48xf32> to vector<8x8xf32>
    %37 = tpu.concatenate %33, %34, %35, %36 in 0 : vector<8x8xf32>, vector<8x8xf32>, vector<8x8xf32>, vector<8x8xf32> -> vector<32x8xf32>
    %38 = vector.extract_strided_slice %32 {offsets = [0, 32], sizes = [8, 8], strides = [1, 1]} : vector<8x48xf32> to vector<8x8xf32>
    %39 = vector.extract_strided_slice %32 {offsets = [0, 40], sizes = [8, 8], strides = [1, 1]} : vector<8x48xf32> to vector<8x8xf32>
    %40 = tpu.concatenate %38, %39 in 0 : vector<8x8xf32>, vector<8x8xf32> -> vector<16x8xf32>
    %41 = vector.extract_strided_slice %5 {offsets = [0, 0], sizes = [8, 8], strides = [1, 1]} : vector<8x16xf32> to vector<8x8xf32>
    %42 = vector.extract_strided_slice %5 {offsets = [0, 8], sizes = [8, 8], strides = [1, 1]} : vector<8x16xf32> to vector<8x8xf32>
    %43 = tpu.concatenate %41, %42 in 0 : vector<8x8xf32>, vector<8x8xf32> -> vector<16x8xf32>
    %c168 = arith.constant 168 : index
    %c0_11 = arith.constant 0 : index
    %44 = vector.load %arg1[%c168, %c0_11] : memref<184x64xf32, #tpu.memory_space<vmem>>, vector<16x8xf32>
    %cst_12 = arith.constant 0.000000e+00 : f32
    %45 = vector.broadcast %cst_12 : f32 to vector<8x32xf32>
    %46 = vector.extract_strided_slice %37 {offsets = [0, 0], sizes = [16, 8], strides = [1, 1]} : vector<32x8xf32> to vector<16x8xf32>
    %47 = vector.extract_strided_slice %40 {offsets = [0, 0], sizes = [8, 8], strides = [1, 1]} : vector<16x8xf32> to vector<8x8xf32>
    %48 = vector.extract_strided_slice %43 {offsets = [0, 0], sizes = [8, 8], strides = [1, 1]} : vector<16x8xf32> to vector<8x8xf32>
    %cst_13 = arith.constant dense<0.000000e+00> : vector<16x8xf32>
    %49 = tpu.matmul %46, %47, %cst_13 {dimension_numbers = #tpu.dot_dimension_numbers<[1], [1], [0], [0], [0, 0, 1, 0], [], []>, precision = #tpu.contract_precision<fp32>} : vector<16x8xf32>, vector<8x8xf32>, vector<16x8xf32> -> vector<16x8xf32>
    %cst_14 = arith.constant 0.353553385 : f32
    %50 = vector.broadcast %cst_14 : f32 to vector<16x8xf32>
    %51 = arith.mulf %49, %50 : vector<16x8xf32>
    %52 = arith.addf %51, %44 : vector<16x8xf32>
    %cst_15 = arith.constant dense<0xFF800000> : vector<16xf32>
    %53 = vector.multi_reduction <maximumf>, %52, %cst_15 [1] : vector<16x8xf32> to vector<16xf32>
    %54 = vector.shape_cast %53 : vector<16xf32> to vector<16x1xf32>
    %55 = vector.broadcast %54 : vector<16x1xf32> to vector<16x8xf32>
    %56 = arith.subf %52, %55 : vector<16x8xf32>
    %57 = math.exp %56 : vector<16x8xf32>
    %cst_16 = arith.constant dense<0.000000e+00> : vector<16xf32>
    %58 = vector.multi_reduction <add>, %57, %cst_16 [1] : vector<16x8xf32> to vector<16xf32>
    %59 = vector.shape_cast %58 : vector<16xf32> to vector<16x1xf32>
    %60 = tpu.reciprocal %59 {approx = true} : vector<16x1xf32> -> vector<16x1xf32>
    %61 = vector.broadcast %60 : vector<16x1xf32> to vector<16x8xf32>
    %62 = arith.mulf %57, %61 : vector<16x8xf32>
    %cst_17 = arith.constant dense<0.000000e+00> : vector<16x8xf32>
    %63 = tpu.matmul %62, %48, %cst_17 {dimension_numbers = #tpu.dot_dimension_numbers<[1], [0], [0], [1], [0, 0, 1, 1], [], []>, precision = #tpu.contract_precision<fp32>} : vector<16x8xf32>, vector<8x8xf32>, vector<16x8xf32> -> vector<16x8xf32>
    %c32_18 = arith.constant 32 : index
    %c0_19 = arith.constant 0 : index
    %64 = vector.load %arg1[%c32_18, %c0_19] : memref<184x64xf32, #tpu.memory_space<vmem>>, vector<8x32xf32>
    %65 = vector.extract_strided_slice %63 {offsets = [0, 0], sizes = [8, 8], strides = [1, 1]} : vector<16x8xf32> to vector<8x8xf32>
    %cst_20 = arith.constant dense<0.000000e+00> : vector<8x32xf32>
    %66 = tpu.matmul %65, %64, %cst_20 {dimension_numbers = #tpu.dot_dimension_numbers<[1], [0], [0], [1], [0, 0, 1, 1], [], []>, precision = #tpu.contract_precision<fp32>} : vector<8x8xf32>, vector<8x32xf32>, vector<8x32xf32> -> vector<8x32xf32>
    %67 = arith.addf %45, %66 : vector<8x32xf32>
    %c40 = arith.constant 40 : index
    %c0_21 = arith.constant 0 : index
    %68 = vector.load %arg1[%c40, %c0_21] : memref<184x64xf32, #tpu.memory_space<vmem>>, vector<8x32xf32>
    %69 = vector.extract_strided_slice %63 {offsets = [8, 0], sizes = [8, 8], strides = [1, 1]} : vector<16x8xf32> to vector<8x8xf32>
    %cst_22 = arith.constant dense<0.000000e+00> : vector<8x32xf32>
    %70 = tpu.matmul %69, %68, %cst_22 {dimension_numbers = #tpu.dot_dimension_numbers<[1], [0], [0], [1], [0, 0, 1, 1], [], []>, precision = #tpu.contract_precision<fp32>} : vector<8x8xf32>, vector<8x32xf32>, vector<8x32xf32> -> vector<8x32xf32>
    %71 = arith.addf %67, %70 : vector<8x32xf32>
    %72 = vector.extract_strided_slice %37 {offsets = [16, 0], sizes = [16, 8], strides = [1, 1]} : vector<32x8xf32> to vector<16x8xf32>
    %73 = vector.extract_strided_slice %40 {offsets = [8, 0], sizes = [8, 8], strides = [1, 1]} : vector<16x8xf32> to vector<8x8xf32>
    %74 = vector.extract_strided_slice %43 {offsets = [8, 0], sizes = [8, 8], strides = [1, 1]} : vector<16x8xf32> to vector<8x8xf32>
    %cst_23 = arith.constant dense<0.000000e+00> : vector<16x8xf32>
    %75 = tpu.matmul %72, %73, %cst_23 {dimension_numbers = #tpu.dot_dimension_numbers<[1], [1], [0], [0], [0, 0, 1, 0], [], []>, precision = #tpu.contract_precision<fp32>} : vector<16x8xf32>, vector<8x8xf32>, vector<16x8xf32> -> vector<16x8xf32>
    %cst_24 = arith.constant 0.353553385 : f32
    %76 = vector.broadcast %cst_24 : f32 to vector<16x8xf32>
    %77 = arith.mulf %75, %76 : vector<16x8xf32>
    %78 = arith.addf %77, %44 : vector<16x8xf32>
    %cst_25 = arith.constant dense<0xFF800000> : vector<16xf32>
    %79 = vector.multi_reduction <maximumf>, %78, %cst_25 [1] : vector<16x8xf32> to vector<16xf32>
    %80 = vector.shape_cast %79 : vector<16xf32> to vector<16x1xf32>
    %81 = vector.broadcast %80 : vector<16x1xf32> to vector<16x8xf32>
    %82 = arith.subf %78, %81 : vector<16x8xf32>
    %83 = math.exp %82 : vector<16x8xf32>
    %cst_26 = arith.constant dense<0.000000e+00> : vector<16xf32>
    %84 = vector.multi_reduction <add>, %83, %cst_26 [1] : vector<16x8xf32> to vector<16xf32>
    %85 = vector.shape_cast %84 : vector<16xf32> to vector<16x1xf32>
    %86 = tpu.reciprocal %85 {approx = true} : vector<16x1xf32> -> vector<16x1xf32>
    %87 = vector.broadcast %86 : vector<16x1xf32> to vector<16x8xf32>
    %88 = arith.mulf %83, %87 : vector<16x8xf32>
    %cst_27 = arith.constant dense<0.000000e+00> : vector<16x8xf32>
    %89 = tpu.matmul %88, %74, %cst_27 {dimension_numbers = #tpu.dot_dimension_numbers<[1], [0], [0], [1], [0, 0, 1, 1], [], []>, precision = #tpu.contract_precision<fp32>} : vector<16x8xf32>, vector<8x8xf32>, vector<16x8xf32> -> vector<16x8xf32>
    %c48 = arith.constant 48 : index
    %c0_28 = arith.constant 0 : index
    %90 = vector.load %arg1[%c48, %c0_28] : memref<184x64xf32, #tpu.memory_space<vmem>>, vector<8x32xf32>
    %91 = vector.extract_strided_slice %89 {offsets = [0, 0], sizes = [8, 8], strides = [1, 1]} : vector<16x8xf32> to vector<8x8xf32>
    %cst_29 = arith.constant dense<0.000000e+00> : vector<8x32xf32>
    %92 = tpu.matmul %91, %90, %cst_29 {dimension_numbers = #tpu.dot_dimension_numbers<[1], [0], [0], [1], [0, 0, 1, 1], [], []>, precision = #tpu.contract_precision<fp32>} : vector<8x8xf32>, vector<8x32xf32>, vector<8x32xf32> -> vector<8x32xf32>
    %93 = arith.addf %71, %92 : vector<8x32xf32>
    %c56 = arith.constant 56 : index
    %c0_30 = arith.constant 0 : index
    %94 = vector.load %arg1[%c56, %c0_30] : memref<184x64xf32, #tpu.memory_space<vmem>>, vector<8x32xf32>
    %95 = vector.extract_strided_slice %89 {offsets = [8, 0], sizes = [8, 8], strides = [1, 1]} : vector<16x8xf32> to vector<8x8xf32>
    %cst_31 = arith.constant dense<0.000000e+00> : vector<8x32xf32>
    %96 = tpu.matmul %95, %94, %cst_31 {dimension_numbers = #tpu.dot_dimension_numbers<[1], [0], [0], [1], [0, 0, 1, 1], [], []>, precision = #tpu.contract_precision<fp32>} : vector<8x8xf32>, vector<8x32xf32>, vector<8x32xf32> -> vector<8x32xf32>
    %97 = arith.addf %93, %96 : vector<8x32xf32>
    %c0_32 = arith.constant 0 : index
    %c0_33 = arith.constant 0 : index
    %98 = vector.load %arg2[%c0_32, %c0_33] : memref<8x32xf32, #tpu.memory_space<vmem>>, vector<8x32xf32>
    tpu.vector_store %arg2[%c0_32, %c0_33], %97 {strides = array<i32>} : memref<8x32xf32, #tpu.memory_space<vmem>>, vector<8x32xf32>,
    return
  }
}

</mosaic_0001>

<llo_original>
// kernel: tpu_custom_call.1
$region0: #{tpu_custom_call.1}
  #allocation0 [shape = 'u32[]', space=smem, size = 0x4, offset = 0x4, fixed_abs, tag = 'smem constant byte address 0x4 - core index']
  #allocation1 [shape = 'u32[144,128]{1,0:T(1,128)}', space=vmem, size = 0x12000, scoped, tag = 'internal scratch']
  %s0 = inlined_call_operand.vmem [shape: f32[8,33], index: 0, kind: input, shape index: {}]
  %s1 = inlined_call_operand.vmem [shape: f32[184,64], index: 1, kind: input, shape index: {}]
  %s2 = inlined_call_operand.hbm [shape: f32[8,32], index: 2, kind: output, shape index: {}]
  %s3 = sld [smem:[#allocation0]]
  $region18: #{tpu_custom_call.1} parent=0
    _
  %s5 = ssub.s32 1, %s3
  %s6 = scalar_select 0, %s5, %s3
  $region1: #{tpu_custom_call.1} parent=0
    #allocation2 [shape = 'u8[4096]{0}', space=vmem, size = 0x1000, scoped, tag = 'output window, operand 0, single buffered']
    #allocation3 [shape = 's32[1]{0}', space=sflag, size = 0x4, scoped, tag = 'scoped memory for tpu_custom_call.1']
    %7 = vsyncpa [#allocation3], 0
    // Predicated region
    $region2: #{tpu_custom_call.1} parent=1 // pred_check
      _
    $region3: #{tpu_custom_call.1} parent=1 // pred_check_branch
      %9 = sbr.rel (0) target = $region5
    $region4: #{tpu_custom_call.1} parent=1 // pred_region
      _
    $region5: #{tpu_custom_call.1} parent=1 // pred_fallthru
      _
    // Predicated region
    $region6: #{tpu_custom_call.1} parent=1 // pred_check
      _
    $region7: #{tpu_custom_call.1} parent=1 // pred_check_branch
      %11 = sbr.rel (0) target = $region9
    $region8: #{tpu_custom_call.1} parent=1 // pred_region
      _
    $region9: #{tpu_custom_call.1} parent=1 // pred_fallthru
      _
    %v12 = vld [vmem:[%s0] sm:$0xff]
    %v13 = vld [vmem:[%s1] sm:$0xff]
    %v14 = vld [vmem:[%s1 + $0x8] sm:$0xff]
    %v15 = vld [vmem:[%s1 + $0x10] sm:$0xff]
    %v16 = vld [vmem:[%s1 + $0x18] sm:$0xff]
    %vm17 = vcmask 261120
    %v19 = vsel %vm17, %v12, 0
    %21 = vmatprep.subr.mxu0 0.0
    %v22 = vand.u32 %v13, 4294901760
    %23 = vmatpush1.msra.mxu0 %v22
    %24 = vmatprep.subr.mxu0 0.0
    %v25 = vand.u32 %v14, 4294901760
    %26 = vmatpush1.msra.mxu0 %v25
    %27 = vmatprep.subr.mxu0 0.0
    %v28 = vand.u32 %v15, 4294901760
    %29 = vmatpush1.msra.mxu0 %v28
    %30 = vmatprep.subr.mxu0 0.0
    %v31 = vand.u32 %v16, 4294901760
    %32 = vmatpush1.msra.mxu0 %v31
    %33 = vmatprep.subr.mxu0 0.0
    %34 = vmatpush1.msra.mxu0 0.0
    %35 = vmatprep.subr.mxu0 0.0
    %36 = vmatpush1.msra.mxu0 0.0
    %37 = vmatprep.subr.mxu0 0.0
    %38 = vmatpush1.msra.mxu0 0.0
    %39 = vmatprep.subr.mxu0 0.0
    %40 = vmatpush1.msra.mxu0 0.0
    %41 = vmatprep.subr.mxu0 0.0
    %42 = vmatpush1.msra.mxu0 0.0
    %43 = vmatprep.subr.mxu0 0.0
    %44 = vmatpush1.msra.mxu0 0.0
    %45 = vmatprep.subr.mxu0 0.0
    %46 = vmatpush1.msra.mxu0 0.0
    %47 = vmatprep.subr.mxu0 0.0
    %48 = vmatpush1.msra.mxu0 0.0
    %49 = vmatprep.subr.mxu0 0.0
    %50 = vmatpush1.msra.mxu0 0.0
    %51 = vmatprep.subr.mxu0 0.0
    %52 = vmatpush1.msra.mxu0 0.0
    %53 = vmatprep.subr.mxu0 0.0
    %54 = vmatpush1.msra.mxu0 0.0
    %55 = vmatprep.subr.mxu0 0.0
    %56 = vmatpush1.msra.mxu0 0.0
    %57 = vmatprep.subr.mxu0 0.0
    %58 = vmatpush1.msra.mxu0 0.0
    %59 = vmatprep.subr.mxu0 0.0
    %60 = vmatpush1.msra.mxu0 0.0
    %61 = vmatprep.subr.mxu0 0.0
    %62 = vmatpush1.msra.mxu0 0.0
    %63 = vmatprep.subr.mxu0 0.0
    %64 = vmatpush1.msra.mxu0 0.0
    %65 = vmatprep.subr.mxu0 0.0
    %66 = vmatpush1.msra.mxu0 0.0
    %67 = vmatprep.subr.mxu0 0.0
    %68 = vmatpush1.msra.mxu0 0.0
    %69 = vmatprep.subr.mxu0 0.0
    %70 = vmatpush1.msra.mxu0 0.0
    %71 = vmatprep.subr.mxu0 0.0
    %72 = vmatpush1.msra.mxu0 0.0
    %73 = vmatprep.subr.mxu0 0.0
    %74 = vmatpush1.msra.mxu0 0.0
    %75 = vmatprep.subr.mxu0 0.0
    %76 = vmatpush1.msra.mxu0 0.0
    %77 = vmatprep.subr.mxu0 0.0
    %78 = vmatpush1.msra.mxu0 0.0
    %79 = vmatprep.subr.mxu0 0.0
    %80 = vmatpush1.msra.mxu0 0.0
    %81 = vmatprep.subr.mxu0 0.0
    %82 = vmatpush1.msra.mxu0 0.0
    %83 = vmatprep.subr.mxu0 0.0
    %84 = vmatpush1.msra.mxu0 0.0
    %85 = vmatprep.subr.mxu0 0.0
    %86 = vmatpush1.msra.mxu0 0.0
    %87 = vmatprep.subr.mxu0 0.0
    %88 = vmatpush1.msra.mxu0 0.0
    %89 = vmatprep.mubr.f32.mxu0 0.0
    %v90 = vand.u32 %v19, 4294901760
    %v91 = vsub.f32 %v19, %v90
    %v92 = vand.u32 %v91, 4294901760
    %v93 = vsub.f32 %v91, %v92
    %v94 = vand.u32 %v93, 4294901760
    %95 = vmatmul.mubr.f32.gmra.mrb[0].mxu0 %v94
    %v96 = vpop.f32.mrb[0].mxu0
    %v97 = vadd.f32 0.0, %v96
    %v98 = vpop.f32.mrb[0].mxu0
    %99 = vdwg.mxu0
    %100 = vmatprep.subr.mxu0 0.0
    %v101 = vand.u32 %v13, 4294901760
    %v102 = vsub.f32 %v13, %v101
    %v103 = vand.u32 %v102, 4294901760
    %v104 = vsub.f32 %v102, %v103
    %v105 = vand.u32 %v104, 4294901760
    %106 = vmatpush1.msra.mxu0 %v105
    %107 = vmatprep.subr.mxu0 0.0
    %v108 = vand.u32 %v14, 4294901760
    %v109 = vsub.f32 %v14, %v108
    %v110 = vand.u32 %v109, 4294901760
    %v111 = vsub.f32 %v109, %v110
    %v112 = vand.u32 %v111, 4294901760
    %113 = vmatpush1.msra.mxu0 %v112
    %114 = vmatprep.subr.mxu0 0.0
    %v115 = vand.u32 %v15, 4294901760
    %v116 = vsub.f32 %v15, %v115
    %v117 = vand.u32 %v116, 4294901760
    %v118 = vsub.f32 %v116, %v117
    %v119 = vand.u32 %v118, 4294901760
    %120 = vmatpush1.msra.mxu0 %v119
    %121 = vmatprep.subr.mxu0 0.0
    %v122 = vand.u32 %v16, 4294901760
    %v123 = vsub.f32 %v16, %v122
    %v124 = vand.u32 %v123, 4294901760
    %v125 = vsub.f32 %v123, %v124
    %v126 = vand.u32 %v125, 4294901760
    %127 = vmatpush1.msra.mxu0 %v126
    %128 = vmatprep.subr.mxu0 0.0
    %129 = vmatpush1.msra.mxu0 0.0
    %130 = vmatprep.subr.mxu0 0.0
    %131 = vmatpush1.msra.mxu0 0.0
    %132 = vmatprep.subr.mxu0 0.0
    %133 = vmatpush1.msra.mxu0 0.0
    %134 = vmatprep.subr.mxu0 0.0
    %135 = vmatpush1.msra.mxu0 0.0
    %136 = vmatprep.subr.mxu0 0.0
    %137 = vmatpush1.msra.mxu0 0.0
    %138 = vmatprep.subr.mxu0 0.0
    %139 = vmatpush1.msra.mxu0 0.0
    %140 = vmatprep.subr.mxu0 0.0
    %141 = vmatpush1.msra.mxu0 0.0
    %142 = vmatprep.subr.mxu0 0.0
    %143 = vmatpush1.msra.mxu0 0.0
    %144 = vmatprep.subr.mxu0 0.0
    %145 = vmatpush1.msra.mxu0 0.0
    %146 = vmatprep.subr.mxu0 0.0
    %147 = vmatpush1.msra.mxu0 0.0
    %148 = vmatprep.subr.mxu0 0.0
    %149 = vmatpush1.msra.mxu0 0.0
    %150 = vmatprep.subr.mxu0 0.0
    %151 = vmatpush1.msra.mxu0 0.0
    %152 = vmatprep.subr.mxu0 0.0
    %153 = vmatpush1.msra.mxu0 0.0
    %154 = vmatprep.subr.mxu0 0.0
    %155 = vmatpush1.msra.mxu0 0.0
    %156 = vmatprep.subr.mxu0 0.0
    %157 = vmatpush1.msra.mxu0 0.0
    %158 = vmatprep.subr.mxu0 0.0
    %159 = vmatpush1.msra.mxu0 0.0
    %160 = vmatprep.subr.mxu0 0.0
    %161 = vmatpush1.msra.mxu0 0.0
    %162 = vmatprep.subr.mxu0 0.0
    %163 = vmatpush1.msra.mxu0 0.0
    %164 = vmatprep.subr.mxu0 0.0
    %165 = vmatpush1.msra.mxu0 0.0
    %166 = vmatprep.subr.mxu0 0.0
    %167 = vmatpush1.msra.mxu0 0.0
    %168 = vmatprep.subr.mxu0 0.0
    %169 = vmatpush1.msra.mxu0 0.0
    %170 = vmatprep.subr.mxu0 0.0
    %171 = vmatpush1.msra.mxu0 0.0
    %172 = vmatprep.subr.mxu0 0.0
    %173 = vmatpush1.msra.mxu0 0.0
    %174 = vmatprep.subr.mxu0 0.0
    %175 = vmatpush1.msra.mxu0 0.0
    %176 = vmatprep.subr.mxu0 0.0
    %177 = vmatpush1.msra.mxu0 0.0
    %178 = vmatprep.subr.mxu0 0.0
    %179 = vmatpush1.msra.mxu0 0.0
    %180 = vmatprep.subr.mxu0 0.0
    %181 = vmatpush1.msra.mxu0 0.0
    %182 = vmatprep.subr.mxu0 0.0
    %183 = vmatpush1.msra.mxu0 0.0
    %184 = vmatprep.mubr.f32.mxu0 0.0
    %v185 = vand.u32 %v19, 4294901760
    %186 = vmatmul.mubr.f32.gmra.mrb[0].mxu0 %v185
    %v187 = vpop.f32.mrb[0].mxu0
    %v188 = vadd.f32 %v97, %v187
    %v189 = vpop.f32.mrb[0].mxu0
    %190 = vdwg.mxu0
    %191 = vmatprep.subr.mxu0 0.0
    %v192 = vand.u32 %v13, 4294901760
    %v193 = vsub.f32 %v13, %v192
    %194 = vmatpush1.msra.mxu0 %v193
    %195 = vmatprep.subr.mxu0 0.0
    %v196 = vand.u32 %v14, 4294901760
    %v197 = vsub.f32 %v14, %v196
    %198 = vmatpush1.msra.mxu0 %v197
    %199 = vmatprep.subr.mxu0 0.0
    %v200 = vand.u32 %v15, 4294901760
    %v201 = vsub.f32 %v15, %v200
    %202 = vmatpush1.msra.mxu0 %v201
    %203 = vmatprep.subr.mxu0 0.0
    %v204 = vand.u32 %v16, 4294901760
    %v205 = vsub.f32 %v16, %v204
    %206 = vmatpush1.msra.mxu0 %v205
    %207 = vmatprep.subr.mxu0 0.0
    %208 = vmatpush1.msra.mxu0 0.0
    %209 = vmatprep.subr.mxu0 0.0
    %210 = vmatpush1.msra.mxu0 0.0
    %211 = vmatprep.subr.mxu0 0.0
    %212 = vmatpush1.msra.mxu0 0.0
    %213 = vmatprep.subr.mxu0 0.0
    %214 = vmatpush1.msra.mxu0 0.0
    %215 = vmatprep.subr.mxu0 0.0
    %216 = vmatpush1.msra.mxu0 0.0
    %217 = vmatprep.subr.mxu0 0.0
    %218 = vmatpush1.msra.mxu0 0.0
    %219 = vmatprep.subr.mxu0 0.0
    %220 = vmatpush1.msra.mxu0 0.0
    %221 = vmatprep.subr.mxu0 0.0
    %222 = vmatpush1.msra.mxu0 0.0
    %223 = vmatprep.subr.mxu0 0.0
    %224 = vmatpush1.msra.mxu0 0.0
    %225 = vmatprep.subr.mxu0 0.0
    %226 = vmatpush1.msra.mxu0 0.0
    %227 = vmatprep.subr.mxu0 0.0
    %228 = vmatpush1.msra.mxu0 0.0
    %229 = vmatprep.subr.mxu0 0.0
    %230 = vmatpush1.msra.mxu0 0.0
    %231 = vmatprep.subr.mxu0 0.0
    %232 = vmatpush1.msra.mxu0 0.0
    %233 = vmatprep.subr.mxu0 0.0
    %234 = vmatpush1.msra.mxu0 0.0
    %235 = vmatprep.subr.mxu0 0.0
    %236 = vmatpush1.msra.mxu0 0.0
    %237 = vmatprep.subr.mxu0 0.0
    %238 = vmatpush1.msra.mxu0 0.0
    %239 = vmatprep.subr.mxu0 0.0
    %240 = vmatpush1.msra.mxu0 0.0
    %241 = vmatprep.subr.mxu0 0.0
    %242 = vmatpush1.msra.mxu0 0.0
    %243 = vmatprep.subr.mxu0 0.0
    %244 = vmatpush1.msra.mxu0 0.0
    %245 = vmatprep.subr.mxu0 0.0
    %246 = vmatpush1.msra.mxu0 0.0
    %247 = vmatprep.subr.mxu0 0.0
    %248 = vmatpush1.msra.mxu0 0.0
    %249 = vmatprep.subr.mxu0 0.0
    %250 = vmatpush1.msra.mxu0 0.0
    %251 = vmatprep.subr.mxu0 0.0
    %252 = vmatpush1.msra.mxu0 0.0
    %253 = vmatprep.subr.mxu0 0.0
    %254 = vmatpush1.msra.mxu0 0.0
    %255 = vmatprep.subr.mxu0 0.0
    %256 = vmatpush1.msra.mxu0 0.0
    %257 = vmatprep.subr.mxu0 0.0
    %258 = vmatpush1.msra.mxu0 0.0
    %259 = vmatprep.subr.mxu0 0.0
    %260 = vmatpush1.msra.mxu0 0.0
    %261 = vmatprep.subr.mxu0 0.0
    %262 = vmatpush1.msra.mxu0 0.0
    %263 = vmatprep.mubr.f32.mxu0 0.0
    %v264 = vand.u32 %v19, 4294901760
    %v265 = vsub.f32 %v19, %v264
    %266 = vmatmul.mubr.f32.gmra.mrb[0].mxu0 %v265
    %v267 = vpop.f32.mrb[0].mxu0
    %v268 = vadd.f32 %v188, %v267
    %v269 = vpop.f32.mrb[0].mxu0
    %270 = vdwg.mxu0
    %271 = vmatprep.subr.mxu0 0.0
    %v272 = vand.u32 %v13, 4294901760
    %273 = vmatpush1.msra.mxu0 %v272
    %274 = vmatprep.subr.mxu0 0.0
    %v275 = vand.u32 %v14, 4294901760
    %276 = vmatpush1.msra.mxu0 %v275
    %277 = vmatprep.subr.mxu0 0.0
    %v278 = vand.u32 %v15, 4294901760
    %279 = vmatpush1.msra.mxu0 %v278
    %280 = vmatprep.subr.mxu0 0.0
    %v281 = vand.u32 %v16, 4294901760
    %282 = vmatpush1.msra.mxu0 %v281
    %283 = vmatprep.subr.mxu0 0.0
    %284 = vmatpush1.msra.mxu0 0.0
    %285 = vmatprep.subr.mxu0 0.0
    %286 = vmatpush1.msra.mxu0 0.0
    %287 = vmatprep.subr.mxu0 0.0
    %288 = vmatpush1.msra.mxu0 0.0
    %289 = vmatprep.subr.mxu0 0.0
    %290 = vmatpush1.msra.mxu0 0.0
    %291 = vmatprep.subr.mxu0 0.0
    %292 = vmatpush1.msra.mxu0 0.0
    %293 = vmatprep.subr.mxu0 0.0
    %294 = vmatpush1.msra.mxu0 0.0
    %295 = vmatprep.subr.mxu0 0.0
    %296 = vmatpush1.msra.mxu0 0.0
    %297 = vmatprep.subr.mxu0 0.0
    %298 = vmatpush1.msra.mxu0 0.0
    %299 = vmatprep.subr.mxu0 0.0
    %300 = vmatpush1.msra.mxu0 0.0
    %301 = vmatprep.subr.mxu0 0.0
    %302 = vmatpush1.msra.mxu0 0.0
    %303 = vmatprep.subr.mxu0 0.0
    %304 = vmatpush1.msra.mxu0 0.0
    %305 = vmatprep.subr.mxu0 0.0
    %306 = vmatpush1.msra.mxu0 0.0
    %307 = vmatprep.subr.mxu0 0.0
    %308 = vmatpush1.msra.mxu0 0.0
    %309 = vmatprep.subr.mxu0 0.0
    %310 = vmatpush1.msra.mxu0 0.0
    %311 = vmatprep.subr.mxu0 0.0
    %312 = vmatpush1.msra.mxu0 0.0
    %313 = vmatprep.subr.mxu0 0.0
    %314 = vmatpush1.msra.mxu0 0.0
    %315 = vmatprep.subr.mxu0 0.0
    %316 = vmatpush1.msra.mxu0 0.0
    %317 = vmatprep.subr.mxu0 0.0
    %318 = vmatpush1.msra.mxu0 0.0
    %319 = vmatprep.subr.mxu0 0.0
    %320 = vmatpush1.msra.mxu0 0.0
    %321 = vmatprep.subr.mxu0 0.0
    %322 = vmatpush1.msra.mxu0 0.0
    %323 = vmatprep.subr.mxu0 0.0
    %324 = vmatpush1.msra.mxu0 0.0
    %325 = vmatprep.subr.mxu0 0.0
    %326 = vmatpush1.msra.mxu0 0.0
    %327 = vmatprep.subr.mxu0 0.0
    %328 = vmatpush1.msra.mxu0 0.0
    %329 = vmatprep.subr.mxu0 0.0
    %330 = vmatpush1.msra.mxu0 0.0
    %331 = vmatprep.subr.mxu0 0.0
    %332 = vmatpush1.msra.mxu0 0.0
    %333 = vmatprep.subr.mxu0 0.0
    %334 = vmatpush1.msra.mxu0 0.0
    %335 = vmatprep.subr.mxu0 0.0
    %336 = vmatpush1.msra.mxu0 0.0
    %337 = vmatprep.subr.mxu0 0.0
    %338 = vmatpush1.msra.mxu0 0.0
    %339 = vmatprep.mubr.f32.mxu0 0.0
    %v340 = vand.u32 %v19, 4294901760
    %v341 = vsub.f32 %v19, %v340
    %v342 = vand.u32 %v341, 4294901760
    %343 = vmatmul.mubr.f32.gmra.mrb[0].mxu0 %v342
    %v344 = vpop.f32.mrb[0].mxu0
    %v345 = vadd.f32 %v268, %v344
    %v346 = vpop.f32.mrb[0].mxu0
    %347 = vdwg.mxu0
    %348 = vmatprep.subr.mxu0 0.0
    %v349 = vand.u32 %v13, 4294901760
    %v350 = vsub.f32 %v13, %v349
    %v351 = vand.u32 %v350, 4294901760
    %352 = vmatpush1.msra.mxu0 %v351
    %353 = vmatprep.subr.mxu0 0.0
    %v354 = vand.u32 %v14, 4294901760
    %v355 = vsub.f32 %v14, %v354
    %v356 = vand.u32 %v355, 4294901760
    %357 = vmatpush1.msra.mxu0 %v356
    %358 = vmatprep.subr.mxu0 0.0
    %v359 = vand.u32 %v15, 4294901760
    %v360 = vsub.f32 %v15, %v359
    %v361 = vand.u32 %v360, 4294901760
    %362 = vmatpush1.msra.mxu0 %v361
    %363 = vmatprep.subr.mxu0 0.0
    %v364 = vand.u32 %v16, 4294901760
    %v365 = vsub.f32 %v16, %v364
    %v366 = vand.u32 %v365, 4294901760
    %367 = vmatpush1.msra.mxu0 %v366
    %368 = vmatprep.subr.mxu0 0.0
    %369 = vmatpush1.msra.mxu0 0.0
    %370 = vmatprep.subr.mxu0 0.0
    %371 = vmatpush1.msra.mxu0 0.0
    %372 = vmatprep.subr.mxu0 0.0
    %373 = vmatpush1.msra.mxu0 0.0
    %374 = vmatprep.subr.mxu0 0.0
    %375 = vmatpush1.msra.mxu0 0.0
    %376 = vmatprep.subr.mxu0 0.0
    %377 = vmatpush1.msra.mxu0 0.0
    %378 = vmatprep.subr.mxu0 0.0
    %379 = vmatpush1.msra.mxu0 0.0
    %380 = vmatprep.subr.mxu0 0.0
    %381 = vmatpush1.msra.mxu0 0.0
    %382 = vmatprep.subr.mxu0 0.0
    %383 = vmatpush1.msra.mxu0 0.0
    %384 = vmatprep.subr.mxu0 0.0
    %385 = vmatpush1.msra.mxu0 0.0
    %386 = vmatprep.subr.mxu0 0.0
    %387 = vmatpush1.msra.mxu0 0.0
    %388 = vmatprep.subr.mxu0 0.0
    %389 = vmatpush1.msra.mxu0 0.0
    %390 = vmatprep.subr.mxu0 0.0
    %391 = vmatpush1.msra.mxu0 0.0
    %392 = vmatprep.subr.mxu0 0.0
    %393 = vmatpush1.msra.mxu0 0.0
    %394 = vmatprep.subr.mxu0 0.0
    %395 = vmatpush1.msra.mxu0 0.0
    %396 = vmatprep.subr.mxu0 0.0
    %397 = vmatpush1.msra.mxu0 0.0
    %398 = vmatprep.subr.mxu0 0.0
    %399 = vmatpush1.msra.mxu0 0.0
    %400 = vmatprep.subr.mxu0 0.0
    %401 = vmatpush1.msra.mxu0 0.0
    %402 = vmatprep.subr.mxu0 0.0
    %403 = vmatpush1.msra.mxu0 0.0
    %404 = vmatprep.subr.mxu0 0.0
    %405 = vmatpush1.msra.mxu0 0.0
    %406 = vmatprep.subr.mxu0 0.0
    %407 = vmatpush1.msra.mxu0 0.0
    %408 = vmatprep.subr.mxu0 0.0
    %409 = vmatpush1.msra.mxu0 0.0
    %410 = vmatprep.subr.mxu0 0.0
    %411 = vmatpush1.msra.mxu0 0.0
    %412 = vmatprep.subr.mxu0 0.0
    %413 = vmatpush1.msra.mxu0 0.0
    %414 = vmatprep.subr.mxu0 0.0
    %415 = vmatpush1.msra.mxu0 0.0
    %416 = vmatprep.subr.mxu0 0.0
    %417 = vmatpush1.msra.mxu0 0.0
    %418 = vmatprep.subr.mxu0 0.0
    %419 = vmatpush1.msra.mxu0 0.0
    %420 = vmatprep.subr.mxu0 0.0
    %421 = vmatpush1.msra.mxu0 0.0
    %422 = vmatprep.subr.mxu0 0.0
    %423 = vmatpush1.msra.mxu0 0.0
    %424 = vmatprep.mubr.f32.mxu0 0.0
    %v425 = vand.u32 %v19, 4294901760
    %426 = vmatmul.mubr.f32.gmra.mrb[0].mxu0 %v425
    %v427 = vpop.f32.mrb[0].mxu0
    %v428 = vadd.f32 %v345, %v427
    %v429 = vpop.f32.mrb[0].mxu0
    %430 = vdwg.mxu0
    %431 = vmatprep.subr.mxu0 0.0
    %v432 = vand.u32 %v13, 4294901760
    %433 = vmatpush1.msra.mxu0 %v432
    %434 = vmatprep.subr.mxu0 0.0
    %v435 = vand.u32 %v14, 4294901760
    %436 = vmatpush1.msra.mxu0 %v435
    %437 = vmatprep.subr.mxu0 0.0
    %v438 = vand.u32 %v15, 4294901760
    %439 = vmatpush1.msra.mxu0 %v438
    %440 = vmatprep.subr.mxu0 0.0
    %v441 = vand.u32 %v16, 4294901760
    %442 = vmatpush1.msra.mxu0 %v441
    %443 = vmatprep.subr.mxu0 0.0
    %444 = vmatpush1.msra.mxu0 0.0
    %445 = vmatprep.subr.mxu0 0.0
    %446 = vmatpush1.msra.mxu0 0.0
    %447 = vmatprep.subr.mxu0 0.0
    %448 = vmatpush1.msra.mxu0 0.0
    %449 = vmatprep.subr.mxu0 0.0
    %450 = vmatpush1.msra.mxu0 0.0
    %451 = vmatprep.subr.mxu0 0.0
    %452 = vmatpush1.msra.mxu0 0.0
    %453 = vmatprep.subr.mxu0 0.0
    %454 = vmatpush1.msra.mxu0 0.0
    %455 = vmatprep.subr.mxu0 0.0
    %456 = vmatpush1.msra.mxu0 0.0
    %457 = vmatprep.subr.mxu0 0.0
    %458 = vmatpush1.msra.mxu0 0.0
    %459 = vmatprep.subr.mxu0 0.0
    %460 = vmatpush1.msra.mxu0 0.0
    %461 = vmatprep.subr.mxu0 0.0
    %462 = vmatpush1.msra.mxu0 0.0
    %463 = vmatprep.subr.mxu0 0.0
    %464 = vmatpush1.msra.mxu0 0.0
    %465 = vmatprep.subr.mxu0 0.0
    %466 = vmatpush1.msra.mxu0 0.0
    %467 = vmatprep.subr.mxu0 0.0
    %468 = vmatpush1.msra.mxu0 0.0
    %469 = vmatprep.subr.mxu0 0.0
    %470 = vmatpush1.msra.mxu0 0.0
    %471 = vmatprep.subr.mxu0 0.0
    %472 = vmatpush1.msra.mxu0 0.0
    %473 = vmatprep.subr.mxu0 0.0
    %474 = vmatpush1.msra.mxu0 0.0
    %475 = vmatprep.subr.mxu0 0.0
    %476 = vmatpush1.msra.mxu0 0.0
    %477 = vmatprep.subr.mxu0 0.0
    %478 = vmatpush1.msra.mxu0 0.0
    %479 = vmatprep.subr.mxu0 0.0
    %480 = vmatpush1.msra.mxu0 0.0
    %481 = vmatprep.subr.mxu0 0.0
    %482 = vmatpush1.msra.mxu0 0.0
    %483 = vmatprep.subr.mxu0 0.0
    %484 = vmatpush1.msra.mxu0 0.0
    %485 = vmatprep.subr.mxu0 0.0
    %486 = vmatpush1.msra.mxu0 0.0
    %487 = vmatprep.subr.mxu0 0.0
    %488 = vmatpush1.msra.mxu0 0.0
    %489 = vmatprep.subr.mxu0 0.0
    %490 = vmatpush1.msra.mxu0 0.0
    %491 = vmatprep.subr.mxu0 0.0
    %492 = vmatpush1.msra.mxu0 0.0
    %493 = vmatprep.subr.mxu0 0.0
    %494 = vmatpush1.msra.mxu0 0.0
    %495 = vmatprep.subr.mxu0 0.0
    %496 = vmatpush1.msra.mxu0 0.0
    %497 = vmatprep.subr.mxu0 0.0
    %498 = vmatpush1.msra.mxu0 0.0
    %499 = vmatprep.mubr.f32.mxu0 0.0
    %v500 = vand.u32 %v19, 4294901760
    %501 = vmatmul.mubr.f32.gmra.mrb[0].mxu0 %v500
    %v502 = vpop.f32.mrb[0].mxu0
    %v503 = vadd.f32 %v428, %v502
    %v504 = vpop.f32.mrb[0].mxu0
    %505 = vdwg.mxu0
    %v506 = vld [vmem:[%s1 + $0x40] sm:$0xff]
    %v507 = vld [vmem:[%s1 + $0x48] sm:$0xff]
    %v508 = vld [vmem:[%s1 + $0x50] sm:$0xff]
    %v509 = vld [vmem:[%s1 + $0x58] sm:$0xff]
    %v510 = vld [vmem:[%s1 + $0x60] sm:$0xff]
    %v511 = vld [vmem:[%s1 + $0x68] sm:$0xff]
    %vm512 = vcmask 392192
    %v514 = vsel %vm512, %v503, 0
    %516 = vmatprep.subr.mxu0 0.0
    %v517 = vand.u32 %v506, 4294901760
    %518 = vmatpush1.msra.mxu0 %v517
    %519 = vmatprep.subr.mxu0 0.0
    %v520 = vand.u32 %v507, 4294901760
    %521 = vmatpush1.msra.mxu0 %v520
    %522 = vmatprep.subr.mxu0 0.0
    %v523 = vand.u32 %v508, 4294901760
    %524 = vmatpush1.msra.mxu0 %v523
    %525 = vmatprep.subr.mxu0 0.0
    %v526 = vand.u32 %v509, 4294901760
    %527 = vmatpush1.msra.mxu0 %v526
    %528 = vmatprep.subr.mxu0 0.0
    %v529 = vand.u32 %v510, 4294901760
    %530 = vmatpush1.msra.mxu0 %v529
    %531 = vmatprep.subr.mxu0 0.0
    %v532 = vand.u32 %v511, 4294901760
    %533 = vmatpush1.msra.mxu0 %v532
    %534 = vmatprep.subr.mxu0 0.0
    %535 = vmatpush1.msra.mxu0 0.0
    %536 = vmatprep.subr.mxu0 0.0
    %537 = vmatpush1.msra.mxu0 0.0
    %538 = vmatprep.subr.mxu0 0.0
    %539 = vmatpush1.msra.mxu0 0.0
    %540 = vmatprep.subr.mxu0 0.0
    %541 = vmatpush1.msra.mxu0 0.0
    %542 = vmatprep.subr.mxu0 0.0
    %543 = vmatpush1.msra.mxu0 0.0
    %544 = vmatprep.subr.mxu0 0.0
    %545 = vmatpush1.msra.mxu0 0.0
    %546 = vmatprep.subr.mxu0 0.0
    %547 = vmatpush1.msra.mxu0 0.0
    %548 = vmatprep.subr.mxu0 0.0
    %549 = vmatpush1.msra.mxu0 0.0
    %550 = vmatprep.subr.mxu0 0.0
    %551 = vmatpush1.msra.mxu0 0.0
    %552 = vmatprep.subr.mxu0 0.0
    %553 = vmatpush1.msra.mxu0 0.0
    %554 = vmatprep.subr.mxu0 0.0
    %555 = vmatpush1.msra.mxu0 0.0
    %556 = vmatprep.subr.mxu0 0.0
    %557 = vmatpush1.msra.mxu0 0.0
    %558 = vmatprep.subr.mxu0 0.0
    %559 = vmatpush1.msra.mxu0 0.0
    %560 = vmatprep.subr.mxu0 0.0
    %561 = vmatpush1.msra.mxu0 0.0
    %562 = vmatprep.subr.mxu0 0.0
    %563 = vmatpush1.msra.mxu0 0.0
    %564 = vmatprep.subr.mxu0 0.0
    %565 = vmatpush1.msra.mxu0 0.0
    %566 = vmatprep.subr.mxu0 0.0
    %567 = vmatpush1.msra.mxu0 0.0
    %568 = vmatprep.subr.mxu0 0.0
    %569 = vmatpush1.msra.mxu0 0.0
    %570 = vmatprep.subr.mxu0 0.0
    %571 = vmatpush1.msra.mxu0 0.0
    %572 = vmatprep.subr.mxu0 0.0
    %573 = vmatpush1.msra.mxu0 0.0
    %574 = vmatprep.subr.mxu0 0.0
    %575 = vmatpush1.msra.mxu0 0.0
    %576 = vmatprep.subr.mxu0 0.0
    %577 = vmatpush1.msra.mxu0 0.0
    %578 = vmatprep.subr.mxu0 0.0
    %579 = vmatpush1.msra.mxu0 0.0
    %580 = vmatprep.subr.mxu0 0.0
    %581 = vmatpush1.msra.mxu0 0.0
    %582 = vmatprep.subr.mxu0 0.0
    %583 = vmatpush1.msra.mxu0 0.0
    %584 = vmatprep.subr.mxu0 0.0
    %585 = vmatpush1.msra.mxu0 0.0
    %586 = vmatprep.mubr.f32.mxu0 0.0
    %v587 = vand.u32 %v514, 4294901760
    %v588 = vsub.f32 %v514, %v587
    %v589 = vand.u32 %v588, 4294901760
    %v590 = vsub.f32 %v588, %v589
    %v591 = vand.u32 %v590, 4294901760
    %592 = vmatmul.mubr.f32.gmra.mrb[0].mxu0 %v591
    %v593 = vpop.f32.mrb[0].mxu0
    %v594 = vadd.f32 0.0, %v593
    %v595 = vpop.f32.mrb[0].mxu0
    %596 = vdwg.mxu0
    %597 = vmatprep.subr.mxu0 0.0
    %v598 = vand.u32 %v506, 4294901760
    %v599 = vsub.f32 %v506, %v598
    %v600 = vand.u32 %v599, 4294901760
    %v601 = vsub.f32 %v599, %v600
    %v602 = vand.u32 %v601, 4294901760
    %603 = vmatpush1.msra.mxu0 %v602
    %604 = vmatprep.subr.mxu0 0.0
    %v605 = vand.u32 %v507, 4294901760
    %v606 = vsub.f32 %v507, %v605
    %v607 = vand.u32 %v606, 4294901760
    %v608 = vsub.f32 %v606, %v607
    %v609 = vand.u32 %v608, 4294901760
    %610 = vmatpush1.msra.mxu0 %v609
    %611 = vmatprep.subr.mxu0 0.0
    %v612 = vand.u32 %v508, 4294901760
    %v613 = vsub.f32 %v508, %v612
    %v614 = vand.u32 %v613, 4294901760
    %v615 = vsub.f32 %v613, %v614
    %v616 = vand.u32 %v615, 4294901760
    %617 = vmatpush1.msra.mxu0 %v616
    %618 = vmatprep.subr.mxu0 0.0
    %v619 = vand.u32 %v509, 4294901760
    %v620 = vsub.f32 %v509, %v619
    %v621 = vand.u32 %v620, 4294901760
    %v622 = vsub.f32 %v620, %v621
    %v623 = vand.u32 %v622, 4294901760
    %624 = vmatpush1.msra.mxu0 %v623
    %625 = vmatprep.subr.mxu0 0.0
    %v626 = vand.u32 %v510, 4294901760
    %v627 = vsub.f32 %v510, %v626
    %v628 = vand.u32 %v627, 4294901760
    %v629 = vsub.f32 %v627, %v628
    %v630 = vand.u32 %v629, 4294901760
    %631 = vmatpush1.msra.mxu0 %v630
    %632 = vmatprep.subr.mxu0 0.0
    %v633 = vand.u32 %v511, 4294901760
    %v634 = vsub.f32 %v511, %v633
    %v635 = vand.u32 %v634, 4294901760
    %v636 = vsub.f32 %v634, %v635
    %v637 = vand.u32 %v636, 4294901760
    %638 = vmatpush1.msra.mxu0 %v637
    %639 = vmatprep.subr.mxu0 0.0
    %640 = vmatpush1.msra.mxu0 0.0
    %641 = vmatprep.subr.mxu0 0.0
    %642 = vmatpush1.msra.mxu0 0.0
    %643 = vmatprep.subr.mxu0 0.0
    %644 = vmatpush1.msra.mxu0 0.0
    %645 = vmatprep.subr.mxu0 0.0
    %646 = vmatpush1.msra.mxu0 0.0
    %647 = vmatprep.subr.mxu0 0.0
    %648 = vmatpush1.msra.mxu0 0.0
    %649 = vmatprep.subr.mxu0 0.0
    %650 = vmatpush1.msra.mxu0 0.0
    %651 = vmatprep.subr.mxu0 0.0
    %652 = vmatpush1.msra.mxu0 0.0
    %653 = vmatprep.subr.mxu0 0.0
    %654 = vmatpush1.msra.mxu0 0.0
    %655 = vmatprep.subr.mxu0 0.0
    %656 = vmatpush1.msra.mxu0 0.0
    %657 = vmatprep.subr.mxu0 0.0
    %658 = vmatpush1.msra.mxu0 0.0
    %659 = vmatprep.subr.mxu0 0.0
    %660 = vmatpush1.msra.mxu0 0.0
    %661 = vmatprep.subr.mxu0 0.0
    %662 = vmatpush1.msra.mxu0 0.0
    %663 = vmatprep.subr.mxu0 0.0
    %664 = vmatpush1.msra.mxu0 0.0
    %665 = vmatprep.subr.mxu0 0.0
    %666 = vmatpush1.msra.mxu0 0.0
    %667 = vmatprep.subr.mxu0 0.0
    %668 = vmatpush1.msra.mxu0 0.0
    %669 = vmatprep.subr.mxu0 0.0
    %670 = vmatpush1.msra.mxu0 0.0
    %671 = vmatprep.subr.mxu0 0.0
    %672 = vmatpush1.msra.mxu0 0.0
    %673 = vmatprep.subr.mxu0 0.0
    %674 = vmatpush1.msra.mxu0 0.0
    %675 = vmatprep.subr.mxu0 0.0
    %676 = vmatpush1.msra.mxu0 0.0
    %677 = vmatprep.subr.mxu0 0.0
    %678 = vmatpush1.msra.mxu0 0.0
    %679 = vmatprep.subr.mxu0 0.0
    %680 = vmatpush1.msra.mxu0 0.0
    %681 = vmatprep.subr.mxu0 0.0
    %682 = vmatpush1.msra.mxu0 0.0
    %683 = vmatprep.subr.mxu0 0.0
    %684 = vmatpush1.msra.mxu0 0.0
    %685 = vmatprep.subr.mxu0 0.0
    %686 = vmatpush1.msra.mxu0 0.0
    %687 = vmatprep.subr.mxu0 0.0
    %688 = vmatpush1.msra.mxu0 0.0
    %689 = vmatprep.subr.mxu0 0.0
    %690 = vmatpush1.msra.mxu0 0.0
    %691 = vmatprep.mubr.f32.mxu0 0.0
    %v692 = vand.u32 %v514, 4294901760
    %693 = vmatmul.mubr.f32.gmra.mrb[0].mxu0 %v692
    %v694 = vpop.f32.mrb[0].mxu0
    %v695 = vadd.f32 %v594, %v694
    %v696 = vpop.f32.mrb[0].mxu0
    %697 = vdwg.mxu0
    %698 = vmatprep.subr.mxu0 0.0
    %v699 = vand.u32 %v506, 4294901760
    %v700 = vsub.f32 %v506, %v699
    %701 = vmatpush1.msra.mxu0 %v700
    %702 = vmatprep.subr.mxu0 0.0
    %v703 = vand.u32 %v507, 4294901760
    %v704 = vsub.f32 %v507, %v703
    %705 = vmatpush1.msra.mxu0 %v704
    %706 = vmatprep.subr.mxu0 0.0
    %v707 = vand.u32 %v508, 4294901760
    %v708 = vsub.f32 %v508, %v707
    %709 = vmatpush1.msra.mxu0 %v708
    %710 = vmatprep.subr.mxu0 0.0
    %v711 = vand.u32 %v509, 4294901760
    %v712 = vsub.f32 %v509, %v711
    %713 = vmatpush1.msra.mxu0 %v712
    %714 = vmatprep.subr.mxu0 0.0
    %v715 = vand.u32 %v510, 4294901760
    %v716 = vsub.f32 %v510, %v715
    %717 = vmatpush1.msra.mxu0 %v716
    %718 = vmatprep.subr.mxu0 0.0
    %v719 = vand.u32 %v511, 4294901760
    %v720 = vsub.f32 %v511, %v719
    %721 = vmatpush1.msra.mxu0 %v720
    %722 = vmatprep.subr.mxu0 0.0
    %723 = vmatpush1.msra.mxu0 0.0
    %724 = vmatprep.subr.mxu0 0.0
    %725 = vmatpush1.msra.mxu0 0.0
    %726 = vmatprep.subr.mxu0 0.0
    %727 = vmatpush1.msra.mxu0 0.0
    %728 = vmatprep.subr.mxu0 0.0
    %729 = vmatpush1.msra.mxu0 0.0
    %730 = vmatprep.subr.mxu0 0.0
    %731 = vmatpush1.msra.mxu0 0.0
    %732 = vmatprep.subr.mxu0 0.0
    %733 = vmatpush1.msra.mxu0 0.0
    %734 = vmatprep.subr.mxu0 0.0
    %735 = vmatpush1.msra.mxu0 0.0
    %736 = vmatprep.subr.mxu0 0.0
    %737 = vmatpush1.msra.mxu0 0.0
    %738 = vmatprep.subr.mxu0 0.0
    %739 = vmatpush1.msra.mxu0 0.0
    %740 = vmatprep.subr.mxu0 0.0
    %741 = vmatpush1.msra.mxu0 0.0
    %742 = vmatprep.subr.mxu0 0.0
    %743 = vmatpush1.msra.mxu0 0.0
    %744 = vmatprep.subr.mxu0 0.0
    %745 = vmatpush1.msra.mxu0 0.0
    %746 = vmatprep.subr.mxu0 0.0
    %747 = vmatpush1.msra.mxu0 0.0
    %748 = vmatprep.subr.mxu0 0.0
    %749 = vmatpush1.msra.mxu0 0.0
    %750 = vmatprep.subr.mxu0 0.0
    %751 = vmatpush1.msra.mxu0 0.0
    %752 = vmatprep.subr.mxu0 0.0
    %753 = vmatpush1.msra.mxu0 0.0
    %754 = vmatprep.subr.mxu0 0.0
    %755 = vmatpush1.msra.mxu0 0.0
    %756 = vmatprep.subr.mxu0 0.0
    %757 = vmatpush1.msra.mxu0 0.0
    %758 = vmatprep.subr.mxu0 0.0
    %759 = vmatpush1.msra.mxu0 0.0
    %760 = vmatprep.subr.mxu0 0.0
    %761 = vmatpush1.msra.mxu0 0.0
    %762 = vmatprep.subr.mxu0 0.0
    %763 = vmatpush1.msra.mxu0 0.0
    %764 = vmatprep.subr.mxu0 0.0
    %765 = vmatpush1.msra.mxu0 0.0
    %766 = vmatprep.subr.mxu0 0.0
    %767 = vmatpush1.msra.mxu0 0.0
    %768 = vmatprep.subr.mxu0 0.0
    %769 = vmatpush1.msra.mxu0 0.0
    %770 = vmatprep.subr.mxu0 0.0
    %771 = vmatpush1.msra.mxu0 0.0
    %772 = vmatprep.subr.mxu0 0.0
    %773 = vmatpush1.msra.mxu0 0.0
    %774 = vmatprep.mubr.f32.mxu0 0.0
    %v775 = vand.u32 %v514, 4294901760
    %v776 = vsub.f32 %v514, %v775
    %777 = vmatmul.mubr.f32.gmra.mrb[0].mxu0 %v776
    %v778 = vpop.f32.mrb[0].mxu0
    %v779 = vadd.f32 %v695, %v778
    %v780 = vpop.f32.mrb[0].mxu0
    %781 = vdwg.mxu0
    %782 = vmatprep.subr.mxu0 0.0
    %v783 = vand.u32 %v506, 4294901760
    %784 = vmatpush1.msra.mxu0 %v783
    %785 = vmatprep.subr.mxu0 0.0
    %v786 = vand.u32 %v507, 4294901760
    %787 = vmatpush1.msra.mxu0 %v786
    %788 = vmatprep.subr.mxu0 0.0
    %v789 = vand.u32 %v508, 4294901760
    %790 = vmatpush1.msra.mxu0 %v789
    %791 = vmatprep.subr.mxu0 0.0
    %v792 = vand.u32 %v509, 4294901760
    %793 = vmatpush1.msra.mxu0 %v792
    %794 = vmatprep.subr.mxu0 0.0
    %v795 = vand.u32 %v510, 4294901760
    %796 = vmatpush1.msra.mxu0 %v795
    %797 = vmatprep.subr.mxu0 0.0
    %v798 = vand.u32 %v511, 4294901760
    %799 = vmatpush1.msra.mxu0 %v798
    %800 = vmatprep.subr.mxu0 0.0
    %801 = vmatpush1.msra.mxu0 0.0
    %802 = vmatprep.subr.mxu0 0.0
    %803 = vmatpush1.msra.mxu0 0.0
    %804 = vmatprep.subr.mxu0 0.0
    %805 = vmatpush1.msra.mxu0 0.0
    %806 = vmatprep.subr.mxu0 0.0
    %807 = vmatpush1.msra.mxu0 0.0
    %808 = vmatprep.subr.mxu0 0.0
    %809 = vmatpush1.msra.mxu0 0.0
    %810 = vmatprep.subr.mxu0 0.0
    %811 = vmatpush1.msra.mxu0 0.0
    %812 = vmatprep.subr.mxu0 0.0
    %813 = vmatpush1.msra.mxu0 0.0
    %814 = vmatprep.subr.mxu0 0.0
    %815 = vmatpush1.msra.mxu0 0.0
    %816 = vmatprep.subr.mxu0 0.0
    %817 = vmatpush1.msra.mxu0 0.0
    %818 = vmatprep.subr.mxu0 0.0
    %819 = vmatpush1.msra.mxu0 0.0
    %820 = vmatprep.subr.mxu0 0.0
    %821 = vmatpush1.msra.mxu0 0.0
    %822 = vmatprep.subr.mxu0 0.0
    %823 = vmatpush1.msra.mxu0 0.0
    %824 = vmatprep.subr.mxu0 0.0
    %825 = vmatpush1.msra.mxu0 0.0
    %826 = vmatprep.subr.mxu0 0.0
    %827 = vmatpush1.msra.mxu0 0.0
    %828 = vmatprep.subr.mxu0 0.0
    %829 = vmatpush1.msra.mxu0 0.0
    %830 = vmatprep.subr.mxu0 0.0
    %831 = vmatpush1.msra.mxu0 0.0
    %832 = vmatprep.subr.mxu0 0.0
    %833 = vmatpush1.msra.mxu0 0.0
    %834 = vmatprep.subr.mxu0 0.0
    %835 = vmatpush1.msra.mxu0 0.0
    %836 = vmatprep.subr.mxu0 0.0
    %837 = vmatpush1.msra.mxu0 0.0
    %838 = vmatprep.subr.mxu0 0.0
    %839 = vmatpush1.msra.mxu0 0.0
    %840 = vmatprep.subr.mxu0 0.0
    %841 = vmatpush1.msra.mxu0 0.0
    %842 = vmatprep.subr.mxu0 0.0
    %843 = vmatpush1.msra.mxu0 0.0
    %844 = vmatprep.subr.mxu0 0.0
    %845 = vmatpush1.msra.mxu0 0.0
    %846 = vmatprep.subr.mxu0 0.0
    %847 = vmatpush1.msra.mxu0 0.0
    %848 = vmatprep.subr.mxu0 0.0
    %849 = vmatpush1.msra.mxu0 0.0
    %850 = vmatprep.subr.mxu0 0.0
    %851 = vmatpush1.msra.mxu0 0.0
    %852 = vmatprep.mubr.f32.mxu0 0.0
    %v853 = vand.u32 %v514, 4294901760
    %v854 = vsub.f32 %v514, %v853
    %v855 = vand.u32 %v854, 4294901760
    %856 = vmatmul.mubr.f32.gmra.mrb[0].mxu0 %v855
    %v857 = vpop.f32.mrb[0].mxu0
    %v858 = vadd.f32 %v779, %v857
    %v859 = vpop.f32.mrb[0].mxu0
    %860 = vdwg.mxu0
    %861 = vmatprep.subr.mxu0 0.0
    %v862 = vand.u32 %v506, 4294901760
    %v863 = vsub.f32 %v506, %v862
    %v864 = vand.u32 %v863, 4294901760
    %865 = vmatpush1.msra.mxu0 %v864
    %866 = vmatprep.subr.mxu0 0.0
    %v867 = vand.u32 %v507, 4294901760
    %v868 = vsub.f32 %v507, %v867
    %v869 = vand.u32 %v868, 4294901760
    %870 = vmatpush1.msra.mxu0 %v869
    %871 = vmatprep.subr.mxu0 0.0
    %v872 = vand.u32 %v508, 4294901760
    %v873 = vsub.f32 %v508, %v872
    %v874 = vand.u32 %v873, 4294901760
    %875 = vmatpush1.msra.mxu0 %v874
    %876 = vmatprep.subr.mxu0 0.0
    %v877 = vand.u32 %v509, 4294901760
    %v878 = vsub.f32 %v509, %v877
    %v879 = vand.u32 %v878, 4294901760
    %880 = vmatpush1.msra.mxu0 %v879
    %881 = vmatprep.subr.mxu0 0.0
    %v882 = vand.u32 %v510, 4294901760
    %v883 = vsub.f32 %v510, %v882
    %v884 = vand.u32 %v883, 4294901760
    %885 = vmatpush1.msra.mxu0 %v884
    %886 = vmatprep.subr.mxu0 0.0
    %v887 = vand.u32 %v511, 4294901760
    %v888 = vsub.f32 %v511, %v887
    %v889 = vand.u32 %v888, 4294901760
    %890 = vmatpush1.msra.mxu0 %v889
    %891 = vmatprep.subr.mxu0 0.0
    %892 = vmatpush1.msra.mxu0 0.0
    %893 = vmatprep.subr.mxu0 0.0
    %894 = vmatpush1.msra.mxu0 0.0
    %895 = vmatprep.subr.mxu0 0.0
    %896 = vmatpush1.msra.mxu0 0.0
    %897 = vmatprep.subr.mxu0 0.0
    %898 = vmatpush1.msra.mxu0 0.0
    %899 = vmatprep.subr.mxu0 0.0
    %900 = vmatpush1.msra.mxu0 0.0
    %901 = vmatprep.subr.mxu0 0.0
    %902 = vmatpush1.msra.mxu0 0.0
    %903 = vmatprep.subr.mxu0 0.0
    %904 = vmatpush1.msra.mxu0 0.0
    %905 = vmatprep.subr.mxu0 0.0
    %906 = vmatpush1.msra.mxu0 0.0
    %907 = vmatprep.subr.mxu0 0.0
    %908 = vmatpush1.msra.mxu0 0.0
    %909 = vmatprep.subr.mxu0 0.0
    %910 = vmatpush1.msra.mxu0 0.0
    %911 = vmatprep.subr.mxu0 0.0
    %912 = vmatpush1.msra.mxu0 0.0
    %913 = vmatprep.subr.mxu0 0.0
    %914 = vmatpush1.msra.mxu0 0.0
    %915 = vmatprep.subr.mxu0 0.0
    %916 = vmatpush1.msra.mxu0 0.0
    %917 = vmatprep.subr.mxu0 0.0
    %918 = vmatpush1.msra.mxu0 0.0
    %919 = vmatprep.subr.mxu0 0.0
    %920 = vmatpush1.msra.mxu0 0.0
    %921 = vmatprep.subr.mxu0 0.0
    %922 = vmatpush1.msra.mxu0 0.0
    %923 = vmatprep.subr.mxu0 0.0
    %924 = vmatpush1.msra.mxu0 0.0
    %925 = vmatprep.subr.mxu0 0.0
    %926 = vmatpush1.msra.mxu0 0.0
    %927 = vmatprep.subr.mxu0 0.0
    %928 = vmatpush1.msra.mxu0 0.0
    %929 = vmatprep.subr.mxu0 0.0
    %930 = vmatpush1.msra.mxu0 0.0
    %931 = vmatprep.subr.mxu0 0.0
    %932 = vmatpush1.msra.mxu0 0.0
    %933 = vmatprep.subr.mxu0 0.0
    %934 = vmatpush1.msra.mxu0 0.0
    %935 = vmatprep.subr.mxu0 0.0
    %936 = vmatpush1.msra.mxu0 0.0
    %937 = vmatprep.subr.mxu0 0.0
    %938 = vmatpush1.msra.mxu0 0.0
    %939 = vmatprep.subr.mxu0 0.0
    %940 = vmatpush1.msra.mxu0 0.0
    %941 = vmatprep.subr.mxu0 0.0
    %942 = vmatpush1.msra.mxu0 0.0
    %943 = vmatprep.mubr.f32.mxu0 0.0
    %v944 = vand.u32 %v514, 4294901760
    %945 = vmatmul.mubr.f32.gmra.mrb[0].mxu0 %v944
    %v946 = vpop.f32.mrb[0].mxu0
    %v947 = vadd.f32 %v858, %v946
    %v948 = vpop.f32.mrb[0].mxu0
    %949 = vdwg.mxu0
    %950 = vmatprep.subr.mxu0 0.0
    %v951 = vand.u32 %v506, 4294901760
    %952 = vmatpush1.msra.mxu0 %v951
    %953 = vmatprep.subr.mxu0 0.0
    %v954 = vand.u32 %v507, 4294901760
    %955 = vmatpush1.msra.mxu0 %v954
    %956 = vmatprep.subr.mxu0 0.0
    %v957 = vand.u32 %v508, 4294901760
    %958 = vmatpush1.msra.mxu0 %v957
    %959 = vmatprep.subr.mxu0 0.0
    %v960 = vand.u32 %v509, 4294901760
    %961 = vmatpush1.msra.mxu0 %v960
    %962 = vmatprep.subr.mxu0 0.0
    %v963 = vand.u32 %v510, 4294901760
    %964 = vmatpush1.msra.mxu0 %v963
    %965 = vmatprep.subr.mxu0 0.0
    %v966 = vand.u32 %v511, 4294901760
    %967 = vmatpush1.msra.mxu0 %v966
    %968 = vmatprep.subr.mxu0 0.0
    %969 = vmatpush1.msra.mxu0 0.0
    %970 = vmatprep.subr.mxu0 0.0
    %971 = vmatpush1.msra.mxu0 0.0
    %972 = vmatprep.subr.mxu0 0.0
    %973 = vmatpush1.msra.mxu0 0.0
    %974 = vmatprep.subr.mxu0 0.0
    %975 = vmatpush1.msra.mxu0 0.0
    %976 = vmatprep.subr.mxu0 0.0
    %977 = vmatpush1.msra.mxu0 0.0
    %978 = vmatprep.subr.mxu0 0.0
    %979 = vmatpush1.msra.mxu0 0.0
    %980 = vmatprep.subr.mxu0 0.0
    %981 = vmatpush1.msra.mxu0 0.0
    %982 = vmatprep.subr.mxu0 0.0
    %983 = vmatpush1.msra.mxu0 0.0
    %984 = vmatprep.subr.mxu0 0.0
    %985 = vmatpush1.msra.mxu0 0.0
    %986 = vmatprep.subr.mxu0 0.0
    %987 = vmatpush1.msra.mxu0 0.0
    %988 = vmatprep.subr.mxu0 0.0
    %989 = vmatpush1.msra.mxu0 0.0
    %990 = vmatprep.subr.mxu0 0.0
    %991 = vmatpush1.msra.mxu0 0.0
    %992 = vmatprep.subr.mxu0 0.0
    %993 = vmatpush1.msra.mxu0 0.0
    %994 = vmatprep.subr.mxu0 0.0
    %995 = vmatpush1.msra.mxu0 0.0
    %996 = vmatprep.subr.mxu0 0.0
    %997 = vmatpush1.msra.mxu0 0.0
    %998 = vmatprep.subr.mxu0 0.0
    %999 = vmatpush1.msra.mxu0 0.0
    %1000 = vmatprep.subr.mxu0 0.0
    %1001 = vmatpush1.msra.mxu0 0.0
    %1002 = vmatprep.subr.mxu0 0.0
    %1003 = vmatpush1.msra.mxu0 0.0
    %1004 = vmatprep.subr.mxu0 0.0
    %1005 = vmatpush1.msra.mxu0 0.0
    %1006 = vmatprep.subr.mxu0 0.0
    %1007 = vmatpush1.msra.mxu0 0.0
    %1008 = vmatprep.subr.mxu0 0.0
    %1009 = vmatpush1.msra.mxu0 0.0
    %1010 = vmatprep.subr.mxu0 0.0
    %1011 = vmatpush1.msra.mxu0 0.0
    %1012 = vmatprep.subr.mxu0 0.0
    %1013 = vmatpush1.msra.mxu0 0.0
    %1014 = vmatprep.subr.mxu0 0.0
    %1015 = vmatpush1.msra.mxu0 0.0
    %1016 = vmatprep.subr.mxu0 0.0
    %1017 = vmatpush1.msra.mxu0 0.0
    %1018 = vmatprep.subr.mxu0 0.0
    %1019 = vmatpush1.msra.mxu0 0.0
    %1020 = vmatprep.mubr.f32.mxu0 0.0
    %v1021 = vand.u32 %v514, 4294901760
    %1022 = vmatmul.mubr.f32.gmra.mrb[0].mxu0 %v1021
    %v1023 = vpop.f32.mrb[0].mxu0
    %v1024 = vadd.f32 %v947, %v1023
    %v1025 = vpop.f32.mrb[0].mxu0
    %1026 = vdwg.mxu0
    %v1027 = vsub.f32 %v503, %v1024
    %v1028 = vmul.f32 %v1027, %v1027
    %v1029 = vld [vmem:[%s1 + $0xa0] sm:$0x7]
    %v1031 = vsel %vm512, %v1028, 0
    %1033 = vmatprep.subr.mxu0 0.0
    %v1034 = vand.u32 %v506, 4294901760
    %1035 = vmatpush1.msra.mxu0 %v1034
    %1036 = vmatprep.subr.mxu0 0.0
    %v1037 = vand.u32 %v507, 4294901760
    %1038 = vmatpush1.msra.mxu0 %v1037
    %1039 = vmatprep.subr.mxu0 0.0
    %v1040 = vand.u32 %v508, 4294901760
    %1041 = vmatpush1.msra.mxu0 %v1040
    %1042 = vmatprep.subr.mxu0 0.0
    %v1043 = vand.u32 %v509, 4294901760
    %1044 = vmatpush1.msra.mxu0 %v1043
    %1045 = vmatprep.subr.mxu0 0.0
    %v1046 = vand.u32 %v510, 4294901760
    %1047 = vmatpush1.msra.mxu0 %v1046
    %1048 = vmatprep.subr.mxu0 0.0
    %v1049 = vand.u32 %v511, 4294901760
    %1050 = vmatpush1.msra.mxu0 %v1049
    %1051 = vmatprep.subr.mxu0 0.0
    %1052 = vmatpush1.msra.mxu0 0.0
    %1053 = vmatprep.subr.mxu0 0.0
    %1054 = vmatpush1.msra.mxu0 0.0
    %1055 = vmatprep.subr.mxu0 0.0
    %1056 = vmatpush1.msra.mxu0 0.0
    %1057 = vmatprep.subr.mxu0 0.0
    %1058 = vmatpush1.msra.mxu0 0.0
    %1059 = vmatprep.subr.mxu0 0.0
    %1060 = vmatpush1.msra.mxu0 0.0
    %1061 = vmatprep.subr.mxu0 0.0
    %1062 = vmatpush1.msra.mxu0 0.0
    %1063 = vmatprep.subr.mxu0 0.0
    %1064 = vmatpush1.msra.mxu0 0.0
    %1065 = vmatprep.subr.mxu0 0.0
    %1066 = vmatpush1.msra.mxu0 0.0
    %1067 = vmatprep.subr.mxu0 0.0
    %1068 = vmatpush1.msra.mxu0 0.0
    %1069 = vmatprep.subr.mxu0 0.0
    %1070 = vmatpush1.msra.mxu0 0.0
    %1071 = vmatprep.subr.mxu0 0.0
    %1072 = vmatpush1.msra.mxu0 0.0
    %1073 = vmatprep.subr.mxu0 0.0
    %1074 = vmatpush1.msra.mxu0 0.0
    %1075 = vmatprep.subr.mxu0 0.0
    %1076 = vmatpush1.msra.mxu0 0.0
    %1077 = vmatprep.subr.mxu0 0.0
    %1078 = vmatpush1.msra.mxu0 0.0
    %1079 = vmatprep.subr.mxu0 0.0
    %1080 = vmatpush1.msra.mxu0 0.0
    %1081 = vmatprep.subr.mxu0 0.0
    %1082 = vmatpush1.msra.mxu0 0.0
    %1083 = vmatprep.subr.mxu0 0.0
    %1084 = vmatpush1.msra.mxu0 0.0
    %1085 = vmatprep.subr.mxu0 0.0
    %1086 = vmatpush1.msra.mxu0 0.0
    %1087 = vmatprep.subr.mxu0 0.0
    %1088 = vmatpush1.msra.mxu0 0.0
    %1089 = vmatprep.subr.mxu0 0.0
    %1090 = vmatpush1.msra.mxu0 0.0
    %1091 = vmatprep.subr.mxu0 0.0
    %1092 = vmatpush1.msra.mxu0 0.0
    %1093 = vmatprep.subr.mxu0 0.0
    %1094 = vmatpush1.msra.mxu0 0.0
    %1095 = vmatprep.subr.mxu0 0.0
    %1096 = vmatpush1.msra.mxu0 0.0
    %1097 = vmatprep.subr.mxu0 0.0
    %1098 = vmatpush1.msra.mxu0 0.0
    %1099 = vmatprep.subr.mxu0 0.0
    %1100 = vmatpush1.msra.mxu0 0.0
    %1101 = vmatprep.subr.mxu0 0.0
    %1102 = vmatpush1.msra.mxu0 0.0
    %1103 = vmatprep.mubr.f32.mxu0 0.0
    %v1104 = vand.u32 %v1031, 4294901760
    %v1105 = vsub.f32 %v1031, %v1104
    %v1106 = vand.u32 %v1105, 4294901760
    %v1107 = vsub.f32 %v1105, %v1106
    %v1108 = vand.u32 %v1107, 4294901760
    %1109 = vmatmul.mubr.f32.gmra.mrb[0].mxu0 %v1108
    %v1110 = vpop.f32.mrb[0].mxu0
    %v1111 = vadd.f32 1e-05, %v1110
    %v1112 = vpop.f32.mrb[0].mxu0
    %1113 = vdwg.mxu0
    %1114 = vmatprep.subr.mxu0 0.0
    %v1115 = vand.u32 %v506, 4294901760
    %v1116 = vsub.f32 %v506, %v1115
    %v1117 = vand.u32 %v1116, 4294901760
    %v1118 = vsub.f32 %v1116, %v1117
    %v1119 = vand.u32 %v1118, 4294901760
    %1120 = vmatpush1.msra.mxu0 %v1119
    %1121 = vmatprep.subr.mxu0 0.0
    %v1122 = vand.u32 %v507, 4294901760
    %v1123 = vsub.f32 %v507, %v1122
    %v1124 = vand.u32 %v1123, 4294901760
    %v1125 = vsub.f32 %v1123, %v1124
    %v1126 = vand.u32 %v1125, 4294901760
    %1127 = vmatpush1.msra.mxu0 %v1126
    %1128 = vmatprep.subr.mxu0 0.0
    %v1129 = vand.u32 %v508, 4294901760
    %v1130 = vsub.f32 %v508, %v1129
    %v1131 = vand.u32 %v1130, 4294901760
    %v1132 = vsub.f32 %v1130, %v1131
    %v1133 = vand.u32 %v1132, 4294901760
    %1134 = vmatpush1.msra.mxu0 %v1133
    %1135 = vmatprep.subr.mxu0 0.0
    %v1136 = vand.u32 %v509, 4294901760
    %v1137 = vsub.f32 %v509, %v1136
    %v1138 = vand.u32 %v1137, 4294901760
    %v1139 = vsub.f32 %v1137, %v1138
    %v1140 = vand.u32 %v1139, 4294901760
    %1141 = vmatpush1.msra.mxu0 %v1140
    %1142 = vmatprep.subr.mxu0 0.0
    %v1143 = vand.u32 %v510, 4294901760
    %v1144 = vsub.f32 %v510, %v1143
    %v1145 = vand.u32 %v1144, 4294901760
    %v1146 = vsub.f32 %v1144, %v1145
    %v1147 = vand.u32 %v1146, 4294901760
    %1148 = vmatpush1.msra.mxu0 %v1147
    %1149 = vmatprep.subr.mxu0 0.0
    %v1150 = vand.u32 %v511, 4294901760
    %v1151 = vsub.f32 %v511, %v1150
    %v1152 = vand.u32 %v1151, 4294901760
    %v1153 = vsub.f32 %v1151, %v1152
    %v1154 = vand.u32 %v1153, 4294901760
    %1155 = vmatpush1.msra.mxu0 %v1154
    %1156 = vmatprep.subr.mxu0 0.0
    %1157 = vmatpush1.msra.mxu0 0.0
    %1158 = vmatprep.subr.mxu0 0.0
    %1159 = vmatpush1.msra.mxu0 0.0
    %1160 = vmatprep.subr.mxu0 0.0
    %1161 = vmatpush1.msra.mxu0 0.0
    %1162 = vmatprep.subr.mxu0 0.0
    %1163 = vmatpush1.msra.mxu0 0.0
    %1164 = vmatprep.subr.mxu0 0.0
    %1165 = vmatpush1.msra.mxu0 0.0
    %1166 = vmatprep.subr.mxu0 0.0
    %1167 = vmatpush1.msra.mxu0 0.0
    %1168 = vmatprep.subr.mxu0 0.0
    %1169 = vmatpush1.msra.mxu0 0.0
    %1170 = vmatprep.subr.mxu0 0.0
    %1171 = vmatpush1.msra.mxu0 0.0
    %1172 = vmatprep.subr.mxu0 0.0
    %1173 = vmatpush1.msra.mxu0 0.0
    %1174 = vmatprep.subr.mxu0 0.0
    %1175 = vmatpush1.msra.mxu0 0.0
    %1176 = vmatprep.subr.mxu0 0.0
    %1177 = vmatpush1.msra.mxu0 0.0
    %1178 = vmatprep.subr.mxu0 0.0
    %1179 = vmatpush1.msra.mxu0 0.0
    %1180 = vmatprep.subr.mxu0 0.0
    %1181 = vmatpush1.msra.mxu0 0.0
    %1182 = vmatprep.subr.mxu0 0.0
    %1183 = vmatpush1.msra.mxu0 0.0
    %1184 = vmatprep.subr.mxu0 0.0
    %1185 = vmatpush1.msra.mxu0 0.0
    %1186 = vmatprep.subr.mxu0 0.0
    %1187 = vmatpush1.msra.mxu0 0.0
    %1188 = vmatprep.subr.mxu0 0.0
    %1189 = vmatpush1.msra.mxu0 0.0
    %1190 = vmatprep.subr.mxu0 0.0
    %1191 = vmatpush1.msra.mxu0 0.0
    %1192 = vmatprep.subr.mxu0 0.0
    %1193 = vmatpush1.msra.mxu0 0.0
    %1194 = vmatprep.subr.mxu0 0.0
    %1195 = vmatpush1.msra.mxu0 0.0
    %1196 = vmatprep.subr.mxu0 0.0
    %1197 = vmatpush1.msra.mxu0 0.0
    %1198 = vmatprep.subr.mxu0 0.0
    %1199 = vmatpush1.msra.mxu0 0.0
    %1200 = vmatprep.subr.mxu0 0.0
    %1201 = vmatpush1.msra.mxu0 0.0
    %1202 = vmatprep.subr.mxu0 0.0
    %1203 = vmatpush1.msra.mxu0 0.0
    %1204 = vmatprep.subr.mxu0 0.0
    %1205 = vmatpush1.msra.mxu0 0.0
    %1206 = vmatprep.subr.mxu0 0.0
    %1207 = vmatpush1.msra.mxu0 0.0
    %1208 = vmatprep.mubr.f32.mxu0 0.0
    %v1209 = vand.u32 %v1031, 4294901760
    %1210 = vmatmul.mubr.f32.gmra.mrb[0].mxu0 %v1209
    %v1211 = vpop.f32.mrb[0].mxu0
    %v1212 = vadd.f32 %v1111, %v1211
    %v1213 = vpop.f32.mrb[0].mxu0
    %1214 = vdwg.mxu0
    %1215 = vmatprep.subr.mxu0 0.0
    %v1216 = vand.u32 %v506, 4294901760
    %v1217 = vsub.f32 %v506, %v1216
    %1218 = vmatpush1.msra.mxu0 %v1217
    %1219 = vmatprep.subr.mxu0 0.0
    %v1220 = vand.u32 %v507, 4294901760
    %v1221 = vsub.f32 %v507, %v1220
    %1222 = vmatpush1.msra.mxu0 %v1221
    %1223 = vmatprep.subr.mxu0 0.0
    %v1224 = vand.u32 %v508, 4294901760
    %v1225 = vsub.f32 %v508, %v1224
    %1226 = vmatpush1.msra.mxu0 %v1225
    %1227 = vmatprep.subr.mxu0 0.0
    %v1228 = vand.u32 %v509, 4294901760
    %v1229 = vsub.f32 %v509, %v1228
    %1230 = vmatpush1.msra.mxu0 %v1229
    %1231 = vmatprep.subr.mxu0 0.0
    %v1232 = vand.u32 %v510, 4294901760
    %v1233 = vsub.f32 %v510, %v1232
    %1234 = vmatpush1.msra.mxu0 %v1233
    %1235 = vmatprep.subr.mxu0 0.0
    %v1236 = vand.u32 %v511, 4294901760
    %v1237 = vsub.f32 %v511, %v1236
    %1238 = vmatpush1.msra.mxu0 %v1237
    %1239 = vmatprep.subr.mxu0 0.0
    %1240 = vmatpush1.msra.mxu0 0.0
    %1241 = vmatprep.subr.mxu0 0.0
    %1242 = vmatpush1.msra.mxu0 0.0
    %1243 = vmatprep.subr.mxu0 0.0
    %1244 = vmatpush1.msra.mxu0 0.0
    %1245 = vmatprep.subr.mxu0 0.0
    %1246 = vmatpush1.msra.mxu0 0.0
    %1247 = vmatprep.subr.mxu0 0.0
    %1248 = vmatpush1.msra.mxu0 0.0
    %1249 = vmatprep.subr.mxu0 0.0
    %1250 = vmatpush1.msra.mxu0 0.0
    %1251 = vmatprep.subr.mxu0 0.0
    %1252 = vmatpush1.msra.mxu0 0.0
    %1253 = vmatprep.subr.mxu0 0.0
    %1254 = vmatpush1.msra.mxu0 0.0
    %1255 = vmatprep.subr.mxu0 0.0
    %1256 = vmatpush1.msra.mxu0 0.0
    %1257 = vmatprep.subr.mxu0 0.0
    %1258 = vmatpush1.msra.mxu0 0.0
    %1259 = vmatprep.subr.mxu0 0.0
    %1260 = vmatpush1.msra.mxu0 0.0
    %1261 = vmatprep.subr.mxu0 0.0
    %1262 = vmatpush1.msra.mxu0 0.0
    %1263 = vmatprep.subr.mxu0 0.0
    %1264 = vmatpush1.msra.mxu0 0.0
    %1265 = vmatprep.subr.mxu0 0.0
    %1266 = vmatpush1.msra.mxu0 0.0
    %1267 = vmatprep.subr.mxu0 0.0
    %1268 = vmatpush1.msra.mxu0 0.0
    %1269 = vmatprep.subr.mxu0 0.0
    %1270 = vmatpush1.msra.mxu0 0.0
    %1271 = vmatprep.subr.mxu0 0.0
    %1272 = vmatpush1.msra.mxu0 0.0
    %1273 = vmatprep.subr.mxu0 0.0
    %1274 = vmatpush1.msra.mxu0 0.0
    %1275 = vmatprep.subr.mxu0 0.0
    %1276 = vmatpush1.msra.mxu0 0.0
    %1277 = vmatprep.subr.mxu0 0.0
    %1278 = vmatpush1.msra.mxu0 0.0
    %1279 = vmatprep.subr.mxu0 0.0
    %1280 = vmatpush1.msra.mxu0 0.0
    %1281 = vmatprep.subr.mxu0 0.0
    %1282 = vmatpush1.msra.mxu0 0.0
    %1283 = vmatprep.subr.mxu0 0.0
    %1284 = vmatpush1.msra.mxu0 0.0
    %1285 = vmatprep.subr.mxu0 0.0
    %1286 = vmatpush1.msra.mxu0 0.0
    %1287 = vmatprep.subr.mxu0 0.0
    %1288 = vmatpush1.msra.mxu0 0.0
    %1289 = vmatprep.subr.mxu0 0.0
    %1290 = vmatpush1.msra.mxu0 0.0
    %1291 = vmatprep.mubr.f32.mxu0 0.0
    %v1292 = vand.u32 %v1031, 4294901760
    %v1293 = vsub.f32 %v1031, %v1292
    %1294 = vmatmul.mubr.f32.gmra.mrb[0].mxu0 %v1293
    %v1295 = vpop.f32.mrb[0].mxu0
    %v1296 = vadd.f32 %v1212, %v1295
    %v1297 = vpop.f32.mrb[0].mxu0
    %1298 = vdwg.mxu0
    %1299 = vmatprep.subr.mxu0 0.0
    %v1300 = vand.u32 %v506, 4294901760
    %1301 = vmatpush1.msra.mxu0 %v1300
    %1302 = vmatprep.subr.mxu0 0.0
    %v1303 = vand.u32 %v507, 4294901760
    %1304 = vmatpush1.msra.mxu0 %v1303
    %1305 = vmatprep.subr.mxu0 0.0
    %v1306 = vand.u32 %v508, 4294901760
    %1307 = vmatpush1.msra.mxu0 %v1306
    %1308 = vmatprep.subr.mxu0 0.0
    %v1309 = vand.u32 %v509, 4294901760
    %1310 = vmatpush1.msra.mxu0 %v1309
    %1311 = vmatprep.subr.mxu0 0.0
    %v1312 = vand.u32 %v510, 4294901760
    %1313 = vmatpush1.msra.mxu0 %v1312
    %1314 = vmatprep.subr.mxu0 0.0
    %v1315 = vand.u32 %v511, 4294901760
    %1316 = vmatpush1.msra.mxu0 %v1315
    %1317 = vmatprep.subr.mxu0 0.0
    %1318 = vmatpush1.msra.mxu0 0.0
    %1319 = vmatprep.subr.mxu0 0.0
    %1320 = vmatpush1.msra.mxu0 0.0
    %1321 = vmatprep.subr.mxu0 0.0
    %1322 = vmatpush1.msra.mxu0 0.0
    %1323 = vmatprep.subr.mxu0 0.0
    %1324 = vmatpush1.msra.mxu0 0.0
    %1325 = vmatprep.subr.mxu0 0.0
    %1326 = vmatpush1.msra.mxu0 0.0
    %1327 = vmatprep.subr.mxu0 0.0
    %1328 = vmatpush1.msra.mxu0 0.0
    %1329 = vmatprep.subr.mxu0 0.0
    %1330 = vmatpush1.msra.mxu0 0.0
    %1331 = vmatprep.subr.mxu0 0.0
    %1332 = vmatpush1.msra.mxu0 0.0
    %1333 = vmatprep.subr.mxu0 0.0
    %1334 = vmatpush1.msra.mxu0 0.0
    %1335 = vmatprep.subr.mxu0 0.0
    %1336 = vmatpush1.msra.mxu0 0.0
    %1337 = vmatprep.subr.mxu0 0.0
    %1338 = vmatpush1.msra.mxu0 0.0
    %1339 = vmatprep.subr.mxu0 0.0
    %1340 = vmatpush1.msra.mxu0 0.0
    %1341 = vmatprep.subr.mxu0 0.0
    %1342 = vmatpush1.msra.mxu0 0.0
    %1343 = vmatprep.subr.mxu0 0.0
    %1344 = vmatpush1.msra.mxu0 0.0
    %1345 = vmatprep.subr.mxu0 0.0
    %1346 = vmatpush1.msra.mxu0 0.0
    %1347 = vmatprep.subr.mxu0 0.0
    %1348 = vmatpush1.msra.mxu0 0.0
    %1349 = vmatprep.subr.mxu0 0.0
    %1350 = vmatpush1.msra.mxu0 0.0
    %1351 = vmatprep.subr.mxu0 0.0
    %1352 = vmatpush1.msra.mxu0 0.0
    %1353 = vmatprep.subr.mxu0 0.0
    %1354 = vmatpush1.msra.mxu0 0.0
    %1355 = vmatprep.subr.mxu0 0.0
    %1356 = vmatpush1.msra.mxu0 0.0
    %1357 = vmatprep.subr.mxu0 0.0
    %1358 = vmatpush1.msra.mxu0 0.0
    %1359 = vmatprep.subr.mxu0 0.0
    %1360 = vmatpush1.msra.mxu0 0.0
    %1361 = vmatprep.subr.mxu0 0.0
    %1362 = vmatpush1.msra.mxu0 0.0
    %1363 = vmatprep.subr.mxu0 0.0
    %1364 = vmatpush1.msra.mxu0 0.0
    %1365 = vmatprep.subr.mxu0 0.0
    %1366 = vmatpush1.msra.mxu0 0.0
    %1367 = vmatprep.subr.mxu0 0.0
    %1368 = vmatpush1.msra.mxu0 0.0
    %1369 = vmatprep.mubr.f32.mxu0 0.0
    %v1370 = vand.u32 %v1031, 4294901760
    %v1371 = vsub.f32 %v1031, %v1370
    %v1372 = vand.u32 %v1371, 4294901760
    %1373 = vmatmul.mubr.f32.gmra.mrb[0].mxu0 %v1372
    %v1374 = vpop.f32.mrb[0].mxu0
    %v1375 = vadd.f32 %v1296, %v1374
    %v1376 = vpop.f32.mrb[0].mxu0
    %1377 = vdwg.mxu0
    %1378 = vmatprep.subr.mxu0 0.0
    %v1379 = vand.u32 %v506, 4294901760
    %v1380 = vsub.f32 %v506, %v1379
    %v1381 = vand.u32 %v1380, 4294901760
    %1382 = vmatpush1.msra.mxu0 %v1381
    %1383 = vmatprep.subr.mxu0 0.0
    %v1384 = vand.u32 %v507, 4294901760
    %v1385 = vsub.f32 %v507, %v1384
    %v1386 = vand.u32 %v1385, 4294901760
    %1387 = vmatpush1.msra.mxu0 %v1386
    %1388 = vmatprep.subr.mxu0 0.0
    %v1389 = vand.u32 %v508, 4294901760
    %v1390 = vsub.f32 %v508, %v1389
    %v1391 = vand.u32 %v1390, 4294901760
    %1392 = vmatpush1.msra.mxu0 %v1391
    %1393 = vmatprep.subr.mxu0 0.0
    %v1394 = vand.u32 %v509, 4294901760
    %v1395 = vsub.f32 %v509, %v1394
    %v1396 = vand.u32 %v1395, 4294901760
    %1397 = vmatpush1.msra.mxu0 %v1396
    %1398 = vmatprep.subr.mxu0 0.0
    %v1399 = vand.u32 %v510, 4294901760
    %v1400 = vsub.f32 %v510, %v1399
    %v1401 = vand.u32 %v1400, 4294901760
    %1402 = vmatpush1.msra.mxu0 %v1401
    %1403 = vmatprep.subr.mxu0 0.0
    %v1404 = vand.u32 %v511, 4294901760
    %v1405 = vsub.f32 %v511, %v1404
    %v1406 = vand.u32 %v1405, 4294901760
    %1407 = vmatpush1.msra.mxu0 %v1406
    %1408 = vmatprep.subr.mxu0 0.0
    %1409 = vmatpush1.msra.mxu0 0.0
    %1410 = vmatprep.subr.mxu0 0.0
    %1411 = vmatpush1.msra.mxu0 0.0
    %1412 = vmatprep.subr.mxu0 0.0
    %1413 = vmatpush1.msra.mxu0 0.0
    %1414 = vmatprep.subr.mxu0 0.0
    %1415 = vmatpush1.msra.mxu0 0.0
    %1416 = vmatprep.subr.mxu0 0.0
    %1417 = vmatpush1.msra.mxu0 0.0
    %1418 = vmatprep.subr.mxu0 0.0
    %1419 = vmatpush1.msra.mxu0 0.0
    %1420 = vmatprep.subr.mxu0 0.0
    %1421 = vmatpush1.msra.mxu0 0.0
    %1422 = vmatprep.subr.mxu0 0.0
    %1423 = vmatpush1.msra.mxu0 0.0
    %1424 = vmatprep.subr.mxu0 0.0
    %1425 = vmatpush1.msra.mxu0 0.0
    %1426 = vmatprep.subr.mxu0 0.0
    %1427 = vmatpush1.msra.mxu0 0.0
    %1428 = vmatprep.subr.mxu0 0.0
    %1429 = vmatpush1.msra.mxu0 0.0
    %1430 = vmatprep.subr.mxu0 0.0
    %1431 = vmatpush1.msra.mxu0 0.0
    %1432 = vmatprep.subr.mxu0 0.0
    %1433 = vmatpush1.msra.mxu0 0.0
    %1434 = vmatprep.subr.mxu0 0.0
    %1435 = vmatpush1.msra.mxu0 0.0
    %1436 = vmatprep.subr.mxu0 0.0
    %1437 = vmatpush1.msra.mxu0 0.0
    %1438 = vmatprep.subr.mxu0 0.0
    %1439 = vmatpush1.msra.mxu0 0.0
    %1440 = vmatprep.subr.mxu0 0.0
    %1441 = vmatpush1.msra.mxu0 0.0
    %1442 = vmatprep.subr.mxu0 0.0
    %1443 = vmatpush1.msra.mxu0 0.0
    %1444 = vmatprep.subr.mxu0 0.0
    %1445 = vmatpush1.msra.mxu0 0.0
    %1446 = vmatprep.subr.mxu0 0.0
    %1447 = vmatpush1.msra.mxu0 0.0
    %1448 = vmatprep.subr.mxu0 0.0
    %1449 = vmatpush1.msra.mxu0 0.0
    %1450 = vmatprep.subr.mxu0 0.0
    %1451 = vmatpush1.msra.mxu0 0.0
    %1452 = vmatprep.subr.mxu0 0.0
    %1453 = vmatpush1.msra.mxu0 0.0
    %1454 = vmatprep.subr.mxu0 0.0
    %1455 = vmatpush1.msra.mxu0 0.0
    %1456 = vmatprep.subr.mxu0 0.0
    %1457 = vmatpush1.msra.mxu0 0.0
    %1458 = vmatprep.subr.mxu0 0.0
    %1459 = vmatpush1.msra.mxu0 0.0
    %1460 = vmatprep.mubr.f32.mxu0 0.0
    %v1461 = vand.u32 %v1031, 4294901760
    %1462 = vmatmul.mubr.f32.gmra.mrb[0].mxu0 %v1461
    %v1463 = vpop.f32.mrb[0].mxu0
    %v1464 = vadd.f32 %v1375, %v1463
    %v1465 = vpop.f32.mrb[0].mxu0
    %1466 = vdwg.mxu0
    %1467 = vmatprep.subr.mxu0 0.0
    %v1468 = vand.u32 %v506, 4294901760
    %1469 = vmatpush1.msra.mxu0 %v1468
    %1470 = vmatprep.subr.mxu0 0.0
    %v1471 = vand.u32 %v507, 4294901760
    %1472 = vmatpush1.msra.mxu0 %v1471
    %1473 = vmatprep.subr.mxu0 0.0
    %v1474 = vand.u32 %v508, 4294901760
    %1475 = vmatpush1.msra.mxu0 %v1474
    %1476 = vmatprep.subr.mxu0 0.0
    %v1477 = vand.u32 %v509, 4294901760
    %1478 = vmatpush1.msra.mxu0 %v1477
    %1479 = vmatprep.subr.mxu0 0.0
    %v1480 = vand.u32 %v510, 4294901760
    %1481 = vmatpush1.msra.mxu0 %v1480
    %1482 = vmatprep.subr.mxu0 0.0
    %v1483 = vand.u32 %v511, 4294901760
    %1484 = vmatpush1.msra.mxu0 %v1483
    %1485 = vmatprep.subr.mxu0 0.0
    %1486 = vmatpush1.msra.mxu0 0.0
    %1487 = vmatprep.subr.mxu0 0.0
    %1488 = vmatpush1.msra.mxu0 0.0
    %1489 = vmatprep.subr.mxu0 0.0
    %1490 = vmatpush1.msra.mxu0 0.0
    %1491 = vmatprep.subr.mxu0 0.0
    %1492 = vmatpush1.msra.mxu0 0.0
    %1493 = vmatprep.subr.mxu0 0.0
    %1494 = vmatpush1.msra.mxu0 0.0
    %1495 = vmatprep.subr.mxu0 0.0
    %1496 = vmatpush1.msra.mxu0 0.0
    %1497 = vmatprep.subr.mxu0 0.0
    %1498 = vmatpush1.msra.mxu0 0.0
    %1499 = vmatprep.subr.mxu0 0.0
    %1500 = vmatpush1.msra.mxu0 0.0
    %1501 = vmatprep.subr.mxu0 0.0
    %1502 = vmatpush1.msra.mxu0 0.0
    %1503 = vmatprep.subr.mxu0 0.0
    %1504 = vmatpush1.msra.mxu0 0.0
    %1505 = vmatprep.subr.mxu0 0.0
    %1506 = vmatpush1.msra.mxu0 0.0
    %1507 = vmatprep.subr.mxu0 0.0
    %1508 = vmatpush1.msra.mxu0 0.0
    %1509 = vmatprep.subr.mxu0 0.0
    %1510 = vmatpush1.msra.mxu0 0.0
    %1511 = vmatprep.subr.mxu0 0.0
    %1512 = vmatpush1.msra.mxu0 0.0
    %1513 = vmatprep.subr.mxu0 0.0
    %1514 = vmatpush1.msra.mxu0 0.0
    %1515 = vmatprep.subr.mxu0 0.0
    %1516 = vmatpush1.msra.mxu0 0.0
    %1517 = vmatprep.subr.mxu0 0.0
    %1518 = vmatpush1.msra.mxu0 0.0
    %1519 = vmatprep.subr.mxu0 0.0
    %1520 = vmatpush1.msra.mxu0 0.0
    %1521 = vmatprep.subr.mxu0 0.0
    %1522 = vmatpush1.msra.mxu0 0.0
    %1523 = vmatprep.subr.mxu0 0.0
    %1524 = vmatpush1.msra.mxu0 0.0
    %1525 = vmatprep.subr.mxu0 0.0
    %1526 = vmatpush1.msra.mxu0 0.0
    %1527 = vmatprep.subr.mxu0 0.0
    %1528 = vmatpush1.msra.mxu0 0.0
    %1529 = vmatprep.subr.mxu0 0.0
    %1530 = vmatpush1.msra.mxu0 0.0
    %1531 = vmatprep.subr.mxu0 0.0
    %1532 = vmatpush1.msra.mxu0 0.0
    %1533 = vmatprep.subr.mxu0 0.0
    %1534 = vmatpush1.msra.mxu0 0.0
    %1535 = vmatprep.subr.mxu0 0.0
    %1536 = vmatpush1.msra.mxu0 0.0
    %1537 = vmatprep.mubr.f32.mxu0 0.0
    %v1538 = vand.u32 %v1031, 4294901760
    %1539 = vmatmul.mubr.f32.gmra.mrb[0].mxu0 %v1538
    %v1540 = vpop.f32.mrb[0].mxu0
    %v1541 = vadd.f32 %v1464, %v1540
    %v1542 = vpop.f32.mrb[0].mxu0
    %1543 = vdwg.mxu0
    %v1544 = vrsqrt.pop %v1541
    %v1545 = vmul.f32 %v1027, %v1544
    %v1546 = vlaneseq
    %v1547 = vshrl.u32 %v1546, 7
    %v1548 = vsub.s32 0, %v1547
    %v1549 = vrot.slane %v1029, %v1548
    %v1550 = vmul.f32 %v1545, %v1549
    %v1551 = vlaneseq
    %v1552 = vshrl.u32 %v1551, 7
    %v1553 = vsub.s32 1, %v1552
    %v1554 = vrot.slane %v1029, %v1553
    %v1555 = vadd.f32 %v1550, %v1554
    %v1556 = vld [vmem:[%s1 + $0x70] sm:$0xff]
    %v1557 = vld [vmem:[%s1 + $0x78] sm:$0xff]
    %v1558 = vld [vmem:[%s1 + $0x80] sm:$0xff]
    %v1559 = vld [vmem:[%s1 + $0x88] sm:$0xff]
    %v1560 = vld [vmem:[%s1 + $0x90] sm:$0xff]
    %v1561 = vld [vmem:[%s1 + $0x98] sm:$0xff]
    %v1563 = vsel %vm512, %v1555, 0
    %1565 = vmatprep.subr.mxu0 0.0
    %v1566 = vand.u32 %v1556, 4294901760
    %1567 = vmatpush1.msra.mxu0 %v1566
    %1568 = vmatprep.subr.mxu0 0.0
    %v1569 = vand.u32 %v1557, 4294901760
    %1570 = vmatpush1.msra.mxu0 %v1569
    %1571 = vmatprep.subr.mxu0 0.0
    %v1572 = vand.u32 %v1558, 4294901760
    %1573 = vmatpush1.msra.mxu0 %v1572
    %1574 = vmatprep.subr.mxu0 0.0
    %v1575 = vand.u32 %v1559, 4294901760
    %1576 = vmatpush1.msra.mxu0 %v1575
    %1577 = vmatprep.subr.mxu0 0.0
    %v1578 = vand.u32 %v1560, 4294901760
    %1579 = vmatpush1.msra.mxu0 %v1578
    %1580 = vmatprep.subr.mxu0 0.0
    %v1581 = vand.u32 %v1561, 4294901760
    %1582 = vmatpush1.msra.mxu0 %v1581
    %1583 = vmatprep.subr.mxu0 0.0
    %1584 = vmatpush1.msra.mxu0 0.0
    %1585 = vmatprep.subr.mxu0 0.0
    %1586 = vmatpush1.msra.mxu0 0.0
    %1587 = vmatprep.subr.mxu0 0.0
    %1588 = vmatpush1.msra.mxu0 0.0
    %1589 = vmatprep.subr.mxu0 0.0
    %1590 = vmatpush1.msra.mxu0 0.0
    %1591 = vmatprep.subr.mxu0 0.0
    %1592 = vmatpush1.msra.mxu0 0.0
    %1593 = vmatprep.subr.mxu0 0.0
    %1594 = vmatpush1.msra.mxu0 0.0
    %1595 = vmatprep.subr.mxu0 0.0
    %1596 = vmatpush1.msra.mxu0 0.0
    %1597 = vmatprep.subr.mxu0 0.0
    %1598 = vmatpush1.msra.mxu0 0.0
    %1599 = vmatprep.subr.mxu0 0.0
    %1600 = vmatpush1.msra.mxu0 0.0
    %1601 = vmatprep.subr.mxu0 0.0
    %1602 = vmatpush1.msra.mxu0 0.0
    %1603 = vmatprep.subr.mxu0 0.0
    %1604 = vmatpush1.msra.mxu0 0.0
    %1605 = vmatprep.subr.mxu0 0.0
    %1606 = vmatpush1.msra.mxu0 0.0
    %1607 = vmatprep.subr.mxu0 0.0
    %1608 = vmatpush1.msra.mxu0 0.0
    %1609 = vmatprep.subr.mxu0 0.0
    %1610 = vmatpush1.msra.mxu0 0.0
    %1611 = vmatprep.subr.mxu0 0.0
    %1612 = vmatpush1.msra.mxu0 0.0
    %1613 = vmatprep.subr.mxu0 0.0
    %1614 = vmatpush1.msra.mxu0 0.0
    %1615 = vmatprep.subr.mxu0 0.0
    %1616 = vmatpush1.msra.mxu0 0.0
    %1617 = vmatprep.subr.mxu0 0.0
    %1618 = vmatpush1.msra.mxu0 0.0
    %1619 = vmatprep.subr.mxu0 0.0
    %1620 = vmatpush1.msra.mxu0 0.0
    %1621 = vmatprep.subr.mxu0 0.0
    %1622 = vmatpush1.msra.mxu0 0.0
    %1623 = vmatprep.subr.mxu0 0.0
    %1624 = vmatpush1.msra.mxu0 0.0
    %1625 = vmatprep.subr.mxu0 0.0
    %1626 = vmatpush1.msra.mxu0 0.0
    %1627 = vmatprep.subr.mxu0 0.0
    %1628 = vmatpush1.msra.mxu0 0.0
    %1629 = vmatprep.subr.mxu0 0.0
    %1630 = vmatpush1.msra.mxu0 0.0
    %1631 = vmatprep.subr.mxu0 0.0
    %1632 = vmatpush1.msra.mxu0 0.0
    %1633 = vmatprep.subr.mxu0 0.0
    %1634 = vmatpush1.msra.mxu0 0.0
    %1635 = vmatprep.mubr.f32.mxu0 0.0
    %v1636 = vand.u32 %v1563, 4294901760
    %v1637 = vsub.f32 %v1563, %v1636
    %v1638 = vand.u32 %v1637, 4294901760
    %v1639 = vsub.f32 %v1637, %v1638
    %v1640 = vand.u32 %v1639, 4294901760
    %1641 = vmatmul.mubr.f32.gmra.mrb[0].mxu0 %v1640
    %v1642 = vpop.f32.mrb[0].mxu0
    %v1643 = vadd.f32 0.0, %v1642
    %v1644 = vpop.f32.mrb[0].mxu0
    %1645 = vdwg.mxu0
    %1646 = vmatprep.subr.mxu0 0.0
    %v1647 = vand.u32 %v1556, 4294901760
    %v1648 = vsub.f32 %v1556, %v1647
    %v1649 = vand.u32 %v1648, 4294901760
    %v1650 = vsub.f32 %v1648, %v1649
    %v1651 = vand.u32 %v1650, 4294901760
    %1652 = vmatpush1.msra.mxu0 %v1651
    %1653 = vmatprep.subr.mxu0 0.0
    %v1654 = vand.u32 %v1557, 4294901760
    %v1655 = vsub.f32 %v1557, %v1654
    %v1656 = vand.u32 %v1655, 4294901760
    %v1657 = vsub.f32 %v1655, %v1656
    %v1658 = vand.u32 %v1657, 4294901760
    %1659 = vmatpush1.msra.mxu0 %v1658
    %1660 = vmatprep.subr.mxu0 0.0
    %v1661 = vand.u32 %v1558, 4294901760
    %v1662 = vsub.f32 %v1558, %v1661
    %v1663 = vand.u32 %v1662, 4294901760
    %v1664 = vsub.f32 %v1662, %v1663
    %v1665 = vand.u32 %v1664, 4294901760
    %1666 = vmatpush1.msra.mxu0 %v1665
    %1667 = vmatprep.subr.mxu0 0.0
    %v1668 = vand.u32 %v1559, 4294901760
    %v1669 = vsub.f32 %v1559, %v1668
    %v1670 = vand.u32 %v1669, 4294901760
    %v1671 = vsub.f32 %v1669, %v1670
    %v1672 = vand.u32 %v1671, 4294901760
    %1673 = vmatpush1.msra.mxu0 %v1672
    %1674 = vmatprep.subr.mxu0 0.0
    %v1675 = vand.u32 %v1560, 4294901760
    %v1676 = vsub.f32 %v1560, %v1675
    %v1677 = vand.u32 %v1676, 4294901760
    %v1678 = vsub.f32 %v1676, %v1677
    %v1679 = vand.u32 %v1678, 4294901760
    %1680 = vmatpush1.msra.mxu0 %v1679
    %1681 = vmatprep.subr.mxu0 0.0
    %v1682 = vand.u32 %v1561, 4294901760
    %v1683 = vsub.f32 %v1561, %v1682
    %v1684 = vand.u32 %v1683, 4294901760
    %v1685 = vsub.f32 %v1683, %v1684
    %v1686 = vand.u32 %v1685, 4294901760
    %1687 = vmatpush1.msra.mxu0 %v1686
    %1688 = vmatprep.subr.mxu0 0.0
    %1689 = vmatpush1.msra.mxu0 0.0
    %1690 = vmatprep.subr.mxu0 0.0
    %1691 = vmatpush1.msra.mxu0 0.0
    %1692 = vmatprep.subr.mxu0 0.0
    %1693 = vmatpush1.msra.mxu0 0.0
    %1694 = vmatprep.subr.mxu0 0.0
    %1695 = vmatpush1.msra.mxu0 0.0
    %1696 = vmatprep.subr.mxu0 0.0
    %1697 = vmatpush1.msra.mxu0 0.0
    %1698 = vmatprep.subr.mxu0 0.0
    %1699 = vmatpush1.msra.mxu0 0.0
    %1700 = vmatprep.subr.mxu0 0.0
    %1701 = vmatpush1.msra.mxu0 0.0
    %1702 = vmatprep.subr.mxu0 0.0
    %1703 = vmatpush1.msra.mxu0 0.0
    %1704 = vmatprep.subr.mxu0 0.0
    %1705 = vmatpush1.msra.mxu0 0.0
    %1706 = vmatprep.subr.mxu0 0.0
    %1707 = vmatpush1.msra.mxu0 0.0
    %1708 = vmatprep.subr.mxu0 0.0
    %1709 = vmatpush1.msra.mxu0 0.0
    %1710 = vmatprep.subr.mxu0 0.0
    %1711 = vmatpush1.msra.mxu0 0.0
    %1712 = vmatprep.subr.mxu0 0.0
    %1713 = vmatpush1.msra.mxu0 0.0
    %1714 = vmatprep.subr.mxu0 0.0
    %1715 = vmatpush1.msra.mxu0 0.0
    %1716 = vmatprep.subr.mxu0 0.0
    %1717 = vmatpush1.msra.mxu0 0.0
    %1718 = vmatprep.subr.mxu0 0.0
    %1719 = vmatpush1.msra.mxu0 0.0
    %1720 = vmatprep.subr.mxu0 0.0
    %1721 = vmatpush1.msra.mxu0 0.0
    %1722 = vmatprep.subr.mxu0 0.0
    %1723 = vmatpush1.msra.mxu0 0.0
    %1724 = vmatprep.subr.mxu0 0.0
    %1725 = vmatpush1.msra.mxu0 0.0
    %1726 = vmatprep.subr.mxu0 0.0
    %1727 = vmatpush1.msra.mxu0 0.0
    %1728 = vmatprep.subr.mxu0 0.0
    %1729 = vmatpush1.msra.mxu0 0.0
    %1730 = vmatprep.subr.mxu0 0.0
    %1731 = vmatpush1.msra.mxu0 0.0
    %1732 = vmatprep.subr.mxu0 0.0
    %1733 = vmatpush1.msra.mxu0 0.0
    %1734 = vmatprep.subr.mxu0 0.0
    %1735 = vmatpush1.msra.mxu0 0.0
    %1736 = vmatprep.subr.mxu0 0.0
    %1737 = vmatpush1.msra.mxu0 0.0
    %1738 = vmatprep.subr.mxu0 0.0
    %1739 = vmatpush1.msra.mxu0 0.0
    %1740 = vmatprep.mubr.f32.mxu0 0.0
    %v1741 = vand.u32 %v1563, 4294901760
    %1742 = vmatmul.mubr.f32.gmra.mrb[0].mxu0 %v1741
    %v1743 = vpop.f32.mrb[0].mxu0
    %v1744 = vadd.f32 %v1643, %v1743
    %v1745 = vpop.f32.mrb[0].mxu0
    %1746 = vdwg.mxu0
    %1747 = vmatprep.subr.mxu0 0.0
    %v1748 = vand.u32 %v1556, 4294901760
    %v1749 = vsub.f32 %v1556, %v1748
    %1750 = vmatpush1.msra.mxu0 %v1749
    %1751 = vmatprep.subr.mxu0 0.0
    %v1752 = vand.u32 %v1557, 4294901760
    %v1753 = vsub.f32 %v1557, %v1752
    %1754 = vmatpush1.msra.mxu0 %v1753
    %1755 = vmatprep.subr.mxu0 0.0
    %v1756 = vand.u32 %v1558, 4294901760
    %v1757 = vsub.f32 %v1558, %v1756
    %1758 = vmatpush1.msra.mxu0 %v1757
    %1759 = vmatprep.subr.mxu0 0.0
    %v1760 = vand.u32 %v1559, 4294901760
    %v1761 = vsub.f32 %v1559, %v1760
    %1762 = vmatpush1.msra.mxu0 %v1761
    %1763 = vmatprep.subr.mxu0 0.0
    %v1764 = vand.u32 %v1560, 4294901760
    %v1765 = vsub.f32 %v1560, %v1764
    %1766 = vmatpush1.msra.mxu0 %v1765
    %1767 = vmatprep.subr.mxu0 0.0
    %v1768 = vand.u32 %v1561, 4294901760
    %v1769 = vsub.f32 %v1561, %v1768
    %1770 = vmatpush1.msra.mxu0 %v1769
    %1771 = vmatprep.subr.mxu0 0.0
    %1772 = vmatpush1.msra.mxu0 0.0
    %1773 = vmatprep.subr.mxu0 0.0
    %1774 = vmatpush1.msra.mxu0 0.0
    %1775 = vmatprep.subr.mxu0 0.0
    %1776 = vmatpush1.msra.mxu0 0.0
    %1777 = vmatprep.subr.mxu0 0.0
    %1778 = vmatpush1.msra.mxu0 0.0
    %1779 = vmatprep.subr.mxu0 0.0
    %1780 = vmatpush1.msra.mxu0 0.0
    %1781 = vmatprep.subr.mxu0 0.0
    %1782 = vmatpush1.msra.mxu0 0.0
    %1783 = vmatprep.subr.mxu0 0.0
    %1784 = vmatpush1.msra.mxu0 0.0
    %1785 = vmatprep.subr.mxu0 0.0
    %1786 = vmatpush1.msra.mxu0 0.0
    %1787 = vmatprep.subr.mxu0 0.0
    %1788 = vmatpush1.msra.mxu0 0.0
    %1789 = vmatprep.subr.mxu0 0.0
    %1790 = vmatpush1.msra.mxu0 0.0
    %1791 = vmatprep.subr.mxu0 0.0
    %1792 = vmatpush1.msra.mxu0 0.0
    %1793 = vmatprep.subr.mxu0 0.0
    %1794 = vmatpush1.msra.mxu0 0.0
    %1795 = vmatprep.subr.mxu0 0.0
    %1796 = vmatpush1.msra.mxu0 0.0
    %1797 = vmatprep.subr.mxu0 0.0
    %1798 = vmatpush1.msra.mxu0 0.0
    %1799 = vmatprep.subr.mxu0 0.0
    %1800 = vmatpush1.msra.mxu0 0.0
    %1801 = vmatprep.subr.mxu0 0.0
    %1802 = vmatpush1.msra.mxu0 0.0
    %1803 = vmatprep.subr.mxu0 0.0
    %1804 = vmatpush1.msra.mxu0 0.0
    %1805 = vmatprep.subr.mxu0 0.0
    %1806 = vmatpush1.msra.mxu0 0.0
    %1807 = vmatprep.subr.mxu0 0.0
    %1808 = vmatpush1.msra.mxu0 0.0
    %1809 = vmatprep.subr.mxu0 0.0
    %1810 = vmatpush1.msra.mxu0 0.0
    %1811 = vmatprep.subr.mxu0 0.0
    %1812 = vmatpush1.msra.mxu0 0.0
    %1813 = vmatprep.subr.mxu0 0.0
    %1814 = vmatpush1.msra.mxu0 0.0
    %1815 = vmatprep.subr.mxu0 0.0
    %1816 = vmatpush1.msra.mxu0 0.0
    %1817 = vmatprep.subr.mxu0 0.0
    %1818 = vmatpush1.msra.mxu0 0.0
    %1819 = vmatprep.subr.mxu0 0.0
    %1820 = vmatpush1.msra.mxu0 0.0
    %1821 = vmatprep.subr.mxu0 0.0
    %1822 = vmatpush1.msra.mxu0 0.0
    %1823 = vmatprep.mubr.f32.mxu0 0.0
    %v1824 = vand.u32 %v1563, 4294901760
    %v1825 = vsub.f32 %v1563, %v1824
    %1826 = vmatmul.mubr.f32.gmra.mrb[0].mxu0 %v1825
    %v1827 = vpop.f32.mrb[0].mxu0
    %v1828 = vadd.f32 %v1744, %v1827
    %v1829 = vpop.f32.mrb[0].mxu0
    %1830 = vdwg.mxu0
    %1831 = vmatprep.subr.mxu0 0.0
    %v1832 = vand.u32 %v1556, 4294901760
    %1833 = vmatpush1.msra.mxu0 %v1832
    %1834 = vmatprep.subr.mxu0 0.0
    %v1835 = vand.u32 %v1557, 4294901760
    %1836 = vmatpush1.msra.mxu0 %v1835
    %1837 = vmatprep.subr.mxu0 0.0
    %v1838 = vand.u32 %v1558, 4294901760
    %1839 = vmatpush1.msra.mxu0 %v1838
    %1840 = vmatprep.subr.mxu0 0.0
    %v1841 = vand.u32 %v1559, 4294901760
    %1842 = vmatpush1.msra.mxu0 %v1841
    %1843 = vmatprep.subr.mxu0 0.0
    %v1844 = vand.u32 %v1560, 4294901760
    %1845 = vmatpush1.msra.mxu0 %v1844
    %1846 = vmatprep.subr.mxu0 0.0
    %v1847 = vand.u32 %v1561, 4294901760
    %1848 = vmatpush1.msra.mxu0 %v1847
    %1849 = vmatprep.subr.mxu0 0.0
    %1850 = vmatpush1.msra.mxu0 0.0
    %1851 = vmatprep.subr.mxu0 0.0
    %1852 = vmatpush1.msra.mxu0 0.0
    %1853 = vmatprep.subr.mxu0 0.0
    %1854 = vmatpush1.msra.mxu0 0.0
    %1855 = vmatprep.subr.mxu0 0.0
    %1856 = vmatpush1.msra.mxu0 0.0
    %1857 = vmatprep.subr.mxu0 0.0
    %1858 = vmatpush1.msra.mxu0 0.0
    %1859 = vmatprep.subr.mxu0 0.0
    %1860 = vmatpush1.msra.mxu0 0.0
    %1861 = vmatprep.subr.mxu0 0.0
    %1862 = vmatpush1.msra.mxu0 0.0
    %1863 = vmatprep.subr.mxu0 0.0
    %1864 = vmatpush1.msra.mxu0 0.0
    %1865 = vmatprep.subr.mxu0 0.0
    %1866 = vmatpush1.msra.mxu0 0.0
    %1867 = vmatprep.subr.mxu0 0.0
    %1868 = vmatpush1.msra.mxu0 0.0
    %1869 = vmatprep.subr.mxu0 0.0
    %1870 = vmatpush1.msra.mxu0 0.0
    %1871 = vmatprep.subr.mxu0 0.0
    %1872 = vmatpush1.msra.mxu0 0.0
    %1873 = vmatprep.subr.mxu0 0.0
    %1874 = vmatpush1.msra.mxu0 0.0
    %1875 = vmatprep.subr.mxu0 0.0
    %1876 = vmatpush1.msra.mxu0 0.0
    %1877 = vmatprep.subr.mxu0 0.0
    %1878 = vmatpush1.msra.mxu0 0.0
    %1879 = vmatprep.subr.mxu0 0.0
    %1880 = vmatpush1.msra.mxu0 0.0
    %1881 = vmatprep.subr.mxu0 0.0
    %1882 = vmatpush1.msra.mxu0 0.0
    %1883 = vmatprep.subr.mxu0 0.0
    %1884 = vmatpush1.msra.mxu0 0.0
    %1885 = vmatprep.subr.mxu0 0.0
    %1886 = vmatpush1.msra.mxu0 0.0
    %1887 = vmatprep.subr.mxu0 0.0
    %1888 = vmatpush1.msra.mxu0 0.0
    %1889 = vmatprep.subr.mxu0 0.0
    %1890 = vmatpush1.msra.mxu0 0.0
    %1891 = vmatprep.subr.mxu0 0.0
    %1892 = vmatpush1.msra.mxu0 0.0
    %1893 = vmatprep.subr.mxu0 0.0
    %1894 = vmatpush1.msra.mxu0 0.0
    %1895 = vmatprep.subr.mxu0 0.0
    %1896 = vmatpush1.msra.mxu0 0.0
    %1897 = vmatprep.subr.mxu0 0.0
    %1898 = vmatpush1.msra.mxu0 0.0
    %1899 = vmatprep.subr.mxu0 0.0
    %1900 = vmatpush1.msra.mxu0 0.0
    %1901 = vmatprep.mubr.f32.mxu0 0.0
    %v1902 = vand.u32 %v1563, 4294901760
    %v1903 = vsub.f32 %v1563, %v1902
    %v1904 = vand.u32 %v1903, 4294901760
    %1905 = vmatmul.mubr.f32.gmra.mrb[0].mxu0 %v1904
    %v1906 = vpop.f32.mrb[0].mxu0
    %v1907 = vadd.f32 %v1828, %v1906
    %v1908 = vpop.f32.mrb[0].mxu0
    %1909 = vdwg.mxu0
    %1910 = vmatprep.subr.mxu0 0.0
    %v1911 = vand.u32 %v1556, 4294901760
    %v1912 = vsub.f32 %v1556, %v1911
    %v1913 = vand.u32 %v1912, 4294901760
    %1914 = vmatpush1.msra.mxu0 %v1913
    %1915 = vmatprep.subr.mxu0 0.0
    %v1916 = vand.u32 %v1557, 4294901760
    %v1917 = vsub.f32 %v1557, %v1916
    %v1918 = vand.u32 %v1917, 4294901760
    %1919 = vmatpush1.msra.mxu0 %v1918
    %1920 = vmatprep.subr.mxu0 0.0
    %v1921 = vand.u32 %v1558, 4294901760
    %v1922 = vsub.f32 %v1558, %v1921
    %v1923 = vand.u32 %v1922, 4294901760
    %1924 = vmatpush1.msra.mxu0 %v1923
    %1925 = vmatprep.subr.mxu0 0.0
    %v1926 = vand.u32 %v1559, 4294901760
    %v1927 = vsub.f32 %v1559, %v1926
    %v1928 = vand.u32 %v1927, 4294901760
    %1929 = vmatpush1.msra.mxu0 %v1928
    %1930 = vmatprep.subr.mxu0 0.0
    %v1931 = vand.u32 %v1560, 4294901760
    %v1932 = vsub.f32 %v1560, %v1931
    %v1933 = vand.u32 %v1932, 4294901760
    %1934 = vmatpush1.msra.mxu0 %v1933
    %1935 = vmatprep.subr.mxu0 0.0
    %v1936 = vand.u32 %v1561, 4294901760
    %v1937 = vsub.f32 %v1561, %v1936
    %v1938 = vand.u32 %v1937, 4294901760
    %1939 = vmatpush1.msra.mxu0 %v1938
    %1940 = vmatprep.subr.mxu0 0.0
    %1941 = vmatpush1.msra.mxu0 0.0
    %1942 = vmatprep.subr.mxu0 0.0
    %1943 = vmatpush1.msra.mxu0 0.0
    %1944 = vmatprep.subr.mxu0 0.0
    %1945 = vmatpush1.msra.mxu0 0.0
    %1946 = vmatprep.subr.mxu0 0.0
    %1947 = vmatpush1.msra.mxu0 0.0
    %1948 = vmatprep.subr.mxu0 0.0
    %1949 = vmatpush1.msra.mxu0 0.0
    %1950 = vmatprep.subr.mxu0 0.0
    %1951 = vmatpush1.msra.mxu0 0.0
    %1952 = vmatprep.subr.mxu0 0.0
    %1953 = vmatpush1.msra.mxu0 0.0
    %1954 = vmatprep.subr.mxu0 0.0
    %1955 = vmatpush1.msra.mxu0 0.0
    %1956 = vmatprep.subr.mxu0 0.0
    %1957 = vmatpush1.msra.mxu0 0.0
    %1958 = vmatprep.subr.mxu0 0.0
    %1959 = vmatpush1.msra.mxu0 0.0
    %1960 = vmatprep.subr.mxu0 0.0
    %1961 = vmatpush1.msra.mxu0 0.0
    %1962 = vmatprep.subr.mxu0 0.0
    %1963 = vmatpush1.msra.mxu0 0.0
    %1964 = vmatprep.subr.mxu0 0.0
    %1965 = vmatpush1.msra.mxu0 0.0
    %1966 = vmatprep.subr.mxu0 0.0
    %1967 = vmatpush1.msra.mxu0 0.0
    %1968 = vmatprep.subr.mxu0 0.0
    %1969 = vmatpush1.msra.mxu0 0.0
    %1970 = vmatprep.subr.mxu0 0.0
    %1971 = vmatpush1.msra.mxu0 0.0
    %1972 = vmatprep.subr.mxu0 0.0
    %1973 = vmatpush1.msra.mxu0 0.0
    %1974 = vmatprep.subr.mxu0 0.0
    %1975 = vmatpush1.msra.mxu0 0.0
    %1976 = vmatprep.subr.mxu0 0.0
    %1977 = vmatpush1.msra.mxu0 0.0
    %1978 = vmatprep.subr.mxu0 0.0
    %1979 = vmatpush1.msra.mxu0 0.0
    %1980 = vmatprep.subr.mxu0 0.0
    %1981 = vmatpush1.msra.mxu0 0.0
    %1982 = vmatprep.subr.mxu0 0.0
    %1983 = vmatpush1.msra.mxu0 0.0
    %1984 = vmatprep.subr.mxu0 0.0
    %1985 = vmatpush1.msra.mxu0 0.0
    %1986 = vmatprep.subr.mxu0 0.0
    %1987 = vmatpush1.msra.mxu0 0.0
    %1988 = vmatprep.subr.mxu0 0.0
    %1989 = vmatpush1.msra.mxu0 0.0
    %1990 = vmatprep.subr.mxu0 0.0
    %1991 = vmatpush1.msra.mxu0 0.0
    %1992 = vmatprep.mubr.f32.mxu0 0.0
    %v1993 = vand.u32 %v1563, 4294901760
    %1994 = vmatmul.mubr.f32.gmra.mrb[0].mxu0 %v1993
    %v1995 = vpop.f32.mrb[0].mxu0
    %v1996 = vadd.f32 %v1907, %v1995
    %v1997 = vpop.f32.mrb[0].mxu0
    %1998 = vdwg.mxu0
    %1999 = vmatprep.subr.mxu0 0.0
    %v2000 = vand.u32 %v1556, 4294901760
    %2001 = vmatpush1.msra.mxu0 %v2000
    %2002 = vmatprep.subr.mxu0 0.0
    %v2003 = vand.u32 %v1557, 4294901760
    %2004 = vmatpush1.msra.mxu0 %v2003
    %2005 = vmatprep.subr.mxu0 0.0
    %v2006 = vand.u32 %v1558, 4294901760
    %2007 = vmatpush1.msra.mxu0 %v2006
    %2008 = vmatprep.subr.mxu0 0.0
    %v2009 = vand.u32 %v1559, 4294901760
    %2010 = vmatpush1.msra.mxu0 %v2009
    %2011 = vmatprep.subr.mxu0 0.0
    %v2012 = vand.u32 %v1560, 4294901760
    %2013 = vmatpush1.msra.mxu0 %v2012
    %2014 = vmatprep.subr.mxu0 0.0
    %v2015 = vand.u32 %v1561, 4294901760
    %2016 = vmatpush1.msra.mxu0 %v2015
    %2017 = vmatprep.subr.mxu0 0.0
    %2018 = vmatpush1.msra.mxu0 0.0
    %2019 = vmatprep.subr.mxu0 0.0
    %2020 = vmatpush1.msra.mxu0 0.0
    %2021 = vmatprep.subr.mxu0 0.0
    %2022 = vmatpush1.msra.mxu0 0.0
    %2023 = vmatprep.subr.mxu0 0.0
    %2024 = vmatpush1.msra.mxu0 0.0
    %2025 = vmatprep.subr.mxu0 0.0
    %2026 = vmatpush1.msra.mxu0 0.0
    %2027 = vmatprep.subr.mxu0 0.0
    %2028 = vmatpush1.msra.mxu0 0.0
    %2029 = vmatprep.subr.mxu0 0.0
    %2030 = vmatpush1.msra.mxu0 0.0
    %2031 = vmatprep.subr.mxu0 0.0
    %2032 = vmatpush1.msra.mxu0 0.0
    %2033 = vmatprep.subr.mxu0 0.0
    %2034 = vmatpush1.msra.mxu0 0.0
    %2035 = vmatprep.subr.mxu0 0.0
    %2036 = vmatpush1.msra.mxu0 0.0
    %2037 = vmatprep.subr.mxu0 0.0
    %2038 = vmatpush1.msra.mxu0 0.0
    %2039 = vmatprep.subr.mxu0 0.0
    %2040 = vmatpush1.msra.mxu0 0.0
    %2041 = vmatprep.subr.mxu0 0.0
    %2042 = vmatpush1.msra.mxu0 0.0
    %2043 = vmatprep.subr.mxu0 0.0
    %2044 = vmatpush1.msra.mxu0 0.0
    %2045 = vmatprep.subr.mxu0 0.0
    %2046 = vmatpush1.msra.mxu0 0.0
    %2047 = vmatprep.subr.mxu0 0.0
    %2048 = vmatpush1.msra.mxu0 0.0
    %2049 = vmatprep.subr.mxu0 0.0
    %2050 = vmatpush1.msra.mxu0 0.0
    %2051 = vmatprep.subr.mxu0 0.0
    %2052 = vmatpush1.msra.mxu0 0.0
    %2053 = vmatprep.subr.mxu0 0.0
    %2054 = vmatpush1.msra.mxu0 0.0
    %2055 = vmatprep.subr.mxu0 0.0
    %2056 = vmatpush1.msra.mxu0 0.0
    %2057 = vmatprep.subr.mxu0 0.0
    %2058 = vmatpush1.msra.mxu0 0.0
    %2059 = vmatprep.subr.mxu0 0.0
    %2060 = vmatpush1.msra.mxu0 0.0
    %2061 = vmatprep.subr.mxu0 0.0
    %2062 = vmatpush1.msra.mxu0 0.0
    %2063 = vmatprep.subr.mxu0 0.0
    %2064 = vmatpush1.msra.mxu0 0.0
    %2065 = vmatprep.subr.mxu0 0.0
    %2066 = vmatpush1.msra.mxu0 0.0
    %2067 = vmatprep.subr.mxu0 0.0
    %2068 = vmatpush1.msra.mxu0 0.0
    %2069 = vmatprep.mubr.f32.mxu0 0.0
    %v2070 = vand.u32 %v1563, 4294901760
    %2071 = vmatmul.mubr.f32.gmra.mrb[0].mxu0 %v2070
    %v2072 = vpop.f32.mrb[0].mxu0
    %v2073 = vadd.f32 %v1996, %v2072
    %v2074 = vpop.f32.mrb[0].mxu0
    %2075 = vdwg.mxu0
    %2076 = vset.pattern.permute.xlu0 32
    %2077 = vperm.xlu0 %2076, %v12
    %v2078 = vpop.permute.xlu0 %2077
    %v2080 = vlaneseq
    %v2081 = vshrl.u32 %v2080, 7
    %v2082 = vsub.s32 2, %v2081
    %v2083 = vrot.slane %v1029, %v2082
    %v2084 = vmul.f32 %v2078, %v2083
    %v2085 = vand.u32 2147483647, %v2084
    %vm2086 = vcmp.le.f32.partialorder %v2085, 0.7853982
    %vm2087 = vcmp.lt.s32.totalorder %v2084, 0
    %v2088 = vand.u32 %v2084, 2139095040
    %v2089 = vshrl.u32 %v2088, 23
    %v2090 = vsub.s32 %v2089, 127
    %v2091 = vand.u32 2147483647, %v2084
    %v2092 = vand.u32 %v2091, 8388607
    %v2093 = vor.u32 %v2092, 8388608
    %v2094 = vsub.s32 0, %v2093
    %v2095 = vadd.s32 %v2090, 1
    %vm2096 = vcmp.gt.s32.totalorder %v2095, 0
    %v2097 = vsel %vm2096, %v2095, 0
    %v2098 = vshrl.u32 %v2097, 5
    %v2099 = vand.u32 %v2097, 31
    %v2100 = vsub.s32 32, %v2099
    %v2101 = vshrl.u32 683565275, %v2100
    %v2102 = vshll.u32 683565275, %v2099
    %v2103 = vshrl.u32 2475754826, %v2100
    %v2104 = vor.u32 %v2102, %v2103
    %v2105 = vshll.u32 2475754826, %v2099
    %v2106 = vshrl.u32 2131351028, %v2100
    %v2107 = vor.u32 %v2105, %v2106
    %v2108 = vshll.u32 2131351028, %v2099
    %v2109 = vshrl.u32 2102212464, %v2100
    %v2110 = vor.u32 %v2108, %v2109
    %v2111 = vshll.u32 2102212464, %v2099
    %v2112 = vshrl.u32 920167782, %v2100
    %v2113 = vor.u32 %v2111, %v2112
    %v2114 = vshll.u32 920167782, %v2099
    %v2115 = vshrl.u32 1326507024, %v2100
    %v2116 = vor.u32 %v2114, %v2115
    %vm2117 = vcmp.lt.s32.totalorder %v2098, 1
    %vm2118 = vcmp.lt.s32.totalorder %v2098, 2
    %vm2119 = vcmp.lt.s32.totalorder %v2098, 3
    %vm2120 = vcmp.lt.s32.totalorder %v2098, 4
    %v2121 = vsel %vm2117, %v2101, %v2104
    %v2122 = vsel %vm2120, %v2110, 2102212464
    %v2123 = vsel %vm2119, %v2107, %v2122
    %v2124 = vsel %vm2118, %v2121, %v2123
    %v2125 = vsel %vm2117, %v2104, %v2107
    %v2126 = vsel %vm2120, %v2113, 920167782
    %v2127 = vsel %vm2119, %v2110, %v2126
    %v2128 = vsel %vm2118, %v2125, %v2127
    %v2129 = vsel %vm2117, %v2107, %v2110
    %v2130 = vsel %vm2120, %v2116, 1326507024
    %v2131 = vsel %vm2119, %v2113, %v2130
    %v2132 = vsel %vm2118, %v2129, %v2131
    %v2133 = vshll.u32 %v2093, 8
    %v2134 = vmul.u32.u64.compose %v2133, %v2132
    %v2135 = vextract.low.u32 %v2134
    %v2136 = vextract.high.u32 %v2134
    %v2137 = vmul.u32.u64.compose %v2133, %v2128
    %v2138 = vextract.low.u32 %v2137
    %v2139 = vextract.high.u32 %v2137
    %v2140 = vmul.u32 %v2133, %v2124
    %v2141 = vadd.s32 %v2136, %v2138
    %vm2142 = vc.u32 %v2136, %v2138
    %v2143 = vadd.s32 %v2139, 1
    %v2144 = vsel %vm2142, %v2143, %v2139
    %v2145 = vadd.s32 %v2140, %v2144
    %v2146 = vadd.s32 %v2145, 536870912
    %v2147 = vshrl.u32 %v2146, 30
    %v2148 = vshll.u32 %v2147, 30
    %v2149 = vsub.s32 %v2145, %v2148
    %vm2150 = vcmp.lt.s32.totalorder %v2149, 0
    %v2151 = vsub.s32 0, %v2149
    %v2152 = vsel %vm2150, %v2151, %v2149
    %v2153 = vclz %v2152
    %v2154 = vsub.s32 %v2153, 2
    %vm2155 = vcmp.gt.s32.totalorder 0, %v2154
    %v2156 = vsel %vm2155, 0, %v2154
    %v2157 = vsub.s32 32, %v2156
    %v2158 = vshll.u32 %v2149, %v2156
    %v2159 = vshrl.u32 %v2141, %v2157
    %v2160 = vor.u32 %v2158, %v2159
    %v2161 = vsub.s32 4294967266, %v2156
    %v2162 = vadd.s32 %v2161, 127
    %v2163 = vshll.u32 %v2162, 23
    %v2164 = vor.u32 4788187, %v2163
    %v2165 = vand.u32 2147483647, %v2164
    %v2167 = vcvt.s32.f32 %v2160
    %v2168 = vmul.f32 %v2167, %v2165
    %v2169 = vxor.u32 %v2168, 2147483648
    %v2170 = vsel %vm2087, %v2169, %v2168
    %v2171 = vsub.s32 4, %v2147
    %v2172 = vsel %vm2087, %v2171, %v2147
    %v2173 = vsel %vm2086, %v2084, %v2170
    %v2174 = vsel %vm2086, 0, %v2172
    %v2175 = vcosq.f32.pop %v2173
    %v2176 = vsinq.f32.pop %v2173
    %vm2177 = vweird.f32 %v2084
    %v2178 = vand.u32 %v2174, 3
    %vm2179 = vcmp.lt.s32.totalorder %v2178, 2
    %vm2180 = vcmp.eq.s32.totalorder %v2178, 0
    %v2181 = vxor.u32 %v2176, 2147483648
    %v2182 = vsel %vm2180, %v2175, %v2181
    %vm2183 = vcmp.eq.s32.totalorder %v2178, 2
    %v2184 = vxor.u32 %v2175, 2147483648
    %v2185 = vsel %vm2183, %v2184, %v2176
    %v2186 = vsel %vm2179, %v2182, %v2185
    %v2187 = vsel %vm2177, nan, %v2186
    %v2188 = vmul.f32 %v1555, %v2187
    %v2189 = vand.u32 2147483647, %v2084
    %vm2190 = vcmp.le.f32.partialorder %v2189, 0.7853982
    %vm2191 = vcmp.lt.s32.totalorder %v2084, 0
    %v2192 = vand.u32 %v2084, 2139095040
    %v2193 = vshrl.u32 %v2192, 23
    %v2194 = vsub.s32 %v2193, 127
    %v2195 = vand.u32 2147483647, %v2084
    %v2196 = vand.u32 %v2195, 8388607
    %v2197 = vor.u32 %v2196, 8388608
    %v2198 = vsub.s32 0, %v2197
    %v2199 = vadd.s32 %v2194, 1
    %vm2200 = vcmp.gt.s32.totalorder %v2199, 0
    %v2201 = vsel %vm2200, %v2199, 0
    %v2202 = vshrl.u32 %v2201, 5
    %v2203 = vand.u32 %v2201, 31
    %v2204 = vsub.s32 32, %v2203
    %v2205 = vshrl.u32 683565275, %v2204
    %v2206 = vshll.u32 683565275, %v2203
    %v2207 = vshrl.u32 2475754826, %v2204
    %v2208 = vor.u32 %v2206, %v2207
    %v2209 = vshll.u32 2475754826, %v2203
    %v2210 = vshrl.u32 2131351028, %v2204
    %v2211 = vor.u32 %v2209, %v2210
    %v2212 = vshll.u32 2131351028, %v2203
    %v2213 = vshrl.u32 2102212464, %v2204
    %v2214 = vor.u32 %v2212, %v2213
    %v2215 = vshll.u32 2102212464, %v2203
    %v2216 = vshrl.u32 920167782, %v2204
    %v2217 = vor.u32 %v2215, %v2216
    %v2218 = vshll.u32 920167782, %v2203
    %v2219 = vshrl.u32 1326507024, %v2204
    %v2220 = vor.u32 %v2218, %v2219
    %vm2221 = vcmp.lt.s32.totalorder %v2202, 1
    %vm2222 = vcmp.lt.s32.totalorder %v2202, 2
    %vm2223 = vcmp.lt.s32.totalorder %v2202, 3
    %vm2224 = vcmp.lt.s32.totalorder %v2202, 4
    %v2225 = vsel %vm2221, %v2205, %v2208
    %v2226 = vsel %vm2224, %v2214, 2102212464
    %v2227 = vsel %vm2223, %v2211, %v2226
    %v2228 = vsel %vm2222, %v2225, %v2227
    %v2229 = vsel %vm2221, %v2208, %v2211
    %v2230 = vsel %vm2224, %v2217, 920167782
    %v2231 = vsel %vm2223, %v2214, %v2230
    %v2232 = vsel %vm2222, %v2229, %v2231
    %v2233 = vsel %vm2221, %v2211, %v2214
    %v2234 = vsel %vm2224, %v2220, 1326507024
    %v2235 = vsel %vm2223, %v2217, %v2234
    %v2236 = vsel %vm2222, %v2233, %v2235
    %v2237 = vshll.u32 %v2197, 8
    %v2238 = vmul.u32.u64.compose %v2237, %v2236
    %v2239 = vextract.low.u32 %v2238
    %v2240 = vextract.high.u32 %v2238
    %v2241 = vmul.u32.u64.compose %v2237, %v2232
    %v2242 = vextract.low.u32 %v2241
    %v2243 = vextract.high.u32 %v2241
    %v2244 = vmul.u32 %v2237, %v2228
    %v2245 = vadd.s32 %v2240, %v2242
    %vm2246 = vc.u32 %v2240, %v2242
    %v2247 = vadd.s32 %v2243, 1
    %v2248 = vsel %vm2246, %v2247, %v2243
    %v2249 = vadd.s32 %v2244, %v2248
    %v2250 = vadd.s32 %v2249, 536870912
    %v2251 = vshrl.u32 %v2250, 30
    %v2252 = vshll.u32 %v2251, 30
    %v2253 = vsub.s32 %v2249, %v2252
    %vm2254 = vcmp.lt.s32.totalorder %v2253, 0
    %v2255 = vsub.s32 0, %v2253
    %v2256 = vsel %vm2254, %v2255, %v2253
    %v2257 = vclz %v2256
    %v2258 = vsub.s32 %v2257, 2
    %vm2259 = vcmp.gt.s32.totalorder 0, %v2258
    %v2260 = vsel %vm2259, 0, %v2258
    %v2261 = vsub.s32 32, %v2260
    %v2262 = vshll.u32 %v2253, %v2260
    %v2263 = vshrl.u32 %v2245, %v2261
    %v2264 = vor.u32 %v2262, %v2263
    %v2265 = vsub.s32 4294967266, %v2260
    %v2266 = vadd.s32 %v2265, 127
    %v2267 = vshll.u32 %v2266, 23
    %v2268 = vor.u32 4788187, %v2267
    %v2269 = vand.u32 2147483647, %v2268
    %v2271 = vcvt.s32.f32 %v2264
    %v2272 = vmul.f32 %v2271, %v2269
    %v2273 = vxor.u32 %v2272, 2147483648
    %v2274 = vsel %vm2191, %v2273, %v2272
    %v2275 = vsub.s32 4, %v2251
    %v2276 = vsel %vm2191, %v2275, %v2251
    %v2277 = vsel %vm2190, %v2084, %v2274
    %v2278 = vsel %vm2190, 0, %v2276
    %v2279 = vcosq.f32.pop %v2277
    %v2280 = vsinq.f32.pop %v2277
    %vm2281 = vweird.f32 %v2084
    %v2282 = vadd.s32 %v2278, 3
    %v2283 = vand.u32 %v2282, 3
    %vm2284 = vcmp.lt.s32.totalorder %v2283, 2
    %vm2285 = vcmp.eq.s32.totalorder %v2283, 0
    %v2286 = vxor.u32 %v2280, 2147483648
    %v2287 = vsel %vm2285, %v2279, %v2286
    %vm2288 = vcmp.eq.s32.totalorder %v2283, 2
    %v2289 = vxor.u32 %v2279, 2147483648
    %v2290 = vsel %vm2288, %v2289, %v2280
    %v2291 = vsel %vm2284, %v2287, %v2290
    %v2292 = vsel %vm2281, nan, %v2291
    %v2293 = vmul.f32 %v2073, %v2292
    %v2294 = vadd.f32 %v2188, %v2293
    %2296 = vrot.lane.b32.xlu0 %v2294, 120
    %v2297 = vpop.permute.xlu0 %2296
    %2298 = vrot.lane.b32.xlu0 %v2294, 112
    %v2299 = vpop.permute.xlu0 %2298
    %2300 = vrot.lane.b32.xlu0 %v2294, 104
    %v2301 = vpop.permute.xlu0 %2300
    %2302 = vrot.lane.b32.xlu0 %v503, 120
    %v2303 = vpop.permute.xlu0 %2302
    %v2304 = vld [vmem:[%s1 + $0xa8] sm:$0xff]
    %v2305 = vld [vmem:[%s1 + $0xb0] sm:$0xff]
    %2306 = vrot.lane.b32.xlu0 %v2294, 96
    %v2307 = vpop.permute.xlu0 %2306
    %vm2308 = vcmask 64512
    %v2309 = vsel %vm2308, %v2294, 0
    %v2311 = vsel %vm2308, %v2297, 0
    %v2313 = vsel %vm2308, %v2307, 0
    %2315 = vmatprep.subr.mxu0 0.0
    %v2316 = vand.u32 %v2313, 4294901760
    %2317 = vmatpush1.xpose.msra.mxu0 %v2316
    %2318 = vmatprep.subr.mxu0 0.0
    %2319 = vmatpush1.xpose.msra.mxu0 0.0
    %2320 = vmatprep.subr.mxu0 0.0
    %2321 = vmatpush1.xpose.msra.mxu0 0.0
    %2322 = vmatprep.subr.mxu0 0.0
    %2323 = vmatpush1.xpose.msra.mxu0 0.0
    %2324 = vmatprep.subr.mxu0 0.0
    %2325 = vmatpush1.xpose.msra.mxu0 0.0
    %2326 = vmatprep.subr.mxu0 0.0
    %2327 = vmatpush1.xpose.msra.mxu0 0.0
    %2328 = vmatprep.subr.mxu0 0.0
    %2329 = vmatpush1.xpose.msra.mxu0 0.0
    %2330 = vmatprep.subr.mxu0 0.0
    %2331 = vmatpush1.xpose.msra.mxu0 0.0
    %2332 = vmatprep.subr.mxu0 0.0
    %2333 = vmatpush1.xpose.msra.mxu0 0.0
    %2334 = vmatprep.subr.mxu0 0.0
    %2335 = vmatpush1.xpose.msra.mxu0 0.0
    %2336 = vmatprep.subr.mxu0 0.0
    %2337 = vmatpush1.xpose.msra.mxu0 0.0
    %2338 = vmatprep.subr.mxu0 0.0
    %2339 = vmatpush1.xpose.msra.mxu0 0.0
    %2340 = vmatprep.subr.mxu0 0.0
    %2341 = vmatpush1.xpose.msra.mxu0 0.0
    %2342 = vmatprep.subr.mxu0 0.0
    %2343 = vmatpush1.xpose.msra.mxu0 0.0
    %2344 = vmatprep.subr.mxu0 0.0
    %2345 = vmatpush1.xpose.msra.mxu0 0.0
    %2346 = vmatprep.subr.mxu0 0.0
    %2347 = vmatpush1.xpose.msra.mxu0 0.0
    %2348 = vmatprep.subr.mxu0 0.0
    %2349 = vmatpush1.xpose.msra.mxu0 0.0
    %2350 = vmatprep.subr.mxu0 0.0
    %2351 = vmatpush1.xpose.msra.mxu0 0.0
    %2352 = vmatprep.subr.mxu0 0.0
    %2353 = vmatpush1.xpose.msra.mxu0 0.0
    %2354 = vmatprep.subr.mxu0 0.0
    %2355 = vmatpush1.xpose.msra.mxu0 0.0
    %2356 = vmatprep.subr.mxu0 0.0
    %2357 = vmatpush1.xpose.msra.mxu0 0.0
    %2358 = vmatprep.subr.mxu0 0.0
    %2359 = vmatpush1.xpose.msra.mxu0 0.0
    %2360 = vmatprep.subr.mxu0 0.0
    %2361 = vmatpush1.xpose.msra.mxu0 0.0
    %2362 = vmatprep.subr.mxu0 0.0
    %2363 = vmatpush1.xpose.msra.mxu0 0.0
    %2364 = vmatprep.subr.mxu0 0.0
    %2365 = vmatpush1.xpose.msra.mxu0 0.0
    %2366 = vmatprep.subr.mxu0 0.0
    %2367 = vmatpush1.xpose.msra.mxu0 0.0
    %2368 = vmatprep.subr.mxu0 0.0
    %2369 = vmatpush1.xpose.msra.mxu0 0.0
    %2370 = vmatprep.subr.mxu0 0.0
    %2371 = vmatpush1.xpose.msra.mxu0 0.0
    %2372 = vmatprep.subr.mxu0 0.0
    %2373 = vmatpush1.xpose.msra.mxu0 0.0
    %2374 = vmatprep.subr.mxu0 0.0
    %2375 = vmatpush1.xpose.msra.mxu0 0.0
    %2376 = vmatprep.subr.mxu0 0.0
    %2377 = vmatpush1.xpose.msra.mxu0 0.0
    %2378 = vmatprep.subr.mxu0 0.0
    %2379 = vmatpush1.xpose.msra.mxu0 0.0
    %2380 = vmatprep.mubr.f32.mxu0 0.0
    %v2381 = vand.u32 %v2309, 4294901760
    %v2382 = vsub.f32 %v2309, %v2381
    %v2383 = vand.u32 %v2382, 4294901760
    %v2384 = vsub.f32 %v2382, %v2383
    %v2385 = vand.u32 %v2384, 4294901760
    %2386 = vmatmul.mubr.f32.gmra.mrb[0].mxu0 %v2385
    %v2387 = vpop.f32.mrb[0].mxu0
    %v2388 = vadd.f32 0.0, %v2387
    %v2389 = vpop.f32.mrb[0].mxu0
    %2390 = vmatprep.mubr.f32.mxu0 0.0
    %v2391 = vand.u32 %v2311, 4294901760
    %v2392 = vsub.f32 %v2311, %v2391
    %v2393 = vand.u32 %v2392, 4294901760
    %v2394 = vsub.f32 %v2392, %v2393
    %v2395 = vand.u32 %v2394, 4294901760
    %2396 = vmatmul.mubr.f32.gmra.mrb[0].mxu0 %v2395
    %v2397 = vpop.f32.mrb[0].mxu0
    %v2398 = vadd.f32 0.0, %v2397
    %v2399 = vpop.f32.mrb[0].mxu0
    %2400 = vdwg.mxu0
    %2401 = vmatprep.subr.mxu0 0.0
    %v2402 = vand.u32 %v2313, 4294901760
    %v2403 = vsub.f32 %v2313, %v2402
    %v2404 = vand.u32 %v2403, 4294901760
    %v2405 = vsub.f32 %v2403, %v2404
    %v2406 = vand.u32 %v2405, 4294901760
    %2407 = vmatpush1.xpose.msra.mxu0 %v2406
    %2408 = vmatprep.subr.mxu0 0.0
    %2409 = vmatpush1.xpose.msra.mxu0 0.0
    %2410 = vmatprep.subr.mxu0 0.0
    %2411 = vmatpush1.xpose.msra.mxu0 0.0
    %2412 = vmatprep.subr.mxu0 0.0
    %2413 = vmatpush1.xpose.msra.mxu0 0.0
    %2414 = vmatprep.subr.mxu0 0.0
    %2415 = vmatpush1.xpose.msra.mxu0 0.0
    %2416 = vmatprep.subr.mxu0 0.0
    %2417 = vmatpush1.xpose.msra.mxu0 0.0
    %2418 = vmatprep.subr.mxu0 0.0
    %2419 = vmatpush1.xpose.msra.mxu0 0.0
    %2420 = vmatprep.subr.mxu0 0.0
    %2421 = vmatpush1.xpose.msra.mxu0 0.0
    %2422 = vmatprep.subr.mxu0 0.0
    %2423 = vmatpush1.xpose.msra.mxu0 0.0
    %2424 = vmatprep.subr.mxu0 0.0
    %2425 = vmatpush1.xpose.msra.mxu0 0.0
    %2426 = vmatprep.subr.mxu0 0.0
    %2427 = vmatpush1.xpose.msra.mxu0 0.0
    %2428 = vmatprep.subr.mxu0 0.0
    %2429 = vmatpush1.xpose.msra.mxu0 0.0
    %2430 = vmatprep.subr.mxu0 0.0
    %2431 = vmatpush1.xpose.msra.mxu0 0.0
    %2432 = vmatprep.subr.mxu0 0.0
    %2433 = vmatpush1.xpose.msra.mxu0 0.0
    %2434 = vmatprep.subr.mxu0 0.0
    %2435 = vmatpush1.xpose.msra.mxu0 0.0
    %2436 = vmatprep.subr.mxu0 0.0
    %2437 = vmatpush1.xpose.msra.mxu0 0.0
    %2438 = vmatprep.subr.mxu0 0.0
    %2439 = vmatpush1.xpose.msra.mxu0 0.0
    %2440 = vmatprep.subr.mxu0 0.0
    %2441 = vmatpush1.xpose.msra.mxu0 0.0
    %2442 = vmatprep.subr.mxu0 0.0
    %2443 = vmatpush1.xpose.msra.mxu0 0.0
    %2444 = vmatprep.subr.mxu0 0.0
    %2445 = vmatpush1.xpose.msra.mxu0 0.0
    %2446 = vmatprep.subr.mxu0 0.0
    %2447 = vmatpush1.xpose.msra.mxu0 0.0
    %2448 = vmatprep.subr.mxu0 0.0
    %2449 = vmatpush1.xpose.msra.mxu0 0.0
    %2450 = vmatprep.subr.mxu0 0.0
    %2451 = vmatpush1.xpose.msra.mxu0 0.0
    %2452 = vmatprep.subr.mxu0 0.0
    %2453 = vmatpush1.xpose.msra.mxu0 0.0
    %2454 = vmatprep.subr.mxu0 0.0
    %2455 = vmatpush1.xpose.msra.mxu0 0.0
    %2456 = vmatprep.subr.mxu0 0.0
    %2457 = vmatpush1.xpose.msra.mxu0 0.0
    %2458 = vmatprep.subr.mxu0 0.0
    %2459 = vmatpush1.xpose.msra.mxu0 0.0
    %2460 = vmatprep.subr.mxu0 0.0
    %2461 = vmatpush1.xpose.msra.mxu0 0.0
    %2462 = vmatprep.subr.mxu0 0.0
    %2463 = vmatpush1.xpose.msra.mxu0 0.0
    %2464 = vmatprep.subr.mxu0 0.0
    %2465 = vmatpush1.xpose.msra.mxu0 0.0
    %2466 = vmatprep.subr.mxu0 0.0
    %2467 = vmatpush1.xpose.msra.mxu0 0.0
    %2468 = vmatprep.subr.mxu0 0.0
    %2469 = vmatpush1.xpose.msra.mxu0 0.0
    %2470 = vmatprep.mubr.f32.mxu0 0.0
    %v2471 = vand.u32 %v2309, 4294901760
    %2472 = vmatmul.mubr.f32.gmra.mrb[0].mxu0 %v2471
    %v2473 = vpop.f32.mrb[0].mxu0
    %v2474 = vadd.f32 %v2388, %v2473
    %v2475 = vpop.f32.mrb[0].mxu0
    %2476 = vmatprep.mubr.f32.mxu0 0.0
    %v2477 = vand.u32 %v2311, 4294901760
    %2478 = vmatmul.mubr.f32.gmra.mrb[0].mxu0 %v2477
    %v2479 = vpop.f32.mrb[0].mxu0
    %v2480 = vadd.f32 %v2398, %v2479
    %v2481 = vpop.f32.mrb[0].mxu0
    %2482 = vdwg.mxu0
    %2483 = vmatprep.subr.mxu0 0.0
    %v2484 = vand.u32 %v2313, 4294901760
    %v2485 = vsub.f32 %v2313, %v2484
    %2486 = vmatpush1.xpose.msra.mxu0 %v2485
    %2487 = vmatprep.subr.mxu0 0.0
    %2488 = vmatpush1.xpose.msra.mxu0 0.0
    %2489 = vmatprep.subr.mxu0 0.0
    %2490 = vmatpush1.xpose.msra.mxu0 0.0
    %2491 = vmatprep.subr.mxu0 0.0
    %2492 = vmatpush1.xpose.msra.mxu0 0.0
    %2493 = vmatprep.subr.mxu0 0.0
    %2494 = vmatpush1.xpose.msra.mxu0 0.0
    %2495 = vmatprep.subr.mxu0 0.0
    %2496 = vmatpush1.xpose.msra.mxu0 0.0
    %2497 = vmatprep.subr.mxu0 0.0
    %2498 = vmatpush1.xpose.msra.mxu0 0.0
    %2499 = vmatprep.subr.mxu0 0.0
    %2500 = vmatpush1.xpose.msra.mxu0 0.0
    %2501 = vmatprep.subr.mxu0 0.0
    %2502 = vmatpush1.xpose.msra.mxu0 0.0
    %2503 = vmatprep.subr.mxu0 0.0
    %2504 = vmatpush1.xpose.msra.mxu0 0.0
    %2505 = vmatprep.subr.mxu0 0.0
    %2506 = vmatpush1.xpose.msra.mxu0 0.0
    %2507 = vmatprep.subr.mxu0 0.0
    %2508 = vmatpush1.xpose.msra.mxu0 0.0
    %2509 = vmatprep.subr.mxu0 0.0
    %2510 = vmatpush1.xpose.msra.mxu0 0.0
    %2511 = vmatprep.subr.mxu0 0.0
    %2512 = vmatpush1.xpose.msra.mxu0 0.0
    %2513 = vmatprep.subr.mxu0 0.0
    %2514 = vmatpush1.xpose.msra.mxu0 0.0
    %2515 = vmatprep.subr.mxu0 0.0
    %2516 = vmatpush1.xpose.msra.mxu0 0.0
    %2517 = vmatprep.subr.mxu0 0.0
    %2518 = vmatpush1.xpose.msra.mxu0 0.0
    %2519 = vmatprep.subr.mxu0 0.0
    %2520 = vmatpush1.xpose.msra.mxu0 0.0
    %2521 = vmatprep.subr.mxu0 0.0
    %2522 = vmatpush1.xpose.msra.mxu0 0.0
    %2523 = vmatprep.subr.mxu0 0.0
    %2524 = vmatpush1.xpose.msra.mxu0 0.0
    %2525 = vmatprep.subr.mxu0 0.0
    %2526 = vmatpush1.xpose.msra.mxu0 0.0
    %2527 = vmatprep.subr.mxu0 0.0
    %2528 = vmatpush1.xpose.msra.mxu0 0.0
    %2529 = vmatprep.subr.mxu0 0.0
    %2530 = vmatpush1.xpose.msra.mxu0 0.0
    %2531 = vmatprep.subr.mxu0 0.0
    %2532 = vmatpush1.xpose.msra.mxu0 0.0
    %2533 = vmatprep.subr.mxu0 0.0
    %2534 = vmatpush1.xpose.msra.mxu0 0.0
    %2535 = vmatprep.subr.mxu0 0.0
    %2536 = vmatpush1.xpose.msra.mxu0 0.0
    %2537 = vmatprep.subr.mxu0 0.0
    %2538 = vmatpush1.xpose.msra.mxu0 0.0
    %2539 = vmatprep.subr.mxu0 0.0
    %2540 = vmatpush1.xpose.msra.mxu0 0.0
    %2541 = vmatprep.subr.mxu0 0.0
    %2542 = vmatpush1.xpose.msra.mxu0 0.0
    %2543 = vmatprep.subr.mxu0 0.0
    %2544 = vmatpush1.xpose.msra.mxu0 0.0
    %2545 = vmatprep.subr.mxu0 0.0
    %2546 = vmatpush1.xpose.msra.mxu0 0.0
    %2547 = vmatprep.subr.mxu0 0.0
    %2548 = vmatpush1.xpose.msra.mxu0 0.0
    %2549 = vmatprep.mubr.f32.mxu0 0.0
    %v2550 = vand.u32 %v2309, 4294901760
    %v2551 = vsub.f32 %v2309, %v2550
    %2552 = vmatmul.mubr.f32.gmra.mrb[0].mxu0 %v2551
    %v2553 = vpop.f32.mrb[0].mxu0
    %v2554 = vadd.f32 %v2474, %v2553
    %v2555 = vpop.f32.mrb[0].mxu0
    %2556 = vmatprep.mubr.f32.mxu0 0.0
    %v2557 = vand.u32 %v2311, 4294901760
    %v2558 = vsub.f32 %v2311, %v2557
    %2559 = vmatmul.mubr.f32.gmra.mrb[0].mxu0 %v2558
    %v2560 = vpop.f32.mrb[0].mxu0
    %v2561 = vadd.f32 %v2480, %v2560
    %v2562 = vpop.f32.mrb[0].mxu0
    %2563 = vdwg.mxu0
    %2564 = vmatprep.subr.mxu0 0.0
    %v2565 = vand.u32 %v2313, 4294901760
    %2566 = vmatpush1.xpose.msra.mxu0 %v2565
    %2567 = vmatprep.subr.mxu0 0.0
    %2568 = vmatpush1.xpose.msra.mxu0 0.0
    %2569 = vmatprep.subr.mxu0 0.0
    %2570 = vmatpush1.xpose.msra.mxu0 0.0
    %2571 = vmatprep.subr.mxu0 0.0
    %2572 = vmatpush1.xpose.msra.mxu0 0.0
    %2573 = vmatprep.subr.mxu0 0.0
    %2574 = vmatpush1.xpose.msra.mxu0 0.0
    %2575 = vmatprep.subr.mxu0 0.0
    %2576 = vmatpush1.xpose.msra.mxu0 0.0
    %2577 = vmatprep.subr.mxu0 0.0
    %2578 = vmatpush1.xpose.msra.mxu0 0.0
    %2579 = vmatprep.subr.mxu0 0.0
    %2580 = vmatpush1.xpose.msra.mxu0 0.0
    %2581 = vmatprep.subr.mxu0 0.0
    %2582 = vmatpush1.xpose.msra.mxu0 0.0
    %2583 = vmatprep.subr.mxu0 0.0
    %2584 = vmatpush1.xpose.msra.mxu0 0.0
    %2585 = vmatprep.subr.mxu0 0.0
    %2586 = vmatpush1.xpose.msra.mxu0 0.0
    %2587 = vmatprep.subr.mxu0 0.0
    %2588 = vmatpush1.xpose.msra.mxu0 0.0
    %2589 = vmatprep.subr.mxu0 0.0
    %2590 = vmatpush1.xpose.msra.mxu0 0.0
    %2591 = vmatprep.subr.mxu0 0.0
    %2592 = vmatpush1.xpose.msra.mxu0 0.0
    %2593 = vmatprep.subr.mxu0 0.0
    %2594 = vmatpush1.xpose.msra.mxu0 0.0
    %2595 = vmatprep.subr.mxu0 0.0
    %2596 = vmatpush1.xpose.msra.mxu0 0.0
    %2597 = vmatprep.subr.mxu0 0.0
    %2598 = vmatpush1.xpose.msra.mxu0 0.0
    %2599 = vmatprep.subr.mxu0 0.0
    %2600 = vmatpush1.xpose.msra.mxu0 0.0
    %2601 = vmatprep.subr.mxu0 0.0
    %2602 = vmatpush1.xpose.msra.mxu0 0.0
    %2603 = vmatprep.subr.mxu0 0.0
    %2604 = vmatpush1.xpose.msra.mxu0 0.0
    %2605 = vmatprep.subr.mxu0 0.0
    %2606 = vmatpush1.xpose.msra.mxu0 0.0
    %2607 = vmatprep.subr.mxu0 0.0
    %2608 = vmatpush1.xpose.msra.mxu0 0.0
    %2609 = vmatprep.subr.mxu0 0.0
    %2610 = vmatpush1.xpose.msra.mxu0 0.0
    %2611 = vmatprep.subr.mxu0 0.0
    %2612 = vmatpush1.xpose.msra.mxu0 0.0
    %2613 = vmatprep.subr.mxu0 0.0
    %2614 = vmatpush1.xpose.msra.mxu0 0.0
    %2615 = vmatprep.subr.mxu0 0.0
    %2616 = vmatpush1.xpose.msra.mxu0 0.0
    %2617 = vmatprep.subr.mxu0 0.0
    %2618 = vmatpush1.xpose.msra.mxu0 0.0
    %2619 = vmatprep.subr.mxu0 0.0
    %2620 = vmatpush1.xpose.msra.mxu0 0.0
    %2621 = vmatprep.subr.mxu0 0.0
    %2622 = vmatpush1.xpose.msra.mxu0 0.0
    %2623 = vmatprep.subr.mxu0 0.0
    %2624 = vmatpush1.xpose.msra.mxu0 0.0
    %2625 = vmatprep.subr.mxu0 0.0
    %2626 = vmatpush1.xpose.msra.mxu0 0.0
    %2627 = vmatprep.subr.mxu0 0.0
    %2628 = vmatpush1.xpose.msra.mxu0 0.0
    %2629 = vmatprep.mubr.f32.mxu0 0.0
    %v2630 = vand.u32 %v2309, 4294901760
    %v2631 = vsub.f32 %v2309, %v2630
    %v2632 = vand.u32 %v2631, 4294901760
    %2633 = vmatmul.mubr.f32.gmra.mrb[0].mxu0 %v2632
    %v2634 = vpop.f32.mrb[0].mxu0
    %v2635 = vadd.f32 %v2554, %v2634
    %v2636 = vpop.f32.mrb[0].mxu0
    %2637 = vmatprep.mubr.f32.mxu0 0.0
    %v2638 = vand.u32 %v2311, 4294901760
    %v2639 = vsub.f32 %v2311, %v2638
    %v2640 = vand.u32 %v2639, 4294901760
    %2641 = vmatmul.mubr.f32.gmra.mrb[0].mxu0 %v2640
    %v2642 = vpop.f32.mrb[0].mxu0
    %v2643 = vadd.f32 %v2561, %v2642
    %v2644 = vpop.f32.mrb[0].mxu0
    %2645 = vdwg.mxu0
    %2646 = vmatprep.subr.mxu0 0.0
    %v2647 = vand.u32 %v2313, 4294901760
    %v2648 = vsub.f32 %v2313, %v2647
    %v2649 = vand.u32 %v2648, 4294901760
    %2650 = vmatpush1.xpose.msra.mxu0 %v2649
    %2651 = vmatprep.subr.mxu0 0.0
    %2652 = vmatpush1.xpose.msra.mxu0 0.0
    %2653 = vmatprep.subr.mxu0 0.0
    %2654 = vmatpush1.xpose.msra.mxu0 0.0
    %2655 = vmatprep.subr.mxu0 0.0
    %2656 = vmatpush1.xpose.msra.mxu0 0.0
    %2657 = vmatprep.subr.mxu0 0.0
    %2658 = vmatpush1.xpose.msra.mxu0 0.0
    %2659 = vmatprep.subr.mxu0 0.0
    %2660 = vmatpush1.xpose.msra.mxu0 0.0
    %2661 = vmatprep.subr.mxu0 0.0
    %2662 = vmatpush1.xpose.msra.mxu0 0.0
    %2663 = vmatprep.subr.mxu0 0.0
    %2664 = vmatpush1.xpose.msra.mxu0 0.0
    %2665 = vmatprep.subr.mxu0 0.0
    %2666 = vmatpush1.xpose.msra.mxu0 0.0
    %2667 = vmatprep.subr.mxu0 0.0
    %2668 = vmatpush1.xpose.msra.mxu0 0.0
    %2669 = vmatprep.subr.mxu0 0.0
    %2670 = vmatpush1.xpose.msra.mxu0 0.0
    %2671 = vmatprep.subr.mxu0 0.0
    %2672 = vmatpush1.xpose.msra.mxu0 0.0
    %2673 = vmatprep.subr.mxu0 0.0
    %2674 = vmatpush1.xpose.msra.mxu0 0.0
    %2675 = vmatprep.subr.mxu0 0.0
    %2676 = vmatpush1.xpose.msra.mxu0 0.0
    %2677 = vmatprep.subr.mxu0 0.0
    %2678 = vmatpush1.xpose.msra.mxu0 0.0
    %2679 = vmatprep.subr.mxu0 0.0
    %2680 = vmatpush1.xpose.msra.mxu0 0.0
    %2681 = vmatprep.subr.mxu0 0.0
    %2682 = vmatpush1.xpose.msra.mxu0 0.0
    %2683 = vmatprep.subr.mxu0 0.0
    %2684 = vmatpush1.xpose.msra.mxu0 0.0
    %2685 = vmatprep.subr.mxu0 0.0
    %2686 = vmatpush1.xpose.msra.mxu0 0.0
    %2687 = vmatprep.subr.mxu0 0.0
    %2688 = vmatpush1.xpose.msra.mxu0 0.0
    %2689 = vmatprep.subr.mxu0 0.0
    %2690 = vmatpush1.xpose.msra.mxu0 0.0
    %2691 = vmatprep.subr.mxu0 0.0
    %2692 = vmatpush1.xpose.msra.mxu0 0.0
    %2693 = vmatprep.subr.mxu0 0.0
    %2694 = vmatpush1.xpose.msra.mxu0 0.0
    %2695 = vmatprep.subr.mxu0 0.0
    %2696 = vmatpush1.xpose.msra.mxu0 0.0
    %2697 = vmatprep.subr.mxu0 0.0
    %2698 = vmatpush1.xpose.msra.mxu0 0.0
    %2699 = vmatprep.subr.mxu0 0.0
    %2700 = vmatpush1.xpose.msra.mxu0 0.0
    %2701 = vmatprep.subr.mxu0 0.0
    %2702 = vmatpush1.xpose.msra.mxu0 0.0
    %2703 = vmatprep.subr.mxu0 0.0
    %2704 = vmatpush1.xpose.msra.mxu0 0.0
    %2705 = vmatprep.subr.mxu0 0.0
    %2706 = vmatpush1.xpose.msra.mxu0 0.0
    %2707 = vmatprep.subr.mxu0 0.0
    %2708 = vmatpush1.xpose.msra.mxu0 0.0
    %2709 = vmatprep.subr.mxu0 0.0
    %2710 = vmatpush1.xpose.msra.mxu0 0.0
    %2711 = vmatprep.subr.mxu0 0.0
    %2712 = vmatpush1.xpose.msra.mxu0 0.0
    %2713 = vmatprep.mubr.f32.mxu0 0.0
    %v2714 = vand.u32 %v2309, 4294901760
    %2715 = vmatmul.mubr.f32.gmra.mrb[0].mxu0 %v2714
    %v2716 = vpop.f32.mrb[0].mxu0
    %v2717 = vadd.f32 %v2635, %v2716
    %v2718 = vpop.f32.mrb[0].mxu0
    %2719 = vmatprep.mubr.f32.mxu0 0.0
    %v2720 = vand.u32 %v2311, 4294901760
    %2721 = vmatmul.mubr.f32.gmra.mrb[0].mxu0 %v2720
    %v2722 = vpop.f32.mrb[0].mxu0
    %v2723 = vadd.f32 %v2643, %v2722
    %v2724 = vpop.f32.mrb[0].mxu0
    %2725 = vdwg.mxu0
    %2726 = vmatprep.subr.mxu0 0.0
    %v2727 = vand.u32 %v2313, 4294901760
    %2728 = vmatpush1.xpose.msra.mxu0 %v2727
    %2729 = vmatprep.subr.mxu0 0.0
    %2730 = vmatpush1.xpose.msra.mxu0 0.0
    %2731 = vmatprep.subr.mxu0 0.0
    %2732 = vmatpush1.xpose.msra.mxu0 0.0
    %2733 = vmatprep.subr.mxu0 0.0
    %2734 = vmatpush1.xpose.msra.mxu0 0.0
    %2735 = vmatprep.subr.mxu0 0.0
    %2736 = vmatpush1.xpose.msra.mxu0 0.0
    %2737 = vmatprep.subr.mxu0 0.0
    %2738 = vmatpush1.xpose.msra.mxu0 0.0
    %2739 = vmatprep.subr.mxu0 0.0
    %2740 = vmatpush1.xpose.msra.mxu0 0.0
    %2741 = vmatprep.subr.mxu0 0.0
    %2742 = vmatpush1.xpose.msra.mxu0 0.0
    %2743 = vmatprep.subr.mxu0 0.0
    %2744 = vmatpush1.xpose.msra.mxu0 0.0
    %2745 = vmatprep.subr.mxu0 0.0
    %2746 = vmatpush1.xpose.msra.mxu0 0.0
    %2747 = vmatprep.subr.mxu0 0.0
    %2748 = vmatpush1.xpose.msra.mxu0 0.0
    %2749 = vmatprep.subr.mxu0 0.0
    %2750 = vmatpush1.xpose.msra.mxu0 0.0
    %2751 = vmatprep.subr.mxu0 0.0
    %2752 = vmatpush1.xpose.msra.mxu0 0.0
    %2753 = vmatprep.subr.mxu0 0.0
    %2754 = vmatpush1.xpose.msra.mxu0 0.0
    %2755 = vmatprep.subr.mxu0 0.0
    %2756 = vmatpush1.xpose.msra.mxu0 0.0
    %2757 = vmatprep.subr.mxu0 0.0
    %2758 = vmatpush1.xpose.msra.mxu0 0.0
    %2759 = vmatprep.subr.mxu0 0.0
    %2760 = vmatpush1.xpose.msra.mxu0 0.0
    %2761 = vmatprep.subr.mxu0 0.0
    %2762 = vmatpush1.xpose.msra.mxu0 0.0
    %2763 = vmatprep.subr.mxu0 0.0
    %2764 = vmatpush1.xpose.msra.mxu0 0.0
    %2765 = vmatprep.subr.mxu0 0.0
    %2766 = vmatpush1.xpose.msra.mxu0 0.0
    %2767 = vmatprep.subr.mxu0 0.0
    %2768 = vmatpush1.xpose.msra.mxu0 0.0
    %2769 = vmatprep.subr.mxu0 0.0
    %2770 = vmatpush1.xpose.msra.mxu0 0.0
    %2771 = vmatprep.subr.mxu0 0.0
    %2772 = vmatpush1.xpose.msra.mxu0 0.0
    %2773 = vmatprep.subr.mxu0 0.0
    %2774 = vmatpush1.xpose.msra.mxu0 0.0
    %2775 = vmatprep.subr.mxu0 0.0
    %2776 = vmatpush1.xpose.msra.mxu0 0.0
    %2777 = vmatprep.subr.mxu0 0.0
    %2778 = vmatpush1.xpose.msra.mxu0 0.0
    %2779 = vmatprep.subr.mxu0 0.0
    %2780 = vmatpush1.xpose.msra.mxu0 0.0
    %2781 = vmatprep.subr.mxu0 0.0
    %2782 = vmatpush1.xpose.msra.mxu0 0.0
    %2783 = vmatprep.subr.mxu0 0.0
    %2784 = vmatpush1.xpose.msra.mxu0 0.0
    %2785 = vmatprep.subr.mxu0 0.0
    %2786 = vmatpush1.xpose.msra.mxu0 0.0
    %2787 = vmatprep.subr.mxu0 0.0
    %2788 = vmatpush1.xpose.msra.mxu0 0.0
    %2789 = vmatprep.subr.mxu0 0.0
    %2790 = vmatpush1.xpose.msra.mxu0 0.0
    %2791 = vmatprep.mubr.f32.mxu0 0.0
    %v2792 = vand.u32 %v2309, 4294901760
    %2793 = vmatmul.mubr.f32.gmra.mrb[0].mxu0 %v2792
    %v2794 = vpop.f32.mrb[0].mxu0
    %v2795 = vadd.f32 %v2717, %v2794
    %v2796 = vpop.f32.mrb[0].mxu0
    %2797 = vmatprep.mubr.f32.mxu0 0.0
    %v2798 = vand.u32 %v2311, 4294901760
    %2799 = vmatmul.mubr.f32.gmra.mrb[0].mxu0 %v2798
    %v2800 = vpop.f32.mrb[0].mxu0
    %v2801 = vadd.f32 %v2723, %v2800
    %v2802 = vpop.f32.mrb[0].mxu0
    %2803 = vdwg.mxu0
    %v2804 = vmul.f32 %v2795, 0.35355338
    %v2805 = vmul.f32 %v2801, 0.35355338
    %v2806 = vadd.f32 %v2804, %v2304
    %v2807 = vadd.f32 %v2805, %v2305
    %v2808 = vsel %vm2308, %v2806, -inf
    %2809 = vmax.xlane.f32.xlu0 %v2808
    %v2810 = vpop.xlane.xlu0 %2809
    %v2811 = vsel %vm2308, %v2807, -inf
    %2812 = vmax.xlane.f32.xlu0 %v2811
    %v2813 = vpop.xlane.xlu0 %2812
    %v2814 = vsub.f32 %v2806, %v2810
    %v2815 = vsub.f32 %v2807, %v2813
    %v2816 = vmul.f32 %v2814, 1.442695
    %v2817 = vpow.pop %v2816
    %v2818 = vmul.f32 %v2815, 1.442695
    %v2819 = vpow.pop %v2818
    %v2820 = vsel %vm2308, %v2817, 0.0
    %2821 = vadd.xlane.f32.xlu0 %v2820
    %v2822 = vpop.xlane.xlu0 %2821
    %v2823 = vsel %vm2308, %v2819, 0.0
    %2824 = vadd.xlane.f32.xlu0 %v2823
    %v2825 = vpop.xlane.xlu0 %2824
    %v2826 = vrcp.pop %v2822
    %v2827 = vrcp.pop %v2825
    %v2828 = vmul.f32 %v2817, %v2826
    %v2829 = vmul.f32 %v2819, %v2827
    %2830 = vrot.lane.b32.xlu0 %v503, 80
    %v2831 = vpop.permute.xlu0 %2830
    %v2834 = vsel %vm2308, %v2828, 0
    %v2837 = vsel %vm2308, %v2829, 0
    %2839 = vmatprep.subr.mxu0 0.0
    %v2840 = vand.u32 %v2831, 4294901760
    %2841 = vmatpush1.msra.mxu0 %v2840
    %2842 = vmatprep.subr.mxu0 0.0
    %2843 = vmatpush1.msra.mxu0 0.0
    %2844 = vmatprep.subr.mxu0 0.0
    %2845 = vmatpush1.msra.mxu0 0.0
    %2846 = vmatprep.subr.mxu0 0.0
    %2847 = vmatpush1.msra.mxu0 0.0
    %2848 = vmatprep.subr.mxu0 0.0
    %2849 = vmatpush1.msra.mxu0 0.0
    %2850 = vmatprep.subr.mxu0 0.0
    %2851 = vmatpush1.msra.mxu0 0.0
    %2852 = vmatprep.subr.mxu0 0.0
    %2853 = vmatpush1.msra.mxu0 0.0
    %2854 = vmatprep.subr.mxu0 0.0
    %2855 = vmatpush1.msra.mxu0 0.0
    %2856 = vmatprep.subr.mxu0 0.0
    %2857 = vmatpush1.msra.mxu0 0.0
    %2858 = vmatprep.subr.mxu0 0.0
    %2859 = vmatpush1.msra.mxu0 0.0
    %2860 = vmatprep.subr.mxu0 0.0
    %2861 = vmatpush1.msra.mxu0 0.0
    %2862 = vmatprep.subr.mxu0 0.0
    %2863 = vmatpush1.msra.mxu0 0.0
    %2864 = vmatprep.subr.mxu0 0.0
    %2865 = vmatpush1.msra.mxu0 0.0
    %2866 = vmatprep.subr.mxu0 0.0
    %2867 = vmatpush1.msra.mxu0 0.0
    %2868 = vmatprep.subr.mxu0 0.0
    %2869 = vmatpush1.msra.mxu0 0.0
    %2870 = vmatprep.subr.mxu0 0.0
    %2871 = vmatpush1.msra.mxu0 0.0
    %2872 = vmatprep.subr.mxu0 0.0
    %2873 = vmatpush1.msra.mxu0 0.0
    %2874 = vmatprep.subr.mxu0 0.0
    %2875 = vmatpush1.msra.mxu0 0.0
    %2876 = vmatprep.subr.mxu0 0.0
    %2877 = vmatpush1.msra.mxu0 0.0
    %2878 = vmatprep.subr.mxu0 0.0
    %2879 = vmatpush1.msra.mxu0 0.0
    %2880 = vmatprep.subr.mxu0 0.0
    %2881 = vmatpush1.msra.mxu0 0.0
    %2882 = vmatprep.subr.mxu0 0.0
    %2883 = vmatpush1.msra.mxu0 0.0
    %2884 = vmatprep.subr.mxu0 0.0
    %2885 = vmatpush1.msra.mxu0 0.0
    %2886 = vmatprep.subr.mxu0 0.0
    %2887 = vmatpush1.msra.mxu0 0.0
    %2888 = vmatprep.subr.mxu0 0.0
    %2889 = vmatpush1.msra.mxu0 0.0
    %2890 = vmatprep.subr.mxu0 0.0
    %2891 = vmatpush1.msra.mxu0 0.0
    %2892 = vmatprep.subr.mxu0 0.0
    %2893 = vmatpush1.msra.mxu0 0.0
    %2894 = vmatprep.subr.mxu0 0.0
    %2895 = vmatpush1.msra.mxu0 0.0
    %2896 = vmatprep.subr.mxu0 0.0
    %2897 = vmatpush1.msra.mxu0 0.0
    %2898 = vmatprep.subr.mxu0 0.0
    %2899 = vmatpush1.msra.mxu0 0.0
    %2900 = vmatprep.subr.mxu0 0.0
    %2901 = vmatpush1.msra.mxu0 0.0
    %2902 = vmatprep.subr.mxu0 0.0
    %2903 = vmatpush1.msra.mxu0 0.0
    %2904 = vmatprep.mubr.f32.mxu0 0.0
    %v2905 = vand.u32 %v2834, 4294901760
    %v2906 = vsub.f32 %v2834, %v2905
    %v2907 = vand.u32 %v2906, 4294901760
    %v2908 = vsub.f32 %v2906, %v2907
    %v2909 = vand.u32 %v2908, 4294901760
    %2910 = vmatmul.mubr.f32.gmra.mrb[0].mxu0 %v2909
    %v2911 = vpop.f32.mrb[0].mxu0
    %v2912 = vadd.f32 0.0, %v2911
    %v2913 = vpop.f32.mrb[0].mxu0
    %2914 = vmatprep.mubr.f32.mxu0 0.0
    %v2915 = vand.u32 %v2837, 4294901760
    %v2916 = vsub.f32 %v2837, %v2915
    %v2917 = vand.u32 %v2916, 4294901760
    %v2918 = vsub.f32 %v2916, %v2917
    %v2919 = vand.u32 %v2918, 4294901760
    %2920 = vmatmul.mubr.f32.gmra.mrb[0].mxu0 %v2919
    %v2921 = vpop.f32.mrb[0].mxu0
    %v2922 = vadd.f32 0.0, %v2921
    %v2923 = vpop.f32.mrb[0].mxu0
    %2924 = vdwg.mxu0
    %2925 = vmatprep.subr.mxu0 0.0
    %v2926 = vand.u32 %v2831, 4294901760
    %v2927 = vsub.f32 %v2831, %v2926
    %v2928 = vand.u32 %v2927, 4294901760
    %v2929 = vsub.f32 %v2927, %v2928
    %v2930 = vand.u32 %v2929, 4294901760
    %2931 = vmatpush1.msra.mxu0 %v2930
    %2932 = vmatprep.subr.mxu0 0.0
    %2933 = vmatpush1.msra.mxu0 0.0
    %2934 = vmatprep.subr.mxu0 0.0
    %2935 = vmatpush1.msra.mxu0 0.0
    %2936 = vmatprep.subr.mxu0 0.0
    %2937 = vmatpush1.msra.mxu0 0.0
    %2938 = vmatprep.subr.mxu0 0.0
    %2939 = vmatpush1.msra.mxu0 0.0
    %2940 = vmatprep.subr.mxu0 0.0
    %2941 = vmatpush1.msra.mxu0 0.0
    %2942 = vmatprep.subr.mxu0 0.0
    %2943 = vmatpush1.msra.mxu0 0.0
    %2944 = vmatprep.subr.mxu0 0.0
    %2945 = vmatpush1.msra.mxu0 0.0
    %2946 = vmatprep.subr.mxu0 0.0
    %2947 = vmatpush1.msra.mxu0 0.0
    %2948 = vmatprep.subr.mxu0 0.0
    %2949 = vmatpush1.msra.mxu0 0.0
    %2950 = vmatprep.subr.mxu0 0.0
    %2951 = vmatpush1.msra.mxu0 0.0
    %2952 = vmatprep.subr.mxu0 0.0
    %2953 = vmatpush1.msra.mxu0 0.0
    %2954 = vmatprep.subr.mxu0 0.0
    %2955 = vmatpush1.msra.mxu0 0.0
    %2956 = vmatprep.subr.mxu0 0.0
    %2957 = vmatpush1.msra.mxu0 0.0
    %2958 = vmatprep.subr.mxu0 0.0
    %2959 = vmatpush1.msra.mxu0 0.0
    %2960 = vmatprep.subr.mxu0 0.0
    %2961 = vmatpush1.msra.mxu0 0.0
    %2962 = vmatprep.subr.mxu0 0.0
    %2963 = vmatpush1.msra.mxu0 0.0
    %2964 = vmatprep.subr.mxu0 0.0
    %2965 = vmatpush1.msra.mxu0 0.0
    %2966 = vmatprep.subr.mxu0 0.0
    %2967 = vmatpush1.msra.mxu0 0.0
    %2968 = vmatprep.subr.mxu0 0.0
    %2969 = vmatpush1.msra.mxu0 0.0
    %2970 = vmatprep.subr.mxu0 0.0
    %2971 = vmatpush1.msra.mxu0 0.0
    %2972 = vmatprep.subr.mxu0 0.0
    %2973 = vmatpush1.msra.mxu0 0.0
    %2974 = vmatprep.subr.mxu0 0.0
    %2975 = vmatpush1.msra.mxu0 0.0
    %2976 = vmatprep.subr.mxu0 0.0
    %2977 = vmatpush1.msra.mxu0 0.0
    %2978 = vmatprep.subr.mxu0 0.0
    %2979 = vmatpush1.msra.mxu0 0.0
    %2980 = vmatprep.subr.mxu0 0.0
    %2981 = vmatpush1.msra.mxu0 0.0
    %2982 = vmatprep.subr.mxu0 0.0
    %2983 = vmatpush1.msra.mxu0 0.0
    %2984 = vmatprep.subr.mxu0 0.0
    %2985 = vmatpush1.msra.mxu0 0.0
    %2986 = vmatprep.subr.mxu0 0.0
    %2987 = vmatpush1.msra.mxu0 0.0
    %2988 = vmatprep.subr.mxu0 0.0
    %2989 = vmatpush1.msra.mxu0 0.0
    %2990 = vmatprep.subr.mxu0 0.0
    %2991 = vmatpush1.msra.mxu0 0.0
    %2992 = vmatprep.subr.mxu0 0.0
    %2993 = vmatpush1.msra.mxu0 0.0
    %2994 = vmatprep.mubr.f32.mxu0 0.0
    %v2995 = vand.u32 %v2834, 4294901760
    %2996 = vmatmul.mubr.f32.gmra.mrb[0].mxu0 %v2995
    %v2997 = vpop.f32.mrb[0].mxu0
    %v2998 = vadd.f32 %v2912, %v2997
    %v2999 = vpop.f32.mrb[0].mxu0
    %3000 = vmatprep.mubr.f32.mxu0 0.0
    %v3001 = vand.u32 %v2837, 4294901760
    %3002 = vmatmul.mubr.f32.gmra.mrb[0].mxu0 %v3001
    %v3003 = vpop.f32.mrb[0].mxu0
    %v3004 = vadd.f32 %v2922, %v3003
    %v3005 = vpop.f32.mrb[0].mxu0
    %3006 = vdwg.mxu0
    %3007 = vmatprep.subr.mxu0 0.0
    %v3008 = vand.u32 %v2831, 4294901760
    %v3009 = vsub.f32 %v2831, %v3008
    %3010 = vmatpush1.msra.mxu0 %v3009
    %3011 = vmatprep.subr.mxu0 0.0
    %3012 = vmatpush1.msra.mxu0 0.0
    %3013 = vmatprep.subr.mxu0 0.0
    %3014 = vmatpush1.msra.mxu0 0.0
    %3015 = vmatprep.subr.mxu0 0.0
    %3016 = vmatpush1.msra.mxu0 0.0
    %3017 = vmatprep.subr.mxu0 0.0
    %3018 = vmatpush1.msra.mxu0 0.0
    %3019 = vmatprep.subr.mxu0 0.0
    %3020 = vmatpush1.msra.mxu0 0.0
    %3021 = vmatprep.subr.mxu0 0.0
    %3022 = vmatpush1.msra.mxu0 0.0
    %3023 = vmatprep.subr.mxu0 0.0
    %3024 = vmatpush1.msra.mxu0 0.0
    %3025 = vmatprep.subr.mxu0 0.0
    %3026 = vmatpush1.msra.mxu0 0.0
    %3027 = vmatprep.subr.mxu0 0.0
    %3028 = vmatpush1.msra.mxu0 0.0
    %3029 = vmatprep.subr.mxu0 0.0
    %3030 = vmatpush1.msra.mxu0 0.0
    %3031 = vmatprep.subr.mxu0 0.0
    %3032 = vmatpush1.msra.mxu0 0.0
    %3033 = vmatprep.subr.mxu0 0.0
    %3034 = vmatpush1.msra.mxu0 0.0
    %3035 = vmatprep.subr.mxu0 0.0
    %3036 = vmatpush1.msra.mxu0 0.0
    %3037 = vmatprep.subr.mxu0 0.0
    %3038 = vmatpush1.msra.mxu0 0.0
    %3039 = vmatprep.subr.mxu0 0.0
    %3040 = vmatpush1.msra.mxu0 0.0
    %3041 = vmatprep.subr.mxu0 0.0
    %3042 = vmatpush1.msra.mxu0 0.0
    %3043 = vmatprep.subr.mxu0 0.0
    %3044 = vmatpush1.msra.mxu0 0.0
    %3045 = vmatprep.subr.mxu0 0.0
    %3046 = vmatpush1.msra.mxu0 0.0
    %3047 = vmatprep.subr.mxu0 0.0
    %3048 = vmatpush1.msra.mxu0 0.0
    %3049 = vmatprep.subr.mxu0 0.0
    %3050 = vmatpush1.msra.mxu0 0.0
    %3051 = vmatprep.subr.mxu0 0.0
    %3052 = vmatpush1.msra.mxu0 0.0
    %3053 = vmatprep.subr.mxu0 0.0
    %3054 = vmatpush1.msra.mxu0 0.0
    %3055 = vmatprep.subr.mxu0 0.0
    %3056 = vmatpush1.msra.mxu0 0.0
    %3057 = vmatprep.subr.mxu0 0.0
    %3058 = vmatpush1.msra.mxu0 0.0
    %3059 = vmatprep.subr.mxu0 0.0
    %3060 = vmatpush1.msra.mxu0 0.0
    %3061 = vmatprep.subr.mxu0 0.0
    %3062 = vmatpush1.msra.mxu0 0.0
    %3063 = vmatprep.subr.mxu0 0.0
    %3064 = vmatpush1.msra.mxu0 0.0
    %3065 = vmatprep.subr.mxu0 0.0
    %3066 = vmatpush1.msra.mxu0 0.0
    %3067 = vmatprep.subr.mxu0 0.0
    %3068 = vmatpush1.msra.mxu0 0.0
    %3069 = vmatprep.subr.mxu0 0.0
    %3070 = vmatpush1.msra.mxu0 0.0
    %3071 = vmatprep.subr.mxu0 0.0
    %3072 = vmatpush1.msra.mxu0 0.0
    %3073 = vmatprep.mubr.f32.mxu0 0.0
    %v3074 = vand.u32 %v2834, 4294901760
    %v3075 = vsub.f32 %v2834, %v3074
    %3076 = vmatmul.mubr.f32.gmra.mrb[0].mxu0 %v3075
    %v3077 = vpop.f32.mrb[0].mxu0
    %v3078 = vadd.f32 %v2998, %v3077
    %v3079 = vpop.f32.mrb[0].mxu0
    %3080 = vmatprep.mubr.f32.mxu0 0.0
    %v3081 = vand.u32 %v2837, 4294901760
    %v3082 = vsub.f32 %v2837, %v3081
    %3083 = vmatmul.mubr.f32.gmra.mrb[0].mxu0 %v3082
    %v3084 = vpop.f32.mrb[0].mxu0
    %v3085 = vadd.f32 %v3004, %v3084
    %v3086 = vpop.f32.mrb[0].mxu0
    %3087 = vdwg.mxu0
    %3088 = vmatprep.subr.mxu0 0.0
    %v3089 = vand.u32 %v2831, 4294901760
    %3090 = vmatpush1.msra.mxu0 %v3089
    %3091 = vmatprep.subr.mxu0 0.0
    %3092 = vmatpush1.msra.mxu0 0.0
    %3093 = vmatprep.subr.mxu0 0.0
    %3094 = vmatpush1.msra.mxu0 0.0
    %3095 = vmatprep.subr.mxu0 0.0
    %3096 = vmatpush1.msra.mxu0 0.0
    %3097 = vmatprep.subr.mxu0 0.0
    %3098 = vmatpush1.msra.mxu0 0.0
    %3099 = vmatprep.subr.mxu0 0.0
    %3100 = vmatpush1.msra.mxu0 0.0
    %3101 = vmatprep.subr.mxu0 0.0
    %3102 = vmatpush1.msra.mxu0 0.0
    %3103 = vmatprep.subr.mxu0 0.0
    %3104 = vmatpush1.msra.mxu0 0.0
    %3105 = vmatprep.subr.mxu0 0.0
    %3106 = vmatpush1.msra.mxu0 0.0
    %3107 = vmatprep.subr.mxu0 0.0
    %3108 = vmatpush1.msra.mxu0 0.0
    %3109 = vmatprep.subr.mxu0 0.0
    %3110 = vmatpush1.msra.mxu0 0.0
    %3111 = vmatprep.subr.mxu0 0.0
    %3112 = vmatpush1.msra.mxu0 0.0
    %3113 = vmatprep.subr.mxu0 0.0
    %3114 = vmatpush1.msra.mxu0 0.0
    %3115 = vmatprep.subr.mxu0 0.0
    %3116 = vmatpush1.msra.mxu0 0.0
    %3117 = vmatprep.subr.mxu0 0.0
    %3118 = vmatpush1.msra.mxu0 0.0
    %3119 = vmatprep.subr.mxu0 0.0
    %3120 = vmatpush1.msra.mxu0 0.0
    %3121 = vmatprep.subr.mxu0 0.0
    %3122 = vmatpush1.msra.mxu0 0.0
    %3123 = vmatprep.subr.mxu0 0.0
    %3124 = vmatpush1.msra.mxu0 0.0
    %3125 = vmatprep.subr.mxu0 0.0
    %3126 = vmatpush1.msra.mxu0 0.0
    %3127 = vmatprep.subr.mxu0 0.0
    %3128 = vmatpush1.msra.mxu0 0.0
    %3129 = vmatprep.subr.mxu0 0.0
    %3130 = vmatpush1.msra.mxu0 0.0
    %3131 = vmatprep.subr.mxu0 0.0
    %3132 = vmatpush1.msra.mxu0 0.0
    %3133 = vmatprep.subr.mxu0 0.0
    %3134 = vmatpush1.msra.mxu0 0.0
    %3135 = vmatprep.subr.mxu0 0.0
    %3136 = vmatpush1.msra.mxu0 0.0
    %3137 = vmatprep.subr.mxu0 0.0
    %3138 = vmatpush1.msra.mxu0 0.0
    %3139 = vmatprep.subr.mxu0 0.0
    %3140 = vmatpush1.msra.mxu0 0.0
    %3141 = vmatprep.subr.mxu0 0.0
    %3142 = vmatpush1.msra.mxu0 0.0
    %3143 = vmatprep.subr.mxu0 0.0
    %3144 = vmatpush1.msra.mxu0 0.0
    %3145 = vmatprep.subr.mxu0 0.0
    %3146 = vmatpush1.msra.mxu0 0.0
    %3147 = vmatprep.subr.mxu0 0.0
    %3148 = vmatpush1.msra.mxu0 0.0
    %3149 = vmatprep.subr.mxu0 0.0
    %3150 = vmatpush1.msra.mxu0 0.0
    %3151 = vmatprep.subr.mxu0 0.0
    %3152 = vmatpush1.msra.mxu0 0.0
    %3153 = vmatprep.mubr.f32.mxu0 0.0
    %v3154 = vand.u32 %v2834, 4294901760
    %v3155 = vsub.f32 %v2834, %v3154
    %v3156 = vand.u32 %v3155, 4294901760
    %3157 = vmatmul.mubr.f32.gmra.mrb[0].mxu0 %v3156
    %v3158 = vpop.f32.mrb[0].mxu0
    %v3159 = vadd.f32 %v3078, %v3158
    %v3160 = vpop.f32.mrb[0].mxu0
    %3161 = vmatprep.mubr.f32.mxu0 0.0
    %v3162 = vand.u32 %v2837, 4294901760
    %v3163 = vsub.f32 %v2837, %v3162
    %v3164 = vand.u32 %v3163, 4294901760
    %3165 = vmatmul.mubr.f32.gmra.mrb[0].mxu0 %v3164
    %v3166 = vpop.f32.mrb[0].mxu0
    %v3167 = vadd.f32 %v3085, %v3166
    %v3168 = vpop.f32.mrb[0].mxu0
    %3169 = vdwg.mxu0
    %3170 = vmatprep.subr.mxu0 0.0
    %v3171 = vand.u32 %v2831, 4294901760
    %v3172 = vsub.f32 %v2831, %v3171
    %v3173 = vand.u32 %v3172, 4294901760
    %3174 = vmatpush1.msra.mxu0 %v3173
    %3175 = vmatprep.subr.mxu0 0.0
    %3176 = vmatpush1.msra.mxu0 0.0
    %3177 = vmatprep.subr.mxu0 0.0
    %3178 = vmatpush1.msra.mxu0 0.0
    %3179 = vmatprep.subr.mxu0 0.0
    %3180 = vmatpush1.msra.mxu0 0.0
    %3181 = vmatprep.subr.mxu0 0.0
    %3182 = vmatpush1.msra.mxu0 0.0
    %3183 = vmatprep.subr.mxu0 0.0
    %3184 = vmatpush1.msra.mxu0 0.0
    %3185 = vmatprep.subr.mxu0 0.0
    %3186 = vmatpush1.msra.mxu0 0.0
    %3187 = vmatprep.subr.mxu0 0.0
    %3188 = vmatpush1.msra.mxu0 0.0
    %3189 = vmatprep.subr.mxu0 0.0
    %3190 = vmatpush1.msra.mxu0 0.0
    %3191 = vmatprep.subr.mxu0 0.0
    %3192 = vmatpush1.msra.mxu0 0.0
    %3193 = vmatprep.subr.mxu0 0.0
    %3194 = vmatpush1.msra.mxu0 0.0
    %3195 = vmatprep.subr.mxu0 0.0
    %3196 = vmatpush1.msra.mxu0 0.0
    %3197 = vmatprep.subr.mxu0 0.0
    %3198 = vmatpush1.msra.mxu0 0.0
    %3199 = vmatprep.subr.mxu0 0.0
    %3200 = vmatpush1.msra.mxu0 0.0
    %3201 = vmatprep.subr.mxu0 0.0
    %3202 = vmatpush1.msra.mxu0 0.0
    %3203 = vmatprep.subr.mxu0 0.0
    %3204 = vmatpush1.msra.mxu0 0.0
    %3205 = vmatprep.subr.mxu0 0.0
    %3206 = vmatpush1.msra.mxu0 0.0
    %3207 = vmatprep.subr.mxu0 0.0
    %3208 = vmatpush1.msra.mxu0 0.0
    %3209 = vmatprep.subr.mxu0 0.0
    %3210 = vmatpush1.msra.mxu0 0.0
    %3211 = vmatprep.subr.mxu0 0.0
    %3212 = vmatpush1.msra.mxu0 0.0
    %3213 = vmatprep.subr.mxu0 0.0
    %3214 = vmatpush1.msra.mxu0 0.0
    %3215 = vmatprep.subr.mxu0 0.0
    %3216 = vmatpush1.msra.mxu0 0.0
    %3217 = vmatprep.subr.mxu0 0.0
    %3218 = vmatpush1.msra.mxu0 0.0
    %3219 = vmatprep.subr.mxu0 0.0
    %3220 = vmatpush1.msra.mxu0 0.0
    %3221 = vmatprep.subr.mxu0 0.0
    %3222 = vmatpush1.msra.mxu0 0.0
    %3223 = vmatprep.subr.mxu0 0.0
    %3224 = vmatpush1.msra.mxu0 0.0
    %3225 = vmatprep.subr.mxu0 0.0
    %3226 = vmatpush1.msra.mxu0 0.0
    %3227 = vmatprep.subr.mxu0 0.0
    %3228 = vmatpush1.msra.mxu0 0.0
    %3229 = vmatprep.subr.mxu0 0.0
    %3230 = vmatpush1.msra.mxu0 0.0
    %3231 = vmatprep.subr.mxu0 0.0
    %3232 = vmatpush1.msra.mxu0 0.0
    %3233 = vmatprep.subr.mxu0 0.0
    %3234 = vmatpush1.msra.mxu0 0.0
    %3235 = vmatprep.subr.mxu0 0.0
    %3236 = vmatpush1.msra.mxu0 0.0
    %3237 = vmatprep.mubr.f32.mxu0 0.0
    %v3238 = vand.u32 %v2834, 4294901760
    %3239 = vmatmul.mubr.f32.gmra.mrb[0].mxu0 %v3238
    %v3240 = vpop.f32.mrb[0].mxu0
    %v3241 = vadd.f32 %v3159, %v3240
    %v3242 = vpop.f32.mrb[0].mxu0
    %3243 = vmatprep.mubr.f32.mxu0 0.0
    %v3244 = vand.u32 %v2837, 4294901760
    %3245 = vmatmul.mubr.f32.gmra.mrb[0].mxu0 %v3244
    %v3246 = vpop.f32.mrb[0].mxu0
    %v3247 = vadd.f32 %v3167, %v3246
    %v3248 = vpop.f32.mrb[0].mxu0
    %3249 = vdwg.mxu0
    %3250 = vmatprep.subr.mxu0 0.0
    %v3251 = vand.u32 %v2831, 4294901760
    %3252 = vmatpush1.msra.mxu0 %v3251
    %3253 = vmatprep.subr.mxu0 0.0
    %3254 = vmatpush1.msra.mxu0 0.0
    %3255 = vmatprep.subr.mxu0 0.0
    %3256 = vmatpush1.msra.mxu0 0.0
    %3257 = vmatprep.subr.mxu0 0.0
    %3258 = vmatpush1.msra.mxu0 0.0
    %3259 = vmatprep.subr.mxu0 0.0
    %3260 = vmatpush1.msra.mxu0 0.0
    %3261 = vmatprep.subr.mxu0 0.0
    %3262 = vmatpush1.msra.mxu0 0.0
    %3263 = vmatprep.subr.mxu0 0.0
    %3264 = vmatpush1.msra.mxu0 0.0
    %3265 = vmatprep.subr.mxu0 0.0
    %3266 = vmatpush1.msra.mxu0 0.0
    %3267 = vmatprep.subr.mxu0 0.0
    %3268 = vmatpush1.msra.mxu0 0.0
    %3269 = vmatprep.subr.mxu0 0.0
    %3270 = vmatpush1.msra.mxu0 0.0
    %3271 = vmatprep.subr.mxu0 0.0
    %3272 = vmatpush1.msra.mxu0 0.0
    %3273 = vmatprep.subr.mxu0 0.0
    %3274 = vmatpush1.msra.mxu0 0.0
    %3275 = vmatprep.subr.mxu0 0.0
    %3276 = vmatpush1.msra.mxu0 0.0
    %3277 = vmatprep.subr.mxu0 0.0
    %3278 = vmatpush1.msra.mxu0 0.0
    %3279 = vmatprep.subr.mxu0 0.0
    %3280 = vmatpush1.msra.mxu0 0.0
    %3281 = vmatprep.subr.mxu0 0.0
    %3282 = vmatpush1.msra.mxu0 0.0
    %3283 = vmatprep.subr.mxu0 0.0
    %3284 = vmatpush1.msra.mxu0 0.0
    %3285 = vmatprep.subr.mxu0 0.0
    %3286 = vmatpush1.msra.mxu0 0.0
    %3287 = vmatprep.subr.mxu0 0.0
    %3288 = vmatpush1.msra.mxu0 0.0
    %3289 = vmatprep.subr.mxu0 0.0
    %3290 = vmatpush1.msra.mxu0 0.0
    %3291 = vmatprep.subr.mxu0 0.0
    %3292 = vmatpush1.msra.mxu0 0.0
    %3293 = vmatprep.subr.mxu0 0.0
    %3294 = vmatpush1.msra.mxu0 0.0
    %3295 = vmatprep.subr.mxu0 0.0
    %3296 = vmatpush1.msra.mxu0 0.0
    %3297 = vmatprep.subr.mxu0 0.0
    %3298 = vmatpush1.msra.mxu0 0.0
    %3299 = vmatprep.subr.mxu0 0.0
    %3300 = vmatpush1.msra.mxu0 0.0
    %3301 = vmatprep.subr.mxu0 0.0
    %3302 = vmatpush1.msra.mxu0 0.0
    %3303 = vmatprep.subr.mxu0 0.0
    %3304 = vmatpush1.msra.mxu0 0.0
    %3305 = vmatprep.subr.mxu0 0.0
    %3306 = vmatpush1.msra.mxu0 0.0
    %3307 = vmatprep.subr.mxu0 0.0
    %3308 = vmatpush1.msra.mxu0 0.0
    %3309 = vmatprep.subr.mxu0 0.0
    %3310 = vmatpush1.msra.mxu0 0.0
    %3311 = vmatprep.subr.mxu0 0.0
    %3312 = vmatpush1.msra.mxu0 0.0
    %3313 = vmatprep.subr.mxu0 0.0
    %3314 = vmatpush1.msra.mxu0 0.0
    %3315 = vmatprep.mubr.f32.mxu0 0.0
    %v3316 = vand.u32 %v2834, 4294901760
    %3317 = vmatmul.mubr.f32.gmra.mrb[0].mxu0 %v3316
    %v3318 = vpop.f32.mrb[0].mxu0
    %v3319 = vadd.f32 %v3241, %v3318
    %v3320 = vpop.f32.mrb[0].mxu0
    %3321 = vmatprep.mubr.f32.mxu0 0.0
    %v3322 = vand.u32 %v2837, 4294901760
    %3323 = vmatmul.mubr.f32.gmra.mrb[0].mxu0 %v3322
    %v3324 = vpop.f32.mrb[0].mxu0
    %v3325 = vadd.f32 %v3247, %v3324
    %v3326 = vpop.f32.mrb[0].mxu0
    %3327 = vdwg.mxu0
    %v3328 = vld [vmem:[%s1 + $0x20] sm:$0xff]
    %v3329 = vld [vmem:[%s1 + $0x28] sm:$0xff]
    %v3331 = vsel %vm2308, %v3325, 0
    %3333 = vmatprep.subr.mxu0 0.0
    %v3334 = vand.u32 %v3329, 4294901760
    %3335 = vmatpush1.msra.mxu0 %v3334
    %3336 = vmatprep.subr.mxu0 0.0
    %3337 = vmatpush1.msra.mxu0 0.0
    %3338 = vmatprep.subr.mxu0 0.0
    %3339 = vmatpush1.msra.mxu0 0.0
    %3340 = vmatprep.subr.mxu0 0.0
    %3341 = vmatpush1.msra.mxu0 0.0
    %3342 = vmatprep.subr.mxu0 0.0
    %3343 = vmatpush1.msra.mxu0 0.0
    %3344 = vmatprep.subr.mxu0 0.0
    %3345 = vmatpush1.msra.mxu0 0.0
    %3346 = vmatprep.subr.mxu0 0.0
    %3347 = vmatpush1.msra.mxu0 0.0
    %3348 = vmatprep.subr.mxu0 0.0
    %3349 = vmatpush1.msra.mxu0 0.0
    %3350 = vmatprep.subr.mxu0 0.0
    %3351 = vmatpush1.msra.mxu0 0.0
    %3352 = vmatprep.subr.mxu0 0.0
    %3353 = vmatpush1.msra.mxu0 0.0
    %3354 = vmatprep.subr.mxu0 0.0
    %3355 = vmatpush1.msra.mxu0 0.0
    %3356 = vmatprep.subr.mxu0 0.0
    %3357 = vmatpush1.msra.mxu0 0.0
    %3358 = vmatprep.subr.mxu0 0.0
    %3359 = vmatpush1.msra.mxu0 0.0
    %3360 = vmatprep.subr.mxu0 0.0
    %3361 = vmatpush1.msra.mxu0 0.0
    %3362 = vmatprep.subr.mxu0 0.0
    %3363 = vmatpush1.msra.mxu0 0.0
    %3364 = vmatprep.subr.mxu0 0.0
    %3365 = vmatpush1.msra.mxu0 0.0
    %3366 = vmatprep.subr.mxu0 0.0
    %3367 = vmatpush1.msra.mxu0 0.0
    %3368 = vmatprep.subr.mxu0 0.0
    %3369 = vmatpush1.msra.mxu0 0.0
    %3370 = vmatprep.subr.mxu0 0.0
    %3371 = vmatpush1.msra.mxu0 0.0
    %3372 = vmatprep.subr.mxu0 0.0
    %3373 = vmatpush1.msra.mxu0 0.0
    %3374 = vmatprep.subr.mxu0 0.0
    %3375 = vmatpush1.msra.mxu0 0.0
    %3376 = vmatprep.subr.mxu0 0.0
    %3377 = vmatpush1.msra.mxu0 0.0
    %3378 = vmatprep.subr.mxu0 0.0
    %3379 = vmatpush1.msra.mxu0 0.0
    %3380 = vmatprep.subr.mxu0 0.0
    %3381 = vmatpush1.msra.mxu0 0.0
    %3382 = vmatprep.subr.mxu0 0.0
    %3383 = vmatpush1.msra.mxu0 0.0
    %3384 = vmatprep.subr.mxu0 0.0
    %3385 = vmatpush1.msra.mxu0 0.0
    %3386 = vmatprep.subr.mxu0 0.0
    %3387 = vmatpush1.msra.mxu0 0.0
    %3388 = vmatprep.subr.mxu0 0.0
    %3389 = vmatpush1.msra.mxu0 0.0
    %3390 = vmatprep.subr.mxu0 0.0
    %3391 = vmatpush1.msra.mxu0 0.0
    %3392 = vmatprep.subr.mxu0 0.0
    %3393 = vmatpush1.msra.mxu0 0.0
    %3394 = vmatprep.subr.mxu0 0.0
    %3395 = vmatpush1.msra.mxu0 0.0
    %3396 = vmatprep.subr.mxu0 0.0
    %3397 = vmatpush1.msra.mxu0 0.0
    %3398 = vmatprep.mubr.f32.mxu0 0.0
    %v3399 = vand.u32 %v3331, 4294901760
    %v3400 = vsub.f32 %v3331, %v3399
    %v3401 = vand.u32 %v3400, 4294901760
    %v3402 = vsub.f32 %v3400, %v3401
    %v3403 = vand.u32 %v3402, 4294901760
    %3404 = vmatmul.mubr.f32.gmra.mrb[0].mxu0 %v3403
    %v3405 = vpop.f32.mrb[0].mxu0
    %v3406 = vadd.f32 0.0, %v3405
    %v3407 = vpop.f32.mrb[0].mxu0
    %3408 = vdwg.mxu0
    %3409 = vmatprep.subr.mxu0 0.0
    %v3410 = vand.u32 %v3329, 4294901760
    %v3411 = vsub.f32 %v3329, %v3410
    %v3412 = vand.u32 %v3411, 4294901760
    %v3413 = vsub.f32 %v3411, %v3412
    %v3414 = vand.u32 %v3413, 4294901760
    %3415 = vmatpush1.msra.mxu0 %v3414
    %3416 = vmatprep.subr.mxu0 0.0
    %3417 = vmatpush1.msra.mxu0 0.0
    %3418 = vmatprep.subr.mxu0 0.0
    %3419 = vmatpush1.msra.mxu0 0.0
    %3420 = vmatprep.subr.mxu0 0.0
    %3421 = vmatpush1.msra.mxu0 0.0
    %3422 = vmatprep.subr.mxu0 0.0
    %3423 = vmatpush1.msra.mxu0 0.0
    %3424 = vmatprep.subr.mxu0 0.0
    %3425 = vmatpush1.msra.mxu0 0.0
    %3426 = vmatprep.subr.mxu0 0.0
    %3427 = vmatpush1.msra.mxu0 0.0
    %3428 = vmatprep.subr.mxu0 0.0
    %3429 = vmatpush1.msra.mxu0 0.0
    %3430 = vmatprep.subr.mxu0 0.0
    %3431 = vmatpush1.msra.mxu0 0.0
    %3432 = vmatprep.subr.mxu0 0.0
    %3433 = vmatpush1.msra.mxu0 0.0
    %3434 = vmatprep.subr.mxu0 0.0
    %3435 = vmatpush1.msra.mxu0 0.0
    %3436 = vmatprep.subr.mxu0 0.0
    %3437 = vmatpush1.msra.mxu0 0.0
    %3438 = vmatprep.subr.mxu0 0.0
    %3439 = vmatpush1.msra.mxu0 0.0
    %3440 = vmatprep.subr.mxu0 0.0
    %3441 = vmatpush1.msra.mxu0 0.0
    %3442 = vmatprep.subr.mxu0 0.0
    %3443 = vmatpush1.msra.mxu0 0.0
    %3444 = vmatprep.subr.mxu0 0.0
    %3445 = vmatpush1.msra.mxu0 0.0
    %3446 = vmatprep.subr.mxu0 0.0
    %3447 = vmatpush1.msra.mxu0 0.0
    %3448 = vmatprep.subr.mxu0 0.0
    %3449 = vmatpush1.msra.mxu0 0.0
    %3450 = vmatprep.subr.mxu0 0.0
    %3451 = vmatpush1.msra.mxu0 0.0
    %3452 = vmatprep.subr.mxu0 0.0
    %3453 = vmatpush1.msra.mxu0 0.0
    %3454 = vmatprep.subr.mxu0 0.0
    %3455 = vmatpush1.msra.mxu0 0.0
    %3456 = vmatprep.subr.mxu0 0.0
    %3457 = vmatpush1.msra.mxu0 0.0
    %3458 = vmatprep.subr.mxu0 0.0
    %3459 = vmatpush1.msra.mxu0 0.0
    %3460 = vmatprep.subr.mxu0 0.0
    %3461 = vmatpush1.msra.mxu0 0.0
    %3462 = vmatprep.subr.mxu0 0.0
    %3463 = vmatpush1.msra.mxu0 0.0
    %3464 = vmatprep.subr.mxu0 0.0
    %3465 = vmatpush1.msra.mxu0 0.0
    %3466 = vmatprep.subr.mxu0 0.0
    %3467 = vmatpush1.msra.mxu0 0.0
    %3468 = vmatprep.subr.mxu0 0.0
    %3469 = vmatpush1.msra.mxu0 0.0
    %3470 = vmatprep.subr.mxu0 0.0
    %3471 = vmatpush1.msra.mxu0 0.0
    %3472 = vmatprep.subr.mxu0 0.0
    %3473 = vmatpush1.msra.mxu0 0.0
    %3474 = vmatprep.subr.mxu0 0.0
    %3475 = vmatpush1.msra.mxu0 0.0
    %3476 = vmatprep.subr.mxu0 0.0
    %3477 = vmatpush1.msra.mxu0 0.0
    %3478 = vmatprep.mubr.f32.mxu0 0.0
    %v3479 = vand.u32 %v3331, 4294901760
    %3480 = vmatmul.mubr.f32.gmra.mrb[0].mxu0 %v3479
    %v3481 = vpop.f32.mrb[0].mxu0
    %v3482 = vadd.f32 %v3406, %v3481
    %v3483 = vpop.f32.mrb[0].mxu0
    %3484 = vdwg.mxu0
    %3485 = vmatprep.subr.mxu0 0.0
    %v3486 = vand.u32 %v3329, 4294901760
    %v3487 = vsub.f32 %v3329, %v3486
    %3488 = vmatpush1.msra.mxu0 %v3487
    %3489 = vmatprep.subr.mxu0 0.0
    %3490 = vmatpush1.msra.mxu0 0.0
    %3491 = vmatprep.subr.mxu0 0.0
    %3492 = vmatpush1.msra.mxu0 0.0
    %3493 = vmatprep.subr.mxu0 0.0
    %3494 = vmatpush1.msra.mxu0 0.0
    %3495 = vmatprep.subr.mxu0 0.0
    %3496 = vmatpush1.msra.mxu0 0.0
    %3497 = vmatprep.subr.mxu0 0.0
    %3498 = vmatpush1.msra.mxu0 0.0
    %3499 = vmatprep.subr.mxu0 0.0
    %3500 = vmatpush1.msra.mxu0 0.0
    %3501 = vmatprep.subr.mxu0 0.0
    %3502 = vmatpush1.msra.mxu0 0.0
    %3503 = vmatprep.subr.mxu0 0.0
    %3504 = vmatpush1.msra.mxu0 0.0
    %3505 = vmatprep.subr.mxu0 0.0
    %3506 = vmatpush1.msra.mxu0 0.0
    %3507 = vmatprep.subr.mxu0 0.0
    %3508 = vmatpush1.msra.mxu0 0.0
    %3509 = vmatprep.subr.mxu0 0.0
    %3510 = vmatpush1.msra.mxu0 0.0
    %3511 = vmatprep.subr.mxu0 0.0
    %3512 = vmatpush1.msra.mxu0 0.0
    %3513 = vmatprep.subr.mxu0 0.0
    %3514 = vmatpush1.msra.mxu0 0.0
    %3515 = vmatprep.subr.mxu0 0.0
    %3516 = vmatpush1.msra.mxu0 0.0
    %3517 = vmatprep.subr.mxu0 0.0
    %3518 = vmatpush1.msra.mxu0 0.0
    %3519 = vmatprep.subr.mxu0 0.0
    %3520 = vmatpush1.msra.mxu0 0.0
    %3521 = vmatprep.subr.mxu0 0.0
    %3522 = vmatpush1.msra.mxu0 0.0
    %3523 = vmatprep.subr.mxu0 0.0
    %3524 = vmatpush1.msra.mxu0 0.0
    %3525 = vmatprep.subr.mxu0 0.0
    %3526 = vmatpush1.msra.mxu0 0.0
    %3527 = vmatprep.subr.mxu0 0.0
    %3528 = vmatpush1.msra.mxu0 0.0
    %3529 = vmatprep.subr.mxu0 0.0
    %3530 = vmatpush1.msra.mxu0 0.0
    %3531 = vmatprep.subr.mxu0 0.0
    %3532 = vmatpush1.msra.mxu0 0.0
    %3533 = vmatprep.subr.mxu0 0.0
    %3534 = vmatpush1.msra.mxu0 0.0
    %3535 = vmatprep.subr.mxu0 0.0
    %3536 = vmatpush1.msra.mxu0 0.0
    %3537 = vmatprep.subr.mxu0 0.0
    %3538 = vmatpush1.msra.mxu0 0.0
    %3539 = vmatprep.subr.mxu0 0.0
    %3540 = vmatpush1.msra.mxu0 0.0
    %3541 = vmatprep.subr.mxu0 0.0
    %3542 = vmatpush1.msra.mxu0 0.0
    %3543 = vmatprep.subr.mxu0 0.0
    %3544 = vmatpush1.msra.mxu0 0.0
    %3545 = vmatprep.subr.mxu0 0.0
    %3546 = vmatpush1.msra.mxu0 0.0
    %3547 = vmatprep.subr.mxu0 0.0
    %3548 = vmatpush1.msra.mxu0 0.0
    %3549 = vmatprep.subr.mxu0 0.0
    %3550 = vmatpush1.msra.mxu0 0.0
    %3551 = vmatprep.mubr.f32.mxu0 0.0
    %v3552 = vand.u32 %v3331, 4294901760
    %v3553 = vsub.f32 %v3331, %v3552
    %3554 = vmatmul.mubr.f32.gmra.mrb[0].mxu0 %v3553
    %v3555 = vpop.f32.mrb[0].mxu0
    %v3556 = vadd.f32 %v3482, %v3555
    %v3557 = vpop.f32.mrb[0].mxu0
    %3558 = vdwg.mxu0
    %3559 = vmatprep.subr.mxu0 0.0
    %v3560 = vand.u32 %v3329, 4294901760
    %3561 = vmatpush1.msra.mxu0 %v3560
    %3562 = vmatprep.subr.mxu0 0.0
    %3563 = vmatpush1.msra.mxu0 0.0
    %3564 = vmatprep.subr.mxu0 0.0
    %3565 = vmatpush1.msra.mxu0 0.0
    %3566 = vmatprep.subr.mxu0 0.0
    %3567 = vmatpush1.msra.mxu0 0.0
    %3568 = vmatprep.subr.mxu0 0.0
    %3569 = vmatpush1.msra.mxu0 0.0
    %3570 = vmatprep.subr.mxu0 0.0
    %3571 = vmatpush1.msra.mxu0 0.0
    %3572 = vmatprep.subr.mxu0 0.0
    %3573 = vmatpush1.msra.mxu0 0.0
    %3574 = vmatprep.subr.mxu0 0.0
    %3575 = vmatpush1.msra.mxu0 0.0
    %3576 = vmatprep.subr.mxu0 0.0
    %3577 = vmatpush1.msra.mxu0 0.0
    %3578 = vmatprep.subr.mxu0 0.0
    %3579 = vmatpush1.msra.mxu0 0.0
    %3580 = vmatprep.subr.mxu0 0.0
    %3581 = vmatpush1.msra.mxu0 0.0
    %3582 = vmatprep.subr.mxu0 0.0
    %3583 = vmatpush1.msra.mxu0 0.0
    %3584 = vmatprep.subr.mxu0 0.0
    %3585 = vmatpush1.msra.mxu0 0.0
    %3586 = vmatprep.subr.mxu0 0.0
    %3587 = vmatpush1.msra.mxu0 0.0
    %3588 = vmatprep.subr.mxu0 0.0
    %3589 = vmatpush1.msra.mxu0 0.0
    %3590 = vmatprep.subr.mxu0 0.0
    %3591 = vmatpush1.msra.mxu0 0.0
    %3592 = vmatprep.subr.mxu0 0.0
    %3593 = vmatpush1.msra.mxu0 0.0
    %3594 = vmatprep.subr.mxu0 0.0
    %3595 = vmatpush1.msra.mxu0 0.0
    %3596 = vmatprep.subr.mxu0 0.0
    %3597 = vmatpush1.msra.mxu0 0.0
    %3598 = vmatprep.subr.mxu0 0.0
    %3599 = vmatpush1.msra.mxu0 0.0
    %3600 = vmatprep.subr.mxu0 0.0
    %3601 = vmatpush1.msra.mxu0 0.0
    %3602 = vmatprep.subr.mxu0 0.0
    %3603 = vmatpush1.msra.mxu0 0.0
    %3604 = vmatprep.subr.mxu0 0.0
    %3605 = vmatpush1.msra.mxu0 0.0
    %3606 = vmatprep.subr.mxu0 0.0
    %3607 = vmatpush1.msra.mxu0 0.0
    %3608 = vmatprep.subr.mxu0 0.0
    %3609 = vmatpush1.msra.mxu0 0.0
    %3610 = vmatprep.subr.mxu0 0.0
    %3611 = vmatpush1.msra.mxu0 0.0
    %3612 = vmatprep.subr.mxu0 0.0
    %3613 = vmatpush1.msra.mxu0 0.0
    %3614 = vmatprep.subr.mxu0 0.0
    %3615 = vmatpush1.msra.mxu0 0.0
    %3616 = vmatprep.subr.mxu0 0.0
    %3617 = vmatpush1.msra.mxu0 0.0
    %3618 = vmatprep.subr.mxu0 0.0
    %3619 = vmatpush1.msra.mxu0 0.0
    %3620 = vmatprep.subr.mxu0 0.0
    %3621 = vmatpush1.msra.mxu0 0.0
    %3622 = vmatprep.subr.mxu0 0.0
    %3623 = vmatpush1.msra.mxu0 0.0
    %3624 = vmatprep.mubr.f32.mxu0 0.0
    %v3625 = vand.u32 %v3331, 4294901760
    %v3626 = vsub.f32 %v3331, %v3625
    %v3627 = vand.u32 %v3626, 4294901760
    %3628 = vmatmul.mubr.f32.gmra.mrb[0].mxu0 %v3627
    %v3629 = vpop.f32.mrb[0].mxu0
    %v3630 = vadd.f32 %v3556, %v3629
    %v3631 = vpop.f32.mrb[0].mxu0
    %3632 = vdwg.mxu0
    %3633 = vmatprep.subr.mxu0 0.0
    %v3634 = vand.u32 %v3329, 4294901760
    %v3635 = vsub.f32 %v3329, %v3634
    %v3636 = vand.u32 %v3635, 4294901760
    %3637 = vmatpush1.msra.mxu0 %v3636
    %3638 = vmatprep.subr.mxu0 0.0
    %3639 = vmatpush1.msra.mxu0 0.0
    %3640 = vmatprep.subr.mxu0 0.0
    %3641 = vmatpush1.msra.mxu0 0.0
    %3642 = vmatprep.subr.mxu0 0.0
    %3643 = vmatpush1.msra.mxu0 0.0
    %3644 = vmatprep.subr.mxu0 0.0
    %3645 = vmatpush1.msra.mxu0 0.0
    %3646 = vmatprep.subr.mxu0 0.0
    %3647 = vmatpush1.msra.mxu0 0.0
    %3648 = vmatprep.subr.mxu0 0.0
    %3649 = vmatpush1.msra.mxu0 0.0
    %3650 = vmatprep.subr.mxu0 0.0
    %3651 = vmatpush1.msra.mxu0 0.0
    %3652 = vmatprep.subr.mxu0 0.0
    %3653 = vmatpush1.msra.mxu0 0.0
    %3654 = vmatprep.subr.mxu0 0.0
    %3655 = vmatpush1.msra.mxu0 0.0
    %3656 = vmatprep.subr.mxu0 0.0
    %3657 = vmatpush1.msra.mxu0 0.0
    %3658 = vmatprep.subr.mxu0 0.0
    %3659 = vmatpush1.msra.mxu0 0.0
    %3660 = vmatprep.subr.mxu0 0.0
    %3661 = vmatpush1.msra.mxu0 0.0
    %3662 = vmatprep.subr.mxu0 0.0
    %3663 = vmatpush1.msra.mxu0 0.0
    %3664 = vmatprep.subr.mxu0 0.0
    %3665 = vmatpush1.msra.mxu0 0.0
    %3666 = vmatprep.subr.mxu0 0.0
    %3667 = vmatpush1.msra.mxu0 0.0
    %3668 = vmatprep.subr.mxu0 0.0
    %3669 = vmatpush1.msra.mxu0 0.0
    %3670 = vmatprep.subr.mxu0 0.0
    %3671 = vmatpush1.msra.mxu0 0.0
    %3672 = vmatprep.subr.mxu0 0.0
    %3673 = vmatpush1.msra.mxu0 0.0
    %3674 = vmatprep.subr.mxu0 0.0
    %3675 = vmatpush1.msra.mxu0 0.0
    %3676 = vmatprep.subr.mxu0 0.0
    %3677 = vmatpush1.msra.mxu0 0.0
    %3678 = vmatprep.subr.mxu0 0.0
    %3679 = vmatpush1.msra.mxu0 0.0
    %3680 = vmatprep.subr.mxu0 0.0
    %3681 = vmatpush1.msra.mxu0 0.0
    %3682 = vmatprep.subr.mxu0 0.0
    %3683 = vmatpush1.msra.mxu0 0.0
    %3684 = vmatprep.subr.mxu0 0.0
    %3685 = vmatpush1.msra.mxu0 0.0
    %3686 = vmatprep.subr.mxu0 0.0
    %3687 = vmatpush1.msra.mxu0 0.0
    %3688 = vmatprep.subr.mxu0 0.0
    %3689 = vmatpush1.msra.mxu0 0.0
    %3690 = vmatprep.subr.mxu0 0.0
    %3691 = vmatpush1.msra.mxu0 0.0
    %3692 = vmatprep.subr.mxu0 0.0
    %3693 = vmatpush1.msra.mxu0 0.0
    %3694 = vmatprep.subr.mxu0 0.0
    %3695 = vmatpush1.msra.mxu0 0.0
    %3696 = vmatprep.subr.mxu0 0.0
    %3697 = vmatpush1.msra.mxu0 0.0
    %3698 = vmatprep.subr.mxu0 0.0
    %3699 = vmatpush1.msra.mxu0 0.0
    %3700 = vmatprep.mubr.f32.mxu0 0.0
    %v3701 = vand.u32 %v3331, 4294901760
    %3702 = vmatmul.mubr.f32.gmra.mrb[0].mxu0 %v3701
    %v3703 = vpop.f32.mrb[0].mxu0
    %v3704 = vadd.f32 %v3630, %v3703
    %v3705 = vpop.f32.mrb[0].mxu0
    %3706 = vdwg.mxu0
    %3707 = vmatprep.subr.mxu0 0.0
    %v3708 = vand.u32 %v3329, 4294901760
    %3709 = vmatpush1.msra.mxu0 %v3708
    %3710 = vmatprep.subr.mxu0 0.0
    %3711 = vmatpush1.msra.mxu0 0.0
    %3712 = vmatprep.subr.mxu0 0.0
    %3713 = vmatpush1.msra.mxu0 0.0
    %3714 = vmatprep.subr.mxu0 0.0
    %3715 = vmatpush1.msra.mxu0 0.0
    %3716 = vmatprep.subr.mxu0 0.0
    %3717 = vmatpush1.msra.mxu0 0.0
    %3718 = vmatprep.subr.mxu0 0.0
    %3719 = vmatpush1.msra.mxu0 0.0
    %3720 = vmatprep.subr.mxu0 0.0
    %3721 = vmatpush1.msra.mxu0 0.0
    %3722 = vmatprep.subr.mxu0 0.0
    %3723 = vmatpush1.msra.mxu0 0.0
    %3724 = vmatprep.subr.mxu0 0.0
    %3725 = vmatpush1.msra.mxu0 0.0
    %3726 = vmatprep.subr.mxu0 0.0
    %3727 = vmatpush1.msra.mxu0 0.0
    %3728 = vmatprep.subr.mxu0 0.0
    %3729 = vmatpush1.msra.mxu0 0.0
    %3730 = vmatprep.subr.mxu0 0.0
    %3731 = vmatpush1.msra.mxu0 0.0
    %3732 = vmatprep.subr.mxu0 0.0
    %3733 = vmatpush1.msra.mxu0 0.0
    %3734 = vmatprep.subr.mxu0 0.0
    %3735 = vmatpush1.msra.mxu0 0.0
    %3736 = vmatprep.subr.mxu0 0.0
    %3737 = vmatpush1.msra.mxu0 0.0
    %3738 = vmatprep.subr.mxu0 0.0
    %3739 = vmatpush1.msra.mxu0 0.0
    %3740 = vmatprep.subr.mxu0 0.0
    %3741 = vmatpush1.msra.mxu0 0.0
    %3742 = vmatprep.subr.mxu0 0.0
    %3743 = vmatpush1.msra.mxu0 0.0
    %3744 = vmatprep.subr.mxu0 0.0
    %3745 = vmatpush1.msra.mxu0 0.0
    %3746 = vmatprep.subr.mxu0 0.0
    %3747 = vmatpush1.msra.mxu0 0.0
    %3748 = vmatprep.subr.mxu0 0.0
    %3749 = vmatpush1.msra.mxu0 0.0
    %3750 = vmatprep.subr.mxu0 0.0
    %3751 = vmatpush1.msra.mxu0 0.0
    %3752 = vmatprep.subr.mxu0 0.0
    %3753 = vmatpush1.msra.mxu0 0.0
    %3754 = vmatprep.subr.mxu0 0.0
    %3755 = vmatpush1.msra.mxu0 0.0
    %3756 = vmatprep.subr.mxu0 0.0
    %3757 = vmatpush1.msra.mxu0 0.0
    %3758 = vmatprep.subr.mxu0 0.0
    %3759 = vmatpush1.msra.mxu0 0.0
    %3760 = vmatprep.subr.mxu0 0.0
    %3761 = vmatpush1.msra.mxu0 0.0
    %3762 = vmatprep.subr.mxu0 0.0
    %3763 = vmatpush1.msra.mxu0 0.0
    %3764 = vmatprep.subr.mxu0 0.0
    %3765 = vmatpush1.msra.mxu0 0.0
    %3766 = vmatprep.subr.mxu0 0.0
    %3767 = vmatpush1.msra.mxu0 0.0
    %3768 = vmatprep.subr.mxu0 0.0
    %3769 = vmatpush1.msra.mxu0 0.0
    %3770 = vmatprep.subr.mxu0 0.0
    %3771 = vmatpush1.msra.mxu0 0.0
    %3772 = vmatprep.mubr.f32.mxu0 0.0
    %v3773 = vand.u32 %v3331, 4294901760
    %3774 = vmatmul.mubr.f32.gmra.mrb[0].mxu0 %v3773
    %v3775 = vpop.f32.mrb[0].mxu0
    %v3776 = vadd.f32 %v3704, %v3775
    %v3777 = vpop.f32.mrb[0].mxu0
    %3778 = vdwg.mxu0
    %v3780 = vsel %vm2308, %v3319, 0
    %3782 = vmatprep.subr.mxu0 0.0
    %v3783 = vand.u32 %v3328, 4294901760
    %3784 = vmatpush1.msra.mxu0 %v3783
    %3785 = vmatprep.subr.mxu0 0.0
    %3786 = vmatpush1.msra.mxu0 0.0
    %3787 = vmatprep.subr.mxu0 0.0
    %3788 = vmatpush1.msra.mxu0 0.0
    %3789 = vmatprep.subr.mxu0 0.0
    %3790 = vmatpush1.msra.mxu0 0.0
    %3791 = vmatprep.subr.mxu0 0.0
    %3792 = vmatpush1.msra.mxu0 0.0
    %3793 = vmatprep.subr.mxu0 0.0
    %3794 = vmatpush1.msra.mxu0 0.0
    %3795 = vmatprep.subr.mxu0 0.0
    %3796 = vmatpush1.msra.mxu0 0.0
    %3797 = vmatprep.subr.mxu0 0.0
    %3798 = vmatpush1.msra.mxu0 0.0
    %3799 = vmatprep.subr.mxu0 0.0
    %3800 = vmatpush1.msra.mxu0 0.0
    %3801 = vmatprep.subr.mxu0 0.0
    %3802 = vmatpush1.msra.mxu0 0.0
    %3803 = vmatprep.subr.mxu0 0.0
    %3804 = vmatpush1.msra.mxu0 0.0
    %3805 = vmatprep.subr.mxu0 0.0
    %3806 = vmatpush1.msra.mxu0 0.0
    %3807 = vmatprep.subr.mxu0 0.0
    %3808 = vmatpush1.msra.mxu0 0.0
    %3809 = vmatprep.subr.mxu0 0.0
    %3810 = vmatpush1.msra.mxu0 0.0
    %3811 = vmatprep.subr.mxu0 0.0
    %3812 = vmatpush1.msra.mxu0 0.0
    %3813 = vmatprep.subr.mxu0 0.0
    %3814 = vmatpush1.msra.mxu0 0.0
    %3815 = vmatprep.subr.mxu0 0.0
    %3816 = vmatpush1.msra.mxu0 0.0
    %3817 = vmatprep.subr.mxu0 0.0
    %3818 = vmatpush1.msra.mxu0 0.0
    %3819 = vmatprep.subr.mxu0 0.0
    %3820 = vmatpush1.msra.mxu0 0.0
    %3821 = vmatprep.subr.mxu0 0.0
    %3822 = vmatpush1.msra.mxu0 0.0
    %3823 = vmatprep.subr.mxu0 0.0
    %3824 = vmatpush1.msra.mxu0 0.0
    %3825 = vmatprep.subr.mxu0 0.0
    %3826 = vmatpush1.msra.mxu0 0.0
    %3827 = vmatprep.subr.mxu0 0.0
    %3828 = vmatpush1.msra.mxu0 0.0
    %3829 = vmatprep.subr.mxu0 0.0
    %3830 = vmatpush1.msra.mxu0 0.0
    %3831 = vmatprep.subr.mxu0 0.0
    %3832 = vmatpush1.msra.mxu0 0.0
    %3833 = vmatprep.subr.mxu0 0.0
    %3834 = vmatpush1.msra.mxu0 0.0
    %3835 = vmatprep.subr.mxu0 0.0
    %3836 = vmatpush1.msra.mxu0 0.0
    %3837 = vmatprep.subr.mxu0 0.0
    %3838 = vmatpush1.msra.mxu0 0.0
    %3839 = vmatprep.subr.mxu0 0.0
    %3840 = vmatpush1.msra.mxu0 0.0
    %3841 = vmatprep.subr.mxu0 0.0
    %3842 = vmatpush1.msra.mxu0 0.0
    %3843 = vmatprep.subr.mxu0 0.0
    %3844 = vmatpush1.msra.mxu0 0.0
    %3845 = vmatprep.subr.mxu0 0.0
    %3846 = vmatpush1.msra.mxu0 0.0
    %3847 = vmatprep.mubr.f32.mxu0 0.0
    %v3848 = vand.u32 %v3780, 4294901760
    %v3849 = vsub.f32 %v3780, %v3848
    %v3850 = vand.u32 %v3849, 4294901760
    %v3851 = vsub.f32 %v3849, %v3850
    %v3852 = vand.u32 %v3851, 4294901760
    %3853 = vmatmul.mubr.f32.gmra.mrb[0].mxu0 %v3852
    %v3854 = vpop.f32.mrb[0].mxu0
    %v3855 = vadd.f32 %v3776, %v3854
    %v3856 = vpop.f32.mrb[0].mxu0
    %3857 = vdwg.mxu0
    %3858 = vmatprep.subr.mxu0 0.0
    %v3859 = vand.u32 %v3328, 4294901760
    %v3860 = vsub.f32 %v3328, %v3859
    %v3861 = vand.u32 %v3860, 4294901760
    %v3862 = vsub.f32 %v3860, %v3861
    %v3863 = vand.u32 %v3862, 4294901760
    %3864 = vmatpush1.msra.mxu0 %v3863
    %3865 = vmatprep.subr.mxu0 0.0
    %3866 = vmatpush1.msra.mxu0 0.0
    %3867 = vmatprep.subr.mxu0 0.0
    %3868 = vmatpush1.msra.mxu0 0.0
    %3869 = vmatprep.subr.mxu0 0.0
    %3870 = vmatpush1.msra.mxu0 0.0
    %3871 = vmatprep.subr.mxu0 0.0
    %3872 = vmatpush1.msra.mxu0 0.0
    %3873 = vmatprep.subr.mxu0 0.0
    %3874 = vmatpush1.msra.mxu0 0.0
    %3875 = vmatprep.subr.mxu0 0.0
    %3876 = vmatpush1.msra.mxu0 0.0
    %3877 = vmatprep.subr.mxu0 0.0
    %3878 = vmatpush1.msra.mxu0 0.0
    %3879 = vmatprep.subr.mxu0 0.0
    %3880 = vmatpush1.msra.mxu0 0.0
    %3881 = vmatprep.subr.mxu0 0.0
    %3882 = vmatpush1.msra.mxu0 0.0
    %3883 = vmatprep.subr.mxu0 0.0
    %3884 = vmatpush1.msra.mxu0 0.0
    %3885 = vmatprep.subr.mxu0 0.0
    %3886 = vmatpush1.msra.mxu0 0.0
    %3887 = vmatprep.subr.mxu0 0.0
    %3888 = vmatpush1.msra.mxu0 0.0
    %3889 = vmatprep.subr.mxu0 0.0
    %3890 = vmatpush1.msra.mxu0 0.0
    %3891 = vmatprep.subr.mxu0 0.0
    %3892 = vmatpush1.msra.mxu0 0.0
    %3893 = vmatprep.subr.mxu0 0.0
    %3894 = vmatpush1.msra.mxu0 0.0
    %3895 = vmatprep.subr.mxu0 0.0
    %3896 = vmatpush1.msra.mxu0 0.0
    %3897 = vmatprep.subr.mxu0 0.0
    %3898 = vmatpush1.msra.mxu0 0.0
    %3899 = vmatprep.subr.mxu0 0.0
    %3900 = vmatpush1.msra.mxu0 0.0
    %3901 = vmatprep.subr.mxu0 0.0
    %3902 = vmatpush1.msra.mxu0 0.0
    %3903 = vmatprep.subr.mxu0 0.0
    %3904 = vmatpush1.msra.mxu0 0.0
    %3905 = vmatprep.subr.mxu0 0.0
    %3906 = vmatpush1.msra.mxu0 0.0
    %3907 = vmatprep.subr.mxu0 0.0
    %3908 = vmatpush1.msra.mxu0 0.0
    %3909 = vmatprep.subr.mxu0 0.0
    %3910 = vmatpush1.msra.mxu0 0.0
    %3911 = vmatprep.subr.mxu0 0.0
    %3912 = vmatpush1.msra.mxu0 0.0
    %3913 = vmatprep.subr.mxu0 0.0
    %3914 = vmatpush1.msra.mxu0 0.0
    %3915 = vmatprep.subr.mxu0 0.0
    %3916 = vmatpush1.msra.mxu0 0.0
    %3917 = vmatprep.subr.mxu0 0.0
    %3918 = vmatpush1.msra.mxu0 0.0
    %3919 = vmatprep.subr.mxu0 0.0
    %3920 = vmatpush1.msra.mxu0 0.0
    %3921 = vmatprep.subr.mxu0 0.0
    %3922 = vmatpush1.msra.mxu0 0.0
    %3923 = vmatprep.subr.mxu0 0.0
    %3924 = vmatpush1.msra.mxu0 0.0
    %3925 = vmatprep.subr.mxu0 0.0
    %3926 = vmatpush1.msra.mxu0 0.0
    %3927 = vmatprep.mubr.f32.mxu0 0.0
    %v3928 = vand.u32 %v3780, 4294901760
    %3929 = vmatmul.mubr.f32.gmra.mrb[0].mxu0 %v3928
    %v3930 = vpop.f32.mrb[0].mxu0
    %v3931 = vadd.f32 %v3855, %v3930
    %v3932 = vpop.f32.mrb[0].mxu0
    %3933 = vdwg.mxu0
    %3934 = vmatprep.subr.mxu0 0.0
    %v3935 = vand.u32 %v3328, 4294901760
    %v3936 = vsub.f32 %v3328, %v3935
    %3937 = vmatpush1.msra.mxu0 %v3936
    %3938 = vmatprep.subr.mxu0 0.0
    %3939 = vmatpush1.msra.mxu0 0.0
    %3940 = vmatprep.subr.mxu0 0.0
    %3941 = vmatpush1.msra.mxu0 0.0
    %3942 = vmatprep.subr.mxu0 0.0
    %3943 = vmatpush1.msra.mxu0 0.0
    %3944 = vmatprep.subr.mxu0 0.0
    %3945 = vmatpush1.msra.mxu0 0.0
    %3946 = vmatprep.subr.mxu0 0.0
    %3947 = vmatpush1.msra.mxu0 0.0
    %3948 = vmatprep.subr.mxu0 0.0
    %3949 = vmatpush1.msra.mxu0 0.0
    %3950 = vmatprep.subr.mxu0 0.0
    %3951 = vmatpush1.msra.mxu0 0.0
    %3952 = vmatprep.subr.mxu0 0.0
    %3953 = vmatpush1.msra.mxu0 0.0
    %3954 = vmatprep.subr.mxu0 0.0
    %3955 = vmatpush1.msra.mxu0 0.0
    %3956 = vmatprep.subr.mxu0 0.0
    %3957 = vmatpush1.msra.mxu0 0.0
    %3958 = vmatprep.subr.mxu0 0.0
    %3959 = vmatpush1.msra.mxu0 0.0
    %3960 = vmatprep.subr.mxu0 0.0
    %3961 = vmatpush1.msra.mxu0 0.0
    %3962 = vmatprep.subr.mxu0 0.0
    %3963 = vmatpush1.msra.mxu0 0.0
    %3964 = vmatprep.subr.mxu0 0.0
    %3965 = vmatpush1.msra.mxu0 0.0
    %3966 = vmatprep.subr.mxu0 0.0
    %3967 = vmatpush1.msra.mxu0 0.0
    %3968 = vmatprep.subr.mxu0 0.0
    %3969 = vmatpush1.msra.mxu0 0.0
    %3970 = vmatprep.subr.mxu0 0.0
    %3971 = vmatpush1.msra.mxu0 0.0
    %3972 = vmatprep.subr.mxu0 0.0
    %3973 = vmatpush1.msra.mxu0 0.0
    %3974 = vmatprep.subr.mxu0 0.0
    %3975 = vmatpush1.msra.mxu0 0.0
    %3976 = vmatprep.subr.mxu0 0.0
    %3977 = vmatpush1.msra.mxu0 0.0
    %3978 = vmatprep.subr.mxu0 0.0
    %3979 = vmatpush1.msra.mxu0 0.0
    %3980 = vmatprep.subr.mxu0 0.0
    %3981 = vmatpush1.msra.mxu0 0.0
    %3982 = vmatprep.subr.mxu0 0.0
    %3983 = vmatpush1.msra.mxu0 0.0
    %3984 = vmatprep.subr.mxu0 0.0
    %3985 = vmatpush1.msra.mxu0 0.0
    %3986 = vmatprep.subr.mxu0 0.0
    %3987 = vmatpush1.msra.mxu0 0.0
    %3988 = vmatprep.subr.mxu0 0.0
    %3989 = vmatpush1.msra.mxu0 0.0
    %3990 = vmatprep.subr.mxu0 0.0
    %3991 = vmatpush1.msra.mxu0 0.0
    %3992 = vmatprep.subr.mxu0 0.0
    %3993 = vmatpush1.msra.mxu0 0.0
    %3994 = vmatprep.subr.mxu0 0.0
    %3995 = vmatpush1.msra.mxu0 0.0
    %3996 = vmatprep.subr.mxu0 0.0
    %3997 = vmatpush1.msra.mxu0 0.0
    %3998 = vmatprep.subr.mxu0 0.0
    %3999 = vmatpush1.msra.mxu0 0.0
    %4000 = vmatprep.mubr.f32.mxu0 0.0
    %v4001 = vand.u32 %v3780, 4294901760
    %v4002 = vsub.f32 %v3780, %v4001
    %4003 = vmatmul.mubr.f32.gmra.mrb[0].mxu0 %v4002
    %v4004 = vpop.f32.mrb[0].mxu0
    %v4005 = vadd.f32 %v3931, %v4004
    %v4006 = vpop.f32.mrb[0].mxu0
    %4007 = vdwg.mxu0
    %4008 = vmatprep.subr.mxu0 0.0
    %v4009 = vand.u32 %v3328, 4294901760
    %4010 = vmatpush1.msra.mxu0 %v4009
    %4011 = vmatprep.subr.mxu0 0.0
    %4012 = vmatpush1.msra.mxu0 0.0
    %4013 = vmatprep.subr.mxu0 0.0
    %4014 = vmatpush1.msra.mxu0 0.0
    %4015 = vmatprep.subr.mxu0 0.0
    %4016 = vmatpush1.msra.mxu0 0.0
    %4017 = vmatprep.subr.mxu0 0.0
    %4018 = vmatpush1.msra.mxu0 0.0
    %4019 = vmatprep.subr.mxu0 0.0
    %4020 = vmatpush1.msra.mxu0 0.0
    %4021 = vmatprep.subr.mxu0 0.0
    %4022 = vmatpush1.msra.mxu0 0.0
    %4023 = vmatprep.subr.mxu0 0.0
    %4024 = vmatpush1.msra.mxu0 0.0
    %4025 = vmatprep.subr.mxu0 0.0
    %4026 = vmatpush1.msra.mxu0 0.0
    %4027 = vmatprep.subr.mxu0 0.0
    %4028 = vmatpush1.msra.mxu0 0.0
    %4029 = vmatprep.subr.mxu0 0.0
    %4030 = vmatpush1.msra.mxu0 0.0
    %4031 = vmatprep.subr.mxu0 0.0
    %4032 = vmatpush1.msra.mxu0 0.0
    %4033 = vmatprep.subr.mxu0 0.0
    %4034 = vmatpush1.msra.mxu0 0.0
    %4035 = vmatprep.subr.mxu0 0.0
    %4036 = vmatpush1.msra.mxu0 0.0
    %4037 = vmatprep.subr.mxu0 0.0
    %4038 = vmatpush1.msra.mxu0 0.0
    %4039 = vmatprep.subr.mxu0 0.0
    %4040 = vmatpush1.msra.mxu0 0.0
    %4041 = vmatprep.subr.mxu0 0.0
    %4042 = vmatpush1.msra.mxu0 0.0
    %4043 = vmatprep.subr.mxu0 0.0
    %4044 = vmatpush1.msra.mxu0 0.0
    %4045 = vmatprep.subr.mxu0 0.0
    %4046 = vmatpush1.msra.mxu0 0.0
    %4047 = vmatprep.subr.mxu0 0.0
    %4048 = vmatpush1.msra.mxu0 0.0
    %4049 = vmatprep.subr.mxu0 0.0
    %4050 = vmatpush1.msra.mxu0 0.0
    %4051 = vmatprep.subr.mxu0 0.0
    %4052 = vmatpush1.msra.mxu0 0.0
    %4053 = vmatprep.subr.mxu0 0.0
    %4054 = vmatpush1.msra.mxu0 0.0
    %4055 = vmatprep.subr.mxu0 0.0
    %4056 = vmatpush1.msra.mxu0 0.0
    %4057 = vmatprep.subr.mxu0 0.0
    %4058 = vmatpush1.msra.mxu0 0.0
    %4059 = vmatprep.subr.mxu0 0.0
    %4060 = vmatpush1.msra.mxu0 0.0
    %4061 = vmatprep.subr.mxu0 0.0
    %4062 = vmatpush1.msra.mxu0 0.0
    %4063 = vmatprep.subr.mxu0 0.0
    %4064 = vmatpush1.msra.mxu0 0.0
    %4065 = vmatprep.subr.mxu0 0.0
    %4066 = vmatpush1.msra.mxu0 0.0
    %4067 = vmatprep.subr.mxu0 0.0
    %4068 = vmatpush1.msra.mxu0 0.0
    %4069 = vmatprep.subr.mxu0 0.0
    %4070 = vmatpush1.msra.mxu0 0.0
    %4071 = vmatprep.subr.mxu0 0.0
    %4072 = vmatpush1.msra.mxu0 0.0
    %4073 = vmatprep.mubr.f32.mxu0 0.0
    %v4074 = vand.u32 %v3780, 4294901760
    %v4075 = vsub.f32 %v3780, %v4074
    %v4076 = vand.u32 %v4075, 4294901760
    %4077 = vmatmul.mubr.f32.gmra.mrb[0].mxu0 %v4076
    %v4078 = vpop.f32.mrb[0].mxu0
    %v4079 = vadd.f32 %v4005, %v4078
    %v4080 = vpop.f32.mrb[0].mxu0
    %4081 = vdwg.mxu0
    %4082 = vmatprep.subr.mxu0 0.0
    %v4083 = vand.u32 %v3328, 4294901760
    %v4084 = vsub.f32 %v3328, %v4083
    %v4085 = vand.u32 %v4084, 4294901760
    %4086 = vmatpush1.msra.mxu0 %v4085
    %4087 = vmatprep.subr.mxu0 0.0
    %4088 = vmatpush1.msra.mxu0 0.0
    %4089 = vmatprep.subr.mxu0 0.0
    %4090 = vmatpush1.msra.mxu0 0.0
    %4091 = vmatprep.subr.mxu0 0.0
    %4092 = vmatpush1.msra.mxu0 0.0
    %4093 = vmatprep.subr.mxu0 0.0
    %4094 = vmatpush1.msra.mxu0 0.0
    %4095 = vmatprep.subr.mxu0 0.0
    %4096 = vmatpush1.msra.mxu0 0.0
    %4097 = vmatprep.subr.mxu0 0.0
    %4098 = vmatpush1.msra.mxu0 0.0
    %4099 = vmatprep.subr.mxu0 0.0
    %4100 = vmatpush1.msra.mxu0 0.0
    %4101 = vmatprep.subr.mxu0 0.0
    %4102 = vmatpush1.msra.mxu0 0.0
    %4103 = vmatprep.subr.mxu0 0.0
    %4104 = vmatpush1.msra.mxu0 0.0
    %4105 = vmatprep.subr.mxu0 0.0
    %4106 = vmatpush1.msra.mxu0 0.0
    %4107 = vmatprep.subr.mxu0 0.0
    %4108 = vmatpush1.msra.mxu0 0.0
    %4109 = vmatprep.subr.mxu0 0.0
    %4110 = vmatpush1.msra.mxu0 0.0
    %4111 = vmatprep.subr.mxu0 0.0
    %4112 = vmatpush1.msra.mxu0 0.0
    %4113 = vmatprep.subr.mxu0 0.0
    %4114 = vmatpush1.msra.mxu0 0.0
    %4115 = vmatprep.subr.mxu0 0.0
    %4116 = vmatpush1.msra.mxu0 0.0
    %4117 = vmatprep.subr.mxu0 0.0
    %4118 = vmatpush1.msra.mxu0 0.0
    %4119 = vmatprep.subr.mxu0 0.0
    %4120 = vmatpush1.msra.mxu0 0.0
    %4121 = vmatprep.subr.mxu0 0.0
    %4122 = vmatpush1.msra.mxu0 0.0
    %4123 = vmatprep.subr.mxu0 0.0
    %4124 = vmatpush1.msra.mxu0 0.0
    %4125 = vmatprep.subr.mxu0 0.0
    %4126 = vmatpush1.msra.mxu0 0.0
    %4127 = vmatprep.subr.mxu0 0.0
    %4128 = vmatpush1.msra.mxu0 0.0
    %4129 = vmatprep.subr.mxu0 0.0
    %4130 = vmatpush1.msra.mxu0 0.0
    %4131 = vmatprep.subr.mxu0 0.0
    %4132 = vmatpush1.msra.mxu0 0.0
    %4133 = vmatprep.subr.mxu0 0.0
    %4134 = vmatpush1.msra.mxu0 0.0
    %4135 = vmatprep.subr.mxu0 0.0
    %4136 = vmatpush1.msra.mxu0 0.0
    %4137 = vmatprep.subr.mxu0 0.0
    %4138 = vmatpush1.msra.mxu0 0.0
    %4139 = vmatprep.subr.mxu0 0.0
    %4140 = vmatpush1.msra.mxu0 0.0
    %4141 = vmatprep.subr.mxu0 0.0
    %4142 = vmatpush1.msra.mxu0 0.0
    %4143 = vmatprep.subr.mxu0 0.0
    %4144 = vmatpush1.msra.mxu0 0.0
    %4145 = vmatprep.subr.mxu0 0.0
    %4146 = vmatpush1.msra.mxu0 0.0
    %4147 = vmatprep.subr.mxu0 0.0
    %4148 = vmatpush1.msra.mxu0 0.0
    %4149 = vmatprep.mubr.f32.mxu0 0.0
    %v4150 = vand.u32 %v3780, 4294901760
    %4151 = vmatmul.mubr.f32.gmra.mrb[0].mxu0 %v4150
    %v4152 = vpop.f32.mrb[0].mxu0
    %v4153 = vadd.f32 %v4079, %v4152
    %v4154 = vpop.f32.mrb[0].mxu0
    %4155 = vdwg.mxu0
    %4156 = vmatprep.subr.mxu0 0.0
    %v4157 = vand.u32 %v3328, 4294901760
    %4158 = vmatpush1.msra.mxu0 %v4157
    %4159 = vmatprep.subr.mxu0 0.0
    %4160 = vmatpush1.msra.mxu0 0.0
    %4161 = vmatprep.subr.mxu0 0.0
    %4162 = vmatpush1.msra.mxu0 0.0
    %4163 = vmatprep.subr.mxu0 0.0
    %4164 = vmatpush1.msra.mxu0 0.0
    %4165 = vmatprep.subr.mxu0 0.0
    %4166 = vmatpush1.msra.mxu0 0.0
    %4167 = vmatprep.subr.mxu0 0.0
    %4168 = vmatpush1.msra.mxu0 0.0
    %4169 = vmatprep.subr.mxu0 0.0
    %4170 = vmatpush1.msra.mxu0 0.0
    %4171 = vmatprep.subr.mxu0 0.0
    %4172 = vmatpush1.msra.mxu0 0.0
    %4173 = vmatprep.subr.mxu0 0.0
    %4174 = vmatpush1.msra.mxu0 0.0
    %4175 = vmatprep.subr.mxu0 0.0
    %4176 = vmatpush1.msra.mxu0 0.0
    %4177 = vmatprep.subr.mxu0 0.0
    %4178 = vmatpush1.msra.mxu0 0.0
    %4179 = vmatprep.subr.mxu0 0.0
    %4180 = vmatpush1.msra.mxu0 0.0
    %4181 = vmatprep.subr.mxu0 0.0
    %4182 = vmatpush1.msra.mxu0 0.0
    %4183 = vmatprep.subr.mxu0 0.0
    %4184 = vmatpush1.msra.mxu0 0.0
    %4185 = vmatprep.subr.mxu0 0.0
    %4186 = vmatpush1.msra.mxu0 0.0
    %4187 = vmatprep.subr.mxu0 0.0
    %4188 = vmatpush1.msra.mxu0 0.0
    %4189 = vmatprep.subr.mxu0 0.0
    %4190 = vmatpush1.msra.mxu0 0.0
    %4191 = vmatprep.subr.mxu0 0.0
    %4192 = vmatpush1.msra.mxu0 0.0
    %4193 = vmatprep.subr.mxu0 0.0
    %4194 = vmatpush1.msra.mxu0 0.0
    %4195 = vmatprep.subr.mxu0 0.0
    %4196 = vmatpush1.msra.mxu0 0.0
    %4197 = vmatprep.subr.mxu0 0.0
    %4198 = vmatpush1.msra.mxu0 0.0
    %4199 = vmatprep.subr.mxu0 0.0
    %4200 = vmatpush1.msra.mxu0 0.0
    %4201 = vmatprep.subr.mxu0 0.0
    %4202 = vmatpush1.msra.mxu0 0.0
    %4203 = vmatprep.subr.mxu0 0.0
    %4204 = vmatpush1.msra.mxu0 0.0
    %4205 = vmatprep.subr.mxu0 0.0
    %4206 = vmatpush1.msra.mxu0 0.0
    %4207 = vmatprep.subr.mxu0 0.0
    %4208 = vmatpush1.msra.mxu0 0.0
    %4209 = vmatprep.subr.mxu0 0.0
    %4210 = vmatpush1.msra.mxu0 0.0
    %4211 = vmatprep.subr.mxu0 0.0
    %4212 = vmatpush1.msra.mxu0 0.0
    %4213 = vmatprep.subr.mxu0 0.0
    %4214 = vmatpush1.msra.mxu0 0.0
    %4215 = vmatprep.subr.mxu0 0.0
    %4216 = vmatpush1.msra.mxu0 0.0
    %4217 = vmatprep.subr.mxu0 0.0
    %4218 = vmatpush1.msra.mxu0 0.0
    %4219 = vmatprep.subr.mxu0 0.0
    %4220 = vmatpush1.msra.mxu0 0.0
    %4221 = vmatprep.mubr.f32.mxu0 0.0
    %v4222 = vand.u32 %v3780, 4294901760
    %4223 = vmatmul.mubr.f32.gmra.mrb[0].mxu0 %v4222
    %v4224 = vpop.f32.mrb[0].mxu0
    %v4225 = vadd.f32 %v4153, %v4224
    %v4226 = vpop.f32.mrb[0].mxu0
    %4227 = vdwg.mxu0
    %4228 = vrot.lane.b32.xlu0 %v2297, 96
    %v4229 = vpop.permute.xlu0 %4228
    %v4230 = vsel %vm2308, %v2299, 0
    %v4232 = vsel %vm2308, %v2301, 0
    %v4234 = vsel %vm2308, %v4229, 0
    %4236 = vmatprep.subr.mxu0 0.0
    %v4237 = vand.u32 %v4234, 4294901760
    %4238 = vmatpush1.xpose.msra.mxu0 %v4237
    %4239 = vmatprep.subr.mxu0 0.0
    %4240 = vmatpush1.xpose.msra.mxu0 0.0
    %4241 = vmatprep.subr.mxu0 0.0
    %4242 = vmatpush1.xpose.msra.mxu0 0.0
    %4243 = vmatprep.subr.mxu0 0.0
    %4244 = vmatpush1.xpose.msra.mxu0 0.0
    %4245 = vmatprep.subr.mxu0 0.0
    %4246 = vmatpush1.xpose.msra.mxu0 0.0
    %4247 = vmatprep.subr.mxu0 0.0
    %4248 = vmatpush1.xpose.msra.mxu0 0.0
    %4249 = vmatprep.subr.mxu0 0.0
    %4250 = vmatpush1.xpose.msra.mxu0 0.0
    %4251 = vmatprep.subr.mxu0 0.0
    %4252 = vmatpush1.xpose.msra.mxu0 0.0
    %4253 = vmatprep.subr.mxu0 0.0
    %4254 = vmatpush1.xpose.msra.mxu0 0.0
    %4255 = vmatprep.subr.mxu0 0.0
    %4256 = vmatpush1.xpose.msra.mxu0 0.0
    %4257 = vmatprep.subr.mxu0 0.0
    %4258 = vmatpush1.xpose.msra.mxu0 0.0
    %4259 = vmatprep.subr.mxu0 0.0
    %4260 = vmatpush1.xpose.msra.mxu0 0.0
    %4261 = vmatprep.subr.mxu0 0.0
    %4262 = vmatpush1.xpose.msra.mxu0 0.0
    %4263 = vmatprep.subr.mxu0 0.0
    %4264 = vmatpush1.xpose.msra.mxu0 0.0
    %4265 = vmatprep.subr.mxu0 0.0
    %4266 = vmatpush1.xpose.msra.mxu0 0.0
    %4267 = vmatprep.subr.mxu0 0.0
    %4268 = vmatpush1.xpose.msra.mxu0 0.0
    %4269 = vmatprep.subr.mxu0 0.0
    %4270 = vmatpush1.xpose.msra.mxu0 0.0
    %4271 = vmatprep.subr.mxu0 0.0
    %4272 = vmatpush1.xpose.msra.mxu0 0.0
    %4273 = vmatprep.subr.mxu0 0.0
    %4274 = vmatpush1.xpose.msra.mxu0 0.0
    %4275 = vmatprep.subr.mxu0 0.0
    %4276 = vmatpush1.xpose.msra.mxu0 0.0
    %4277 = vmatprep.subr.mxu0 0.0
    %4278 = vmatpush1.xpose.msra.mxu0 0.0
    %4279 = vmatprep.subr.mxu0 0.0
    %4280 = vmatpush1.xpose.msra.mxu0 0.0
    %4281 = vmatprep.subr.mxu0 0.0
    %4282 = vmatpush1.xpose.msra.mxu0 0.0
    %4283 = vmatprep.subr.mxu0 0.0
    %4284 = vmatpush1.xpose.msra.mxu0 0.0
    %4285 = vmatprep.subr.mxu0 0.0
    %4286 = vmatpush1.xpose.msra.mxu0 0.0
    %4287 = vmatprep.subr.mxu0 0.0
    %4288 = vmatpush1.xpose.msra.mxu0 0.0
    %4289 = vmatprep.subr.mxu0 0.0
    %4290 = vmatpush1.xpose.msra.mxu0 0.0
    %4291 = vmatprep.subr.mxu0 0.0
    %4292 = vmatpush1.xpose.msra.mxu0 0.0
    %4293 = vmatprep.subr.mxu0 0.0
    %4294 = vmatpush1.xpose.msra.mxu0 0.0
    %4295 = vmatprep.subr.mxu0 0.0
    %4296 = vmatpush1.xpose.msra.mxu0 0.0
    %4297 = vmatprep.subr.mxu0 0.0
    %4298 = vmatpush1.xpose.msra.mxu0 0.0
    %4299 = vmatprep.subr.mxu0 0.0
    %4300 = vmatpush1.xpose.msra.mxu0 0.0
    %4301 = vmatprep.mubr.f32.mxu0 0.0
    %v4302 = vand.u32 %v4230, 4294901760
    %v4303 = vsub.f32 %v4230, %v4302
    %v4304 = vand.u32 %v4303, 4294901760
    %v4305 = vsub.f32 %v4303, %v4304
    %v4306 = vand.u32 %v4305, 4294901760
    %4307 = vmatmul.mubr.f32.gmra.mrb[0].mxu0 %v4306
    %v4308 = vpop.f32.mrb[0].mxu0
    %v4309 = vadd.f32 0.0, %v4308
    %v4310 = vpop.f32.mrb[0].mxu0
    %4311 = vmatprep.mubr.f32.mxu0 0.0
    %v4312 = vand.u32 %v4232, 4294901760
    %v4313 = vsub.f32 %v4232, %v4312
    %v4314 = vand.u32 %v4313, 4294901760
    %v4315 = vsub.f32 %v4313, %v4314
    %v4316 = vand.u32 %v4315, 4294901760
    %4317 = vmatmul.mubr.f32.gmra.mrb[0].mxu0 %v4316
    %v4318 = vpop.f32.mrb[0].mxu0
    %v4319 = vadd.f32 0.0, %v4318
    %v4320 = vpop.f32.mrb[0].mxu0
    %4321 = vdwg.mxu0
    %4322 = vmatprep.subr.mxu0 0.0
    %v4323 = vand.u32 %v4234, 4294901760
    %v4324 = vsub.f32 %v4234, %v4323
    %v4325 = vand.u32 %v4324, 4294901760
    %v4326 = vsub.f32 %v4324, %v4325
    %v4327 = vand.u32 %v4326, 4294901760
    %4328 = vmatpush1.xpose.msra.mxu0 %v4327
    %4329 = vmatprep.subr.mxu0 0.0
    %4330 = vmatpush1.xpose.msra.mxu0 0.0
    %4331 = vmatprep.subr.mxu0 0.0
    %4332 = vmatpush1.xpose.msra.mxu0 0.0
    %4333 = vmatprep.subr.mxu0 0.0
    %4334 = vmatpush1.xpose.msra.mxu0 0.0
    %4335 = vmatprep.subr.mxu0 0.0
    %4336 = vmatpush1.xpose.msra.mxu0 0.0
    %4337 = vmatprep.subr.mxu0 0.0
    %4338 = vmatpush1.xpose.msra.mxu0 0.0
    %4339 = vmatprep.subr.mxu0 0.0
    %4340 = vmatpush1.xpose.msra.mxu0 0.0
    %4341 = vmatprep.subr.mxu0 0.0
    %4342 = vmatpush1.xpose.msra.mxu0 0.0
    %4343 = vmatprep.subr.mxu0 0.0
    %4344 = vmatpush1.xpose.msra.mxu0 0.0
    %4345 = vmatprep.subr.mxu0 0.0
    %4346 = vmatpush1.xpose.msra.mxu0 0.0
    %4347 = vmatprep.subr.mxu0 0.0
    %4348 = vmatpush1.xpose.msra.mxu0 0.0
    %4349 = vmatprep.subr.mxu0 0.0
    %4350 = vmatpush1.xpose.msra.mxu0 0.0
    %4351 = vmatprep.subr.mxu0 0.0
    %4352 = vmatpush1.xpose.msra.mxu0 0.0
    %4353 = vmatprep.subr.mxu0 0.0
    %4354 = vmatpush1.xpose.msra.mxu0 0.0
    %4355 = vmatprep.subr.mxu0 0.0
    %4356 = vmatpush1.xpose.msra.mxu0 0.0
    %4357 = vmatprep.subr.mxu0 0.0
    %4358 = vmatpush1.xpose.msra.mxu0 0.0
    %4359 = vmatprep.subr.mxu0 0.0
    %4360 = vmatpush1.xpose.msra.mxu0 0.0
    %4361 = vmatprep.subr.mxu0 0.0
    %4362 = vmatpush1.xpose.msra.mxu0 0.0
    %4363 = vmatprep.subr.mxu0 0.0
    %4364 = vmatpush1.xpose.msra.mxu0 0.0
    %4365 = vmatprep.subr.mxu0 0.0
    %4366 = vmatpush1.xpose.msra.mxu0 0.0
    %4367 = vmatprep.subr.mxu0 0.0
    %4368 = vmatpush1.xpose.msra.mxu0 0.0
    %4369 = vmatprep.subr.mxu0 0.0
    %4370 = vmatpush1.xpose.msra.mxu0 0.0
    %4371 = vmatprep.subr.mxu0 0.0
    %4372 = vmatpush1.xpose.msra.mxu0 0.0
    %4373 = vmatprep.subr.mxu0 0.0
    %4374 = vmatpush1.xpose.msra.mxu0 0.0
    %4375 = vmatprep.subr.mxu0 0.0
    %4376 = vmatpush1.xpose.msra.mxu0 0.0
    %4377 = vmatprep.subr.mxu0 0.0
    %4378 = vmatpush1.xpose.msra.mxu0 0.0
    %4379 = vmatprep.subr.mxu0 0.0
    %4380 = vmatpush1.xpose.msra.mxu0 0.0
    %4381 = vmatprep.subr.mxu0 0.0
    %4382 = vmatpush1.xpose.msra.mxu0 0.0
    %4383 = vmatprep.subr.mxu0 0.0
    %4384 = vmatpush1.xpose.msra.mxu0 0.0
    %4385 = vmatprep.subr.mxu0 0.0
    %4386 = vmatpush1.xpose.msra.mxu0 0.0
    %4387 = vmatprep.subr.mxu0 0.0
    %4388 = vmatpush1.xpose.msra.mxu0 0.0
    %4389 = vmatprep.subr.mxu0 0.0
    %4390 = vmatpush1.xpose.msra.mxu0 0.0
    %4391 = vmatprep.mubr.f32.mxu0 0.0
    %v4392 = vand.u32 %v4230, 4294901760
    %4393 = vmatmul.mubr.f32.gmra.mrb[0].mxu0 %v4392
    %v4394 = vpop.f32.mrb[0].mxu0
    %v4395 = vadd.f32 %v4309, %v4394
    %v4396 = vpop.f32.mrb[0].mxu0
    %4397 = vmatprep.mubr.f32.mxu0 0.0
    %v4398 = vand.u32 %v4232, 4294901760
    %4399 = vmatmul.mubr.f32.gmra.mrb[0].mxu0 %v4398
    %v4400 = vpop.f32.mrb[0].mxu0
    %v4401 = vadd.f32 %v4319, %v4400
    %v4402 = vpop.f32.mrb[0].mxu0
    %4403 = vdwg.mxu0
    %4404 = vmatprep.subr.mxu0 0.0
    %v4405 = vand.u32 %v4234, 4294901760
    %v4406 = vsub.f32 %v4234, %v4405
    %4407 = vmatpush1.xpose.msra.mxu0 %v4406
    %4408 = vmatprep.subr.mxu0 0.0
    %4409 = vmatpush1.xpose.msra.mxu0 0.0
    %4410 = vmatprep.subr.mxu0 0.0
    %4411 = vmatpush1.xpose.msra.mxu0 0.0
    %4412 = vmatprep.subr.mxu0 0.0
    %4413 = vmatpush1.xpose.msra.mxu0 0.0
    %4414 = vmatprep.subr.mxu0 0.0
    %4415 = vmatpush1.xpose.msra.mxu0 0.0
    %4416 = vmatprep.subr.mxu0 0.0
    %4417 = vmatpush1.xpose.msra.mxu0 0.0
    %4418 = vmatprep.subr.mxu0 0.0
    %4419 = vmatpush1.xpose.msra.mxu0 0.0
    %4420 = vmatprep.subr.mxu0 0.0
    %4421 = vmatpush1.xpose.msra.mxu0 0.0
    %4422 = vmatprep.subr.mxu0 0.0
    %4423 = vmatpush1.xpose.msra.mxu0 0.0
    %4424 = vmatprep.subr.mxu0 0.0
    %4425 = vmatpush1.xpose.msra.mxu0 0.0
    %4426 = vmatprep.subr.mxu0 0.0
    %4427 = vmatpush1.xpose.msra.mxu0 0.0
    %4428 = vmatprep.subr.mxu0 0.0
    %4429 = vmatpush1.xpose.msra.mxu0 0.0
    %4430 = vmatprep.subr.mxu0 0.0
    %4431 = vmatpush1.xpose.msra.mxu0 0.0
    %4432 = vmatprep.subr.mxu0 0.0
    %4433 = vmatpush1.xpose.msra.mxu0 0.0
    %4434 = vmatprep.subr.mxu0 0.0
    %4435 = vmatpush1.xpose.msra.mxu0 0.0
    %4436 = vmatprep.subr.mxu0 0.0
    %4437 = vmatpush1.xpose.msra.mxu0 0.0
    %4438 = vmatprep.subr.mxu0 0.0
    %4439 = vmatpush1.xpose.msra.mxu0 0.0
    %4440 = vmatprep.subr.mxu0 0.0
    %4441 = vmatpush1.xpose.msra.mxu0 0.0
    %4442 = vmatprep.subr.mxu0 0.0
    %4443 = vmatpush1.xpose.msra.mxu0 0.0
    %4444 = vmatprep.subr.mxu0 0.0
    %4445 = vmatpush1.xpose.msra.mxu0 0.0
    %4446 = vmatprep.subr.mxu0 0.0
    %4447 = vmatpush1.xpose.msra.mxu0 0.0
    %4448 = vmatprep.subr.mxu0 0.0
    %4449 = vmatpush1.xpose.msra.mxu0 0.0
    %4450 = vmatprep.subr.mxu0 0.0
    %4451 = vmatpush1.xpose.msra.mxu0 0.0
    %4452 = vmatprep.subr.mxu0 0.0
    %4453 = vmatpush1.xpose.msra.mxu0 0.0
    %4454 = vmatprep.subr.mxu0 0.0
    %4455 = vmatpush1.xpose.msra.mxu0 0.0
    %4456 = vmatprep.subr.mxu0 0.0
    %4457 = vmatpush1.xpose.msra.mxu0 0.0
    %4458 = vmatprep.subr.mxu0 0.0
    %4459 = vmatpush1.xpose.msra.mxu0 0.0
    %4460 = vmatprep.subr.mxu0 0.0
    %4461 = vmatpush1.xpose.msra.mxu0 0.0
    %4462 = vmatprep.subr.mxu0 0.0
    %4463 = vmatpush1.xpose.msra.mxu0 0.0
    %4464 = vmatprep.subr.mxu0 0.0
    %4465 = vmatpush1.xpose.msra.mxu0 0.0
    %4466 = vmatprep.subr.mxu0 0.0
    %4467 = vmatpush1.xpose.msra.mxu0 0.0
    %4468 = vmatprep.subr.mxu0 0.0
    %4469 = vmatpush1.xpose.msra.mxu0 0.0
    %4470 = vmatprep.mubr.f32.mxu0 0.0
    %v4471 = vand.u32 %v4230, 4294901760
    %v4472 = vsub.f32 %v4230, %v4471
    %4473 = vmatmul.mubr.f32.gmra.mrb[0].mxu0 %v4472
    %v4474 = vpop.f32.mrb[0].mxu0
    %v4475 = vadd.f32 %v4395, %v4474
    %v4476 = vpop.f32.mrb[0].mxu0
    %4477 = vmatprep.mubr.f32.mxu0 0.0
    %v4478 = vand.u32 %v4232, 4294901760
    %v4479 = vsub.f32 %v4232, %v4478
    %4480 = vmatmul.mubr.f32.gmra.mrb[0].mxu0 %v4479
    %v4481 = vpop.f32.mrb[0].mxu0
    %v4482 = vadd.f32 %v4401, %v4481
    %v4483 = vpop.f32.mrb[0].mxu0
    %4484 = vdwg.mxu0
    %4485 = vmatprep.subr.mxu0 0.0
    %v4486 = vand.u32 %v4234, 4294901760
    %4487 = vmatpush1.xpose.msra.mxu0 %v4486
    %4488 = vmatprep.subr.mxu0 0.0
    %4489 = vmatpush1.xpose.msra.mxu0 0.0
    %4490 = vmatprep.subr.mxu0 0.0
    %4491 = vmatpush1.xpose.msra.mxu0 0.0
    %4492 = vmatprep.subr.mxu0 0.0
    %4493 = vmatpush1.xpose.msra.mxu0 0.0
    %4494 = vmatprep.subr.mxu0 0.0
    %4495 = vmatpush1.xpose.msra.mxu0 0.0
    %4496 = vmatprep.subr.mxu0 0.0
    %4497 = vmatpush1.xpose.msra.mxu0 0.0
    %4498 = vmatprep.subr.mxu0 0.0
    %4499 = vmatpush1.xpose.msra.mxu0 0.0
    %4500 = vmatprep.subr.mxu0 0.0
    %4501 = vmatpush1.xpose.msra.mxu0 0.0
    %4502 = vmatprep.subr.mxu0 0.0
    %4503 = vmatpush1.xpose.msra.mxu0 0.0
    %4504 = vmatprep.subr.mxu0 0.0
    %4505 = vmatpush1.xpose.msra.mxu0 0.0
    %4506 = vmatprep.subr.mxu0 0.0
    %4507 = vmatpush1.xpose.msra.mxu0 0.0
    %4508 = vmatprep.subr.mxu0 0.0
    %4509 = vmatpush1.xpose.msra.mxu0 0.0
    %4510 = vmatprep.subr.mxu0 0.0
    %4511 = vmatpush1.xpose.msra.mxu0 0.0
    %4512 = vmatprep.subr.mxu0 0.0
    %4513 = vmatpush1.xpose.msra.mxu0 0.0
    %4514 = vmatprep.subr.mxu0 0.0
    %4515 = vmatpush1.xpose.msra.mxu0 0.0
    %4516 = vmatprep.subr.mxu0 0.0
    %4517 = vmatpush1.xpose.msra.mxu0 0.0
    %4518 = vmatprep.subr.mxu0 0.0
    %4519 = vmatpush1.xpose.msra.mxu0 0.0
    %4520 = vmatprep.subr.mxu0 0.0
    %4521 = vmatpush1.xpose.msra.mxu0 0.0
    %4522 = vmatprep.subr.mxu0 0.0
    %4523 = vmatpush1.xpose.msra.mxu0 0.0
    %4524 = vmatprep.subr.mxu0 0.0
    %4525 = vmatpush1.xpose.msra.mxu0 0.0
    %4526 = vmatprep.subr.mxu0 0.0
    %4527 = vmatpush1.xpose.msra.mxu0 0.0
    %4528 = vmatprep.subr.mxu0 0.0
    %4529 = vmatpush1.xpose.msra.mxu0 0.0
    %4530 = vmatprep.subr.mxu0 0.0
    %4531 = vmatpush1.xpose.msra.mxu0 0.0
    %4532 = vmatprep.subr.mxu0 0.0
    %4533 = vmatpush1.xpose.msra.mxu0 0.0
    %4534 = vmatprep.subr.mxu0 0.0
    %4535 = vmatpush1.xpose.msra.mxu0 0.0
    %4536 = vmatprep.subr.mxu0 0.0
    %4537 = vmatpush1.xpose.msra.mxu0 0.0
    %4538 = vmatprep.subr.mxu0 0.0
    %4539 = vmatpush1.xpose.msra.mxu0 0.0
    %4540 = vmatprep.subr.mxu0 0.0
    %4541 = vmatpush1.xpose.msra.mxu0 0.0
    %4542 = vmatprep.subr.mxu0 0.0
    %4543 = vmatpush1.xpose.msra.mxu0 0.0
    %4544 = vmatprep.subr.mxu0 0.0
    %4545 = vmatpush1.xpose.msra.mxu0 0.0
    %4546 = vmatprep.subr.mxu0 0.0
    %4547 = vmatpush1.xpose.msra.mxu0 0.0
    %4548 = vmatprep.subr.mxu0 0.0
    %4549 = vmatpush1.xpose.msra.mxu0 0.0
    %4550 = vmatprep.mubr.f32.mxu0 0.0
    %v4551 = vand.u32 %v4230, 4294901760
    %v4552 = vsub.f32 %v4230, %v4551
    %v4553 = vand.u32 %v4552, 4294901760
    %4554 = vmatmul.mubr.f32.gmra.mrb[0].mxu0 %v4553
    %v4555 = vpop.f32.mrb[0].mxu0
    %v4556 = vadd.f32 %v4475, %v4555
    %v4557 = vpop.f32.mrb[0].mxu0
    %4558 = vmatprep.mubr.f32.mxu0 0.0
    %v4559 = vand.u32 %v4232, 4294901760
    %v4560 = vsub.f32 %v4232, %v4559
    %v4561 = vand.u32 %v4560, 4294901760
    %4562 = vmatmul.mubr.f32.gmra.mrb[0].mxu0 %v4561
    %v4563 = vpop.f32.mrb[0].mxu0
    %v4564 = vadd.f32 %v4482, %v4563
    %v4565 = vpop.f32.mrb[0].mxu0
    %4566 = vdwg.mxu0
    %4567 = vmatprep.subr.mxu0 0.0
    %v4568 = vand.u32 %v4234, 4294901760
    %v4569 = vsub.f32 %v4234, %v4568
    %v4570 = vand.u32 %v4569, 4294901760
    %4571 = vmatpush1.xpose.msra.mxu0 %v4570
    %4572 = vmatprep.subr.mxu0 0.0
    %4573 = vmatpush1.xpose.msra.mxu0 0.0
    %4574 = vmatprep.subr.mxu0 0.0
    %4575 = vmatpush1.xpose.msra.mxu0 0.0
    %4576 = vmatprep.subr.mxu0 0.0
    %4577 = vmatpush1.xpose.msra.mxu0 0.0
    %4578 = vmatprep.subr.mxu0 0.0
    %4579 = vmatpush1.xpose.msra.mxu0 0.0
    %4580 = vmatprep.subr.mxu0 0.0
    %4581 = vmatpush1.xpose.msra.mxu0 0.0
    %4582 = vmatprep.subr.mxu0 0.0
    %4583 = vmatpush1.xpose.msra.mxu0 0.0
    %4584 = vmatprep.subr.mxu0 0.0
    %4585 = vmatpush1.xpose.msra.mxu0 0.0
    %4586 = vmatprep.subr.mxu0 0.0
    %4587 = vmatpush1.xpose.msra.mxu0 0.0
    %4588 = vmatprep.subr.mxu0 0.0
    %4589 = vmatpush1.xpose.msra.mxu0 0.0
    %4590 = vmatprep.subr.mxu0 0.0
    %4591 = vmatpush1.xpose.msra.mxu0 0.0
    %4592 = vmatprep.subr.mxu0 0.0
    %4593 = vmatpush1.xpose.msra.mxu0 0.0
    %4594 = vmatprep.subr.mxu0 0.0
    %4595 = vmatpush1.xpose.msra.mxu0 0.0
    %4596 = vmatprep.subr.mxu0 0.0
    %4597 = vmatpush1.xpose.msra.mxu0 0.0
    %4598 = vmatprep.subr.mxu0 0.0
    %4599 = vmatpush1.xpose.msra.mxu0 0.0
    %4600 = vmatprep.subr.mxu0 0.0
    %4601 = vmatpush1.xpose.msra.mxu0 0.0
    %4602 = vmatprep.subr.mxu0 0.0
    %4603 = vmatpush1.xpose.msra.mxu0 0.0
    %4604 = vmatprep.subr.mxu0 0.0
    %4605 = vmatpush1.xpose.msra.mxu0 0.0
    %4606 = vmatprep.subr.mxu0 0.0
    %4607 = vmatpush1.xpose.msra.mxu0 0.0
    %4608 = vmatprep.subr.mxu0 0.0
    %4609 = vmatpush1.xpose.msra.mxu0 0.0
    %4610 = vmatprep.subr.mxu0 0.0
    %4611 = vmatpush1.xpose.msra.mxu0 0.0
    %4612 = vmatprep.subr.mxu0 0.0
    %4613 = vmatpush1.xpose.msra.mxu0 0.0
    %4614 = vmatprep.subr.mxu0 0.0
    %4615 = vmatpush1.xpose.msra.mxu0 0.0
    %4616 = vmatprep.subr.mxu0 0.0
    %4617 = vmatpush1.xpose.msra.mxu0 0.0
    %4618 = vmatprep.subr.mxu0 0.0
    %4619 = vmatpush1.xpose.msra.mxu0 0.0
    %4620 = vmatprep.subr.mxu0 0.0
    %4621 = vmatpush1.xpose.msra.mxu0 0.0
    %4622 = vmatprep.subr.mxu0 0.0
    %4623 = vmatpush1.xpose.msra.mxu0 0.0
    %4624 = vmatprep.subr.mxu0 0.0
    %4625 = vmatpush1.xpose.msra.mxu0 0.0
    %4626 = vmatprep.subr.mxu0 0.0
    %4627 = vmatpush1.xpose.msra.mxu0 0.0
    %4628 = vmatprep.subr.mxu0 0.0
    %4629 = vmatpush1.xpose.msra.mxu0 0.0
    %4630 = vmatprep.subr.mxu0 0.0
    %4631 = vmatpush1.xpose.msra.mxu0 0.0
    %4632 = vmatprep.subr.mxu0 0.0
    %4633 = vmatpush1.xpose.msra.mxu0 0.0
    %4634 = vmatprep.mubr.f32.mxu0 0.0
    %v4635 = vand.u32 %v4230, 4294901760
    %4636 = vmatmul.mubr.f32.gmra.mrb[0].mxu0 %v4635
    %v4637 = vpop.f32.mrb[0].mxu0
    %v4638 = vadd.f32 %v4556, %v4637
    %v4639 = vpop.f32.mrb[0].mxu0
    %4640 = vmatprep.mubr.f32.mxu0 0.0
    %v4641 = vand.u32 %v4232, 4294901760
    %4642 = vmatmul.mubr.f32.gmra.mrb[0].mxu0 %v4641
    %v4643 = vpop.f32.mrb[0].mxu0
    %v4644 = vadd.f32 %v4564, %v4643
    %v4645 = vpop.f32.mrb[0].mxu0
    %4646 = vdwg.mxu0
    %4647 = vmatprep.subr.mxu0 0.0
    %v4648 = vand.u32 %v4234, 4294901760
    %4649 = vmatpush1.xpose.msra.mxu0 %v4648
    %4650 = vmatprep.subr.mxu0 0.0
    %4651 = vmatpush1.xpose.msra.mxu0 0.0
    %4652 = vmatprep.subr.mxu0 0.0
    %4653 = vmatpush1.xpose.msra.mxu0 0.0
    %4654 = vmatprep.subr.mxu0 0.0
    %4655 = vmatpush1.xpose.msra.mxu0 0.0
    %4656 = vmatprep.subr.mxu0 0.0
    %4657 = vmatpush1.xpose.msra.mxu0 0.0
    %4658 = vmatprep.subr.mxu0 0.0
    %4659 = vmatpush1.xpose.msra.mxu0 0.0
    %4660 = vmatprep.subr.mxu0 0.0
    %4661 = vmatpush1.xpose.msra.mxu0 0.0
    %4662 = vmatprep.subr.mxu0 0.0
    %4663 = vmatpush1.xpose.msra.mxu0 0.0
    %4664 = vmatprep.subr.mxu0 0.0
    %4665 = vmatpush1.xpose.msra.mxu0 0.0
    %4666 = vmatprep.subr.mxu0 0.0
    %4667 = vmatpush1.xpose.msra.mxu0 0.0
    %4668 = vmatprep.subr.mxu0 0.0
    %4669 = vmatpush1.xpose.msra.mxu0 0.0
    %4670 = vmatprep.subr.mxu0 0.0
    %4671 = vmatpush1.xpose.msra.mxu0 0.0
    %4672 = vmatprep.subr.mxu0 0.0
    %4673 = vmatpush1.xpose.msra.mxu0 0.0
    %4674 = vmatprep.subr.mxu0 0.0
    %4675 = vmatpush1.xpose.msra.mxu0 0.0
    %4676 = vmatprep.subr.mxu0 0.0
    %4677 = vmatpush1.xpose.msra.mxu0 0.0
    %4678 = vmatprep.subr.mxu0 0.0
    %4679 = vmatpush1.xpose.msra.mxu0 0.0
    %4680 = vmatprep.subr.mxu0 0.0
    %4681 = vmatpush1.xpose.msra.mxu0 0.0
    %4682 = vmatprep.subr.mxu0 0.0
    %4683 = vmatpush1.xpose.msra.mxu0 0.0
    %4684 = vmatprep.subr.mxu0 0.0
    %4685 = vmatpush1.xpose.msra.mxu0 0.0
    %4686 = vmatprep.subr.mxu0 0.0
    %4687 = vmatpush1.xpose.msra.mxu0 0.0
    %4688 = vmatprep.subr.mxu0 0.0
    %4689 = vmatpush1.xpose.msra.mxu0 0.0
    %4690 = vmatprep.subr.mxu0 0.0
    %4691 = vmatpush1.xpose.msra.mxu0 0.0
    %4692 = vmatprep.subr.mxu0 0.0
    %4693 = vmatpush1.xpose.msra.mxu0 0.0
    %4694 = vmatprep.subr.mxu0 0.0
    %4695 = vmatpush1.xpose.msra.mxu0 0.0
    %4696 = vmatprep.subr.mxu0 0.0
    %4697 = vmatpush1.xpose.msra.mxu0 0.0
    %4698 = vmatprep.subr.mxu0 0.0
    %4699 = vmatpush1.xpose.msra.mxu0 0.0
    %4700 = vmatprep.subr.mxu0 0.0
    %4701 = vmatpush1.xpose.msra.mxu0 0.0
    %4702 = vmatprep.subr.mxu0 0.0
    %4703 = vmatpush1.xpose.msra.mxu0 0.0
    %4704 = vmatprep.subr.mxu0 0.0
    %4705 = vmatpush1.xpose.msra.mxu0 0.0
    %4706 = vmatprep.subr.mxu0 0.0
    %4707 = vmatpush1.xpose.msra.mxu0 0.0
    %4708 = vmatprep.subr.mxu0 0.0
    %4709 = vmatpush1.xpose.msra.mxu0 0.0
    %4710 = vmatprep.subr.mxu0 0.0
    %4711 = vmatpush1.xpose.msra.mxu0 0.0
    %4712 = vmatprep.mubr.f32.mxu0 0.0
    %v4713 = vand.u32 %v4230, 4294901760
    %4714 = vmatmul.mubr.f32.gmra.mrb[0].mxu0 %v4713
    %v4715 = vpop.f32.mrb[0].mxu0
    %v4716 = vadd.f32 %v4638, %v4715
    %v4717 = vpop.f32.mrb[0].mxu0
    %4718 = vmatprep.mubr.f32.mxu0 0.0
    %v4719 = vand.u32 %v4232, 4294901760
    %4720 = vmatmul.mubr.f32.gmra.mrb[0].mxu0 %v4719
    %v4721 = vpop.f32.mrb[0].mxu0
    %v4722 = vadd.f32 %v4644, %v4721
    %v4723 = vpop.f32.mrb[0].mxu0
    %4724 = vdwg.mxu0
    %v4725 = vmul.f32 %v4716, 0.35355338
    %v4726 = vmul.f32 %v4722, 0.35355338
    %v4727 = vadd.f32 %v4725, %v2304
    %v4728 = vadd.f32 %v4726, %v2305
    %v4729 = vsel %vm2308, %v4727, -inf
    %4730 = vmax.xlane.f32.xlu0 %v4729
    %v4731 = vpop.xlane.xlu0 %4730
    %v4732 = vsel %vm2308, %v4728, -inf
    %4733 = vmax.xlane.f32.xlu0 %v4732
    %v4734 = vpop.xlane.xlu0 %4733
    %v4735 = vsub.f32 %v4727, %v4731
    %v4736 = vsub.f32 %v4728, %v4734
    %v4737 = vmul.f32 %v4735, 1.442695
    %v4738 = vpow.pop %v4737
    %v4739 = vmul.f32 %v4736, 1.442695
    %v4740 = vpow.pop %v4739
    %v4741 = vsel %vm2308, %v4738, 0.0
    %4742 = vadd.xlane.f32.xlu0 %v4741
    %v4743 = vpop.xlane.xlu0 %4742
    %v4744 = vsel %vm2308, %v4740, 0.0
    %4745 = vadd.xlane.f32.xlu0 %v4744
    %v4746 = vpop.xlane.xlu0 %4745
    %v4747 = vrcp.pop %v4743
    %v4748 = vrcp.pop %v4746
    %v4749 = vmul.f32 %v4738, %v4747
    %v4750 = vmul.f32 %v4740, %v4748
    %4751 = vrot.lane.b32.xlu0 %v2303, 80
    %v4752 = vpop.permute.xlu0 %4751
    %v4755 = vsel %vm2308, %v4749, 0
    %v4758 = vsel %vm2308, %v4750, 0
    %4760 = vmatprep.subr.mxu0 0.0
    %v4761 = vand.u32 %v4752, 4294901760
    %4762 = vmatpush1.msra.mxu0 %v4761
    %4763 = vmatprep.subr.mxu0 0.0
    %4764 = vmatpush1.msra.mxu0 0.0
    %4765 = vmatprep.subr.mxu0 0.0
    %4766 = vmatpush1.msra.mxu0 0.0
    %4767 = vmatprep.subr.mxu0 0.0
    %4768 = vmatpush1.msra.mxu0 0.0
    %4769 = vmatprep.subr.mxu0 0.0
    %4770 = vmatpush1.msra.mxu0 0.0
    %4771 = vmatprep.subr.mxu0 0.0
    %4772 = vmatpush1.msra.mxu0 0.0
    %4773 = vmatprep.subr.mxu0 0.0
    %4774 = vmatpush1.msra.mxu0 0.0
    %4775 = vmatprep.subr.mxu0 0.0
    %4776 = vmatpush1.msra.mxu0 0.0
    %4777 = vmatprep.subr.mxu0 0.0
    %4778 = vmatpush1.msra.mxu0 0.0
    %4779 = vmatprep.subr.mxu0 0.0
    %4780 = vmatpush1.msra.mxu0 0.0
    %4781 = vmatprep.subr.mxu0 0.0
    %4782 = vmatpush1.msra.mxu0 0.0
    %4783 = vmatprep.subr.mxu0 0.0
    %4784 = vmatpush1.msra.mxu0 0.0
    %4785 = vmatprep.subr.mxu0 0.0
    %4786 = vmatpush1.msra.mxu0 0.0
    %4787 = vmatprep.subr.mxu0 0.0
    %4788 = vmatpush1.msra.mxu0 0.0
    %4789 = vmatprep.subr.mxu0 0.0
    %4790 = vmatpush1.msra.mxu0 0.0
    %4791 = vmatprep.subr.mxu0 0.0
    %4792 = vmatpush1.msra.mxu0 0.0
    %4793 = vmatprep.subr.mxu0 0.0
    %4794 = vmatpush1.msra.mxu0 0.0
    %4795 = vmatprep.subr.mxu0 0.0
    %4796 = vmatpush1.msra.mxu0 0.0
    %4797 = vmatprep.subr.mxu0 0.0
    %4798 = vmatpush1.msra.mxu0 0.0
    %4799 = vmatprep.subr.mxu0 0.0
    %4800 = vmatpush1.msra.mxu0 0.0
    %4801 = vmatprep.subr.mxu0 0.0
    %4802 = vmatpush1.msra.mxu0 0.0
    %4803 = vmatprep.subr.mxu0 0.0
    %4804 = vmatpush1.msra.mxu0 0.0
    %4805 = vmatprep.subr.mxu0 0.0
    %4806 = vmatpush1.msra.mxu0 0.0
    %4807 = vmatprep.subr.mxu0 0.0
    %4808 = vmatpush1.msra.mxu0 0.0
    %4809 = vmatprep.subr.mxu0 0.0
    %4810 = vmatpush1.msra.mxu0 0.0
    %4811 = vmatprep.subr.mxu0 0.0
    %4812 = vmatpush1.msra.mxu0 0.0
    %4813 = vmatprep.subr.mxu0 0.0
    %4814 = vmatpush1.msra.mxu0 0.0
    %4815 = vmatprep.subr.mxu0 0.0
    %4816 = vmatpush1.msra.mxu0 0.0
    %4817 = vmatprep.subr.mxu0 0.0
    %4818 = vmatpush1.msra.mxu0 0.0
    %4819 = vmatprep.subr.mxu0 0.0
    %4820 = vmatpush1.msra.mxu0 0.0
    %4821 = vmatprep.subr.mxu0 0.0
    %4822 = vmatpush1.msra.mxu0 0.0
    %4823 = vmatprep.subr.mxu0 0.0
    %4824 = vmatpush1.msra.mxu0 0.0
    %4825 = vmatprep.mubr.f32.mxu0 0.0
    %v4826 = vand.u32 %v4755, 4294901760
    %v4827 = vsub.f32 %v4755, %v4826
    %v4828 = vand.u32 %v4827, 4294901760
    %v4829 = vsub.f32 %v4827, %v4828
    %v4830 = vand.u32 %v4829, 4294901760
    %4831 = vmatmul.mubr.f32.gmra.mrb[0].mxu0 %v4830
    %v4832 = vpop.f32.mrb[0].mxu0
    %v4833 = vadd.f32 0.0, %v4832
    %v4834 = vpop.f32.mrb[0].mxu0
    %4835 = vmatprep.mubr.f32.mxu0 0.0
    %v4836 = vand.u32 %v4758, 4294901760
    %v4837 = vsub.f32 %v4758, %v4836
    %v4838 = vand.u32 %v4837, 4294901760
    %v4839 = vsub.f32 %v4837, %v4838
    %v4840 = vand.u32 %v4839, 4294901760
    %4841 = vmatmul.mubr.f32.gmra.mrb[0].mxu0 %v4840
    %v4842 = vpop.f32.mrb[0].mxu0
    %v4843 = vadd.f32 0.0, %v4842
    %v4844 = vpop.f32.mrb[0].mxu0
    %4845 = vdwg.mxu0
    %4846 = vmatprep.subr.mxu0 0.0
    %v4847 = vand.u32 %v4752, 4294901760
    %v4848 = vsub.f32 %v4752, %v4847
    %v4849 = vand.u32 %v4848, 4294901760
    %v4850 = vsub.f32 %v4848, %v4849
    %v4851 = vand.u32 %v4850, 4294901760
    %4852 = vmatpush1.msra.mxu0 %v4851
    %4853 = vmatprep.subr.mxu0 0.0
    %4854 = vmatpush1.msra.mxu0 0.0
    %4855 = vmatprep.subr.mxu0 0.0
    %4856 = vmatpush1.msra.mxu0 0.0
    %4857 = vmatprep.subr.mxu0 0.0
    %4858 = vmatpush1.msra.mxu0 0.0
    %4859 = vmatprep.subr.mxu0 0.0
    %4860 = vmatpush1.msra.mxu0 0.0
    %4861 = vmatprep.subr.mxu0 0.0
    %4862 = vmatpush1.msra.mxu0 0.0
    %4863 = vmatprep.subr.mxu0 0.0
    %4864 = vmatpush1.msra.mxu0 0.0
    %4865 = vmatprep.subr.mxu0 0.0
    %4866 = vmatpush1.msra.mxu0 0.0
    %4867 = vmatprep.subr.mxu0 0.0
    %4868 = vmatpush1.msra.mxu0 0.0
    %4869 = vmatprep.subr.mxu0 0.0
    %4870 = vmatpush1.msra.mxu0 0.0
    %4871 = vmatprep.subr.mxu0 0.0
    %4872 = vmatpush1.msra.mxu0 0.0
    %4873 = vmatprep.subr.mxu0 0.0
    %4874 = vmatpush1.msra.mxu0 0.0
    %4875 = vmatprep.subr.mxu0 0.0
    %4876 = vmatpush1.msra.mxu0 0.0
    %4877 = vmatprep.subr.mxu0 0.0
    %4878 = vmatpush1.msra.mxu0 0.0
    %4879 = vmatprep.subr.mxu0 0.0
    %4880 = vmatpush1.msra.mxu0 0.0
    %4881 = vmatprep.subr.mxu0 0.0
    %4882 = vmatpush1.msra.mxu0 0.0
    %4883 = vmatprep.subr.mxu0 0.0
    %4884 = vmatpush1.msra.mxu0 0.0
    %4885 = vmatprep.subr.mxu0 0.0
    %4886 = vmatpush1.msra.mxu0 0.0
    %4887 = vmatprep.subr.mxu0 0.0
    %4888 = vmatpush1.msra.mxu0 0.0
    %4889 = vmatprep.subr.mxu0 0.0
    %4890 = vmatpush1.msra.mxu0 0.0
    %4891 = vmatprep.subr.mxu0 0.0
    %4892 = vmatpush1.msra.mxu0 0.0
    %4893 = vmatprep.subr.mxu0 0.0
    %4894 = vmatpush1.msra.mxu0 0.0
    %4895 = vmatprep.subr.mxu0 0.0
    %4896 = vmatpush1.msra.mxu0 0.0
    %4897 = vmatprep.subr.mxu0 0.0
    %4898 = vmatpush1.msra.mxu0 0.0
    %4899 = vmatprep.subr.mxu0 0.0
    %4900 = vmatpush1.msra.mxu0 0.0
    %4901 = vmatprep.subr.mxu0 0.0
    %4902 = vmatpush1.msra.mxu0 0.0
    %4903 = vmatprep.subr.mxu0 0.0
    %4904 = vmatpush1.msra.mxu0 0.0
    %4905 = vmatprep.subr.mxu0 0.0
    %4906 = vmatpush1.msra.mxu0 0.0
    %4907 = vmatprep.subr.mxu0 0.0
    %4908 = vmatpush1.msra.mxu0 0.0
    %4909 = vmatprep.subr.mxu0 0.0
    %4910 = vmatpush1.msra.mxu0 0.0
    %4911 = vmatprep.subr.mxu0 0.0
    %4912 = vmatpush1.msra.mxu0 0.0
    %4913 = vmatprep.subr.mxu0 0.0
    %4914 = vmatpush1.msra.mxu0 0.0
    %4915 = vmatprep.mubr.f32.mxu0 0.0
    %v4916 = vand.u32 %v4755, 4294901760
    %4917 = vmatmul.mubr.f32.gmra.mrb[0].mxu0 %v4916
    %v4918 = vpop.f32.mrb[0].mxu0
    %v4919 = vadd.f32 %v4833, %v4918
    %v4920 = vpop.f32.mrb[0].mxu0
    %4921 = vmatprep.mubr.f32.mxu0 0.0
    %v4922 = vand.u32 %v4758, 4294901760
    %4923 = vmatmul.mubr.f32.gmra.mrb[0].mxu0 %v4922
    %v4924 = vpop.f32.mrb[0].mxu0
    %v4925 = vadd.f32 %v4843, %v4924
    %v4926 = vpop.f32.mrb[0].mxu0
    %4927 = vdwg.mxu0
    %4928 = vmatprep.subr.mxu0 0.0
    %v4929 = vand.u32 %v4752, 4294901760
    %v4930 = vsub.f32 %v4752, %v4929
    %4931 = vmatpush1.msra.mxu0 %v4930
    %4932 = vmatprep.subr.mxu0 0.0
    %4933 = vmatpush1.msra.mxu0 0.0
    %4934 = vmatprep.subr.mxu0 0.0
    %4935 = vmatpush1.msra.mxu0 0.0
    %4936 = vmatprep.subr.mxu0 0.0
    %4937 = vmatpush1.msra.mxu0 0.0
    %4938 = vmatprep.subr.mxu0 0.0
    %4939 = vmatpush1.msra.mxu0 0.0
    %4940 = vmatprep.subr.mxu0 0.0
    %4941 = vmatpush1.msra.mxu0 0.0
    %4942 = vmatprep.subr.mxu0 0.0
    %4943 = vmatpush1.msra.mxu0 0.0
    %4944 = vmatprep.subr.mxu0 0.0
    %4945 = vmatpush1.msra.mxu0 0.0
    %4946 = vmatprep.subr.mxu0 0.0
    %4947 = vmatpush1.msra.mxu0 0.0
    %4948 = vmatprep.subr.mxu0 0.0
    %4949 = vmatpush1.msra.mxu0 0.0
    %4950 = vmatprep.subr.mxu0 0.0
    %4951 = vmatpush1.msra.mxu0 0.0
    %4952 = vmatprep.subr.mxu0 0.0
    %4953 = vmatpush1.msra.mxu0 0.0
    %4954 = vmatprep.subr.mxu0 0.0
    %4955 = vmatpush1.msra.mxu0 0.0
    %4956 = vmatprep.subr.mxu0 0.0
    %4957 = vmatpush1.msra.mxu0 0.0
    %4958 = vmatprep.subr.mxu0 0.0
    %4959 = vmatpush1.msra.mxu0 0.0
    %4960 = vmatprep.subr.mxu0 0.0
    %4961 = vmatpush1.msra.mxu0 0.0
    %4962 = vmatprep.subr.mxu0 0.0
    %4963 = vmatpush1.msra.mxu0 0.0
    %4964 = vmatprep.subr.mxu0 0.0
    %4965 = vmatpush1.msra.mxu0 0.0
    %4966 = vmatprep.subr.mxu0 0.0
    %4967 = vmatpush1.msra.mxu0 0.0
    %4968 = vmatprep.subr.mxu0 0.0
    %4969 = vmatpush1.msra.mxu0 0.0
    %4970 = vmatprep.subr.mxu0 0.0
    %4971 = vmatpush1.msra.mxu0 0.0
    %4972 = vmatprep.subr.mxu0 0.0
    %4973 = vmatpush1.msra.mxu0 0.0
    %4974 = vmatprep.subr.mxu0 0.0
    %4975 = vmatpush1.msra.mxu0 0.0
    %4976 = vmatprep.subr.mxu0 0.0
    %4977 = vmatpush1.msra.mxu0 0.0
    %4978 = vmatprep.subr.mxu0 0.0
    %4979 = vmatpush1.msra.mxu0 0.0
    %4980 = vmatprep.subr.mxu0 0.0
    %4981 = vmatpush1.msra.mxu0 0.0
    %4982 = vmatprep.subr.mxu0 0.0
    %4983 = vmatpush1.msra.mxu0 0.0
    %4984 = vmatprep.subr.mxu0 0.0
    %4985 = vmatpush1.msra.mxu0 0.0
    %4986 = vmatprep.subr.mxu0 0.0
    %4987 = vmatpush1.msra.mxu0 0.0
    %4988 = vmatprep.subr.mxu0 0.0
    %4989 = vmatpush1.msra.mxu0 0.0
    %4990 = vmatprep.subr.mxu0 0.0
    %4991 = vmatpush1.msra.mxu0 0.0
    %4992 = vmatprep.subr.mxu0 0.0
    %4993 = vmatpush1.msra.mxu0 0.0
    %4994 = vmatprep.mubr.f32.mxu0 0.0
    %v4995 = vand.u32 %v4755, 4294901760
    %v4996 = vsub.f32 %v4755, %v4995
    %4997 = vmatmul.mubr.f32.gmra.mrb[0].mxu0 %v4996
    %v4998 = vpop.f32.mrb[0].mxu0
    %v4999 = vadd.f32 %v4919, %v4998
    %v5000 = vpop.f32.mrb[0].mxu0
    %5001 = vmatprep.mubr.f32.mxu0 0.0
    %v5002 = vand.u32 %v4758, 4294901760
    %v5003 = vsub.f32 %v4758, %v5002
    %5004 = vmatmul.mubr.f32.gmra.mrb[0].mxu0 %v5003
    %v5005 = vpop.f32.mrb[0].mxu0
    %v5006 = vadd.f32 %v4925, %v5005
    %v5007 = vpop.f32.mrb[0].mxu0
    %5008 = vdwg.mxu0
    %5009 = vmatprep.subr.mxu0 0.0
    %v5010 = vand.u32 %v4752, 4294901760
    %5011 = vmatpush1.msra.mxu0 %v5010
    %5012 = vmatprep.subr.mxu0 0.0
    %5013 = vmatpush1.msra.mxu0 0.0
    %5014 = vmatprep.subr.mxu0 0.0
    %5015 = vmatpush1.msra.mxu0 0.0
    %5016 = vmatprep.subr.mxu0 0.0
    %5017 = vmatpush1.msra.mxu0 0.0
    %5018 = vmatprep.subr.mxu0 0.0
    %5019 = vmatpush1.msra.mxu0 0.0
    %5020 = vmatprep.subr.mxu0 0.0
    %5021 = vmatpush1.msra.mxu0 0.0
    %5022 = vmatprep.subr.mxu0 0.0
    %5023 = vmatpush1.msra.mxu0 0.0
    %5024 = vmatprep.subr.mxu0 0.0
    %5025 = vmatpush1.msra.mxu0 0.0
    %5026 = vmatprep.subr.mxu0 0.0
    %5027 = vmatpush1.msra.mxu0 0.0
    %5028 = vmatprep.subr.mxu0 0.0
    %5029 = vmatpush1.msra.mxu0 0.0
    %5030 = vmatprep.subr.mxu0 0.0
    %5031 = vmatpush1.msra.mxu0 0.0
    %5032 = vmatprep.subr.mxu0 0.0
    %5033 = vmatpush1.msra.mxu0 0.0
    %5034 = vmatprep.subr.mxu0 0.0
    %5035 = vmatpush1.msra.mxu0 0.0
    %5036 = vmatprep.subr.mxu0 0.0
    %5037 = vmatpush1.msra.mxu0 0.0
    %5038 = vmatprep.subr.mxu0 0.0
    %5039 = vmatpush1.msra.mxu0 0.0
    %5040 = vmatprep.subr.mxu0 0.0
    %5041 = vmatpush1.msra.mxu0 0.0
    %5042 = vmatprep.subr.mxu0 0.0
    %5043 = vmatpush1.msra.mxu0 0.0
    %5044 = vmatprep.subr.mxu0 0.0
    %5045 = vmatpush1.msra.mxu0 0.0
    %5046 = vmatprep.subr.mxu0 0.0
    %5047 = vmatpush1.msra.mxu0 0.0
    %5048 = vmatprep.subr.mxu0 0.0
    %5049 = vmatpush1.msra.mxu0 0.0
    %5050 = vmatprep.subr.mxu0 0.0
    %5051 = vmatpush1.msra.mxu0 0.0
    %5052 = vmatprep.subr.mxu0 0.0
    %5053 = vmatpush1.msra.mxu0 0.0
    %5054 = vmatprep.subr.mxu0 0.0
    %5055 = vmatpush1.msra.mxu0 0.0
    %5056 = vmatprep.subr.mxu0 0.0
    %5057 = vmatpush1.msra.mxu0 0.0
    %5058 = vmatprep.subr.mxu0 0.0
    %5059 = vmatpush1.msra.mxu0 0.0
    %5060 = vmatprep.subr.mxu0 0.0
    %5061 = vmatpush1.msra.mxu0 0.0
    %5062 = vmatprep.subr.mxu0 0.0
    %5063 = vmatpush1.msra.mxu0 0.0
    %5064 = vmatprep.subr.mxu0 0.0
    %5065 = vmatpush1.msra.mxu0 0.0
    %5066 = vmatprep.subr.mxu0 0.0
    %5067 = vmatpush1.msra.mxu0 0.0
    %5068 = vmatprep.subr.mxu0 0.0
    %5069 = vmatpush1.msra.mxu0 0.0
    %5070 = vmatprep.subr.mxu0 0.0
    %5071 = vmatpush1.msra.mxu0 0.0
    %5072 = vmatprep.subr.mxu0 0.0
    %5073 = vmatpush1.msra.mxu0 0.0
    %5074 = vmatprep.mubr.f32.mxu0 0.0
    %v5075 = vand.u32 %v4755, 4294901760
    %v5076 = vsub.f32 %v4755, %v5075
    %v5077 = vand.u32 %v5076, 4294901760
    %5078 = vmatmul.mubr.f32.gmra.mrb[0].mxu0 %v5077
    %v5079 = vpop.f32.mrb[0].mxu0
    %v5080 = vadd.f32 %v4999, %v5079
    %v5081 = vpop.f32.mrb[0].mxu0
    %5082 = vmatprep.mubr.f32.mxu0 0.0
    %v5083 = vand.u32 %v4758, 4294901760
    %v5084 = vsub.f32 %v4758, %v5083
    %v5085 = vand.u32 %v5084, 4294901760
    %5086 = vmatmul.mubr.f32.gmra.mrb[0].mxu0 %v5085
    %v5087 = vpop.f32.mrb[0].mxu0
    %v5088 = vadd.f32 %v5006, %v5087
    %v5089 = vpop.f32.mrb[0].mxu0
    %5090 = vdwg.mxu0
    %5091 = vmatprep.subr.mxu0 0.0
    %v5092 = vand.u32 %v4752, 4294901760
    %v5093 = vsub.f32 %v4752, %v5092
    %v5094 = vand.u32 %v5093, 4294901760
    %5095 = vmatpush1.msra.mxu0 %v5094
    %5096 = vmatprep.subr.mxu0 0.0
    %5097 = vmatpush1.msra.mxu0 0.0
    %5098 = vmatprep.subr.mxu0 0.0
    %5099 = vmatpush1.msra.mxu0 0.0
    %5100 = vmatprep.subr.mxu0 0.0
    %5101 = vmatpush1.msra.mxu0 0.0
    %5102 = vmatprep.subr.mxu0 0.0
    %5103 = vmatpush1.msra.mxu0 0.0
    %5104 = vmatprep.subr.mxu0 0.0
    %5105 = vmatpush1.msra.mxu0 0.0
    %5106 = vmatprep.subr.mxu0 0.0
    %5107 = vmatpush1.msra.mxu0 0.0
    %5108 = vmatprep.subr.mxu0 0.0
    %5109 = vmatpush1.msra.mxu0 0.0
    %5110 = vmatprep.subr.mxu0 0.0
    %5111 = vmatpush1.msra.mxu0 0.0
    %5112 = vmatprep.subr.mxu0 0.0
    %5113 = vmatpush1.msra.mxu0 0.0
    %5114 = vmatprep.subr.mxu0 0.0
    %5115 = vmatpush1.msra.mxu0 0.0
    %5116 = vmatprep.subr.mxu0 0.0
    %5117 = vmatpush1.msra.mxu0 0.0
    %5118 = vmatprep.subr.mxu0 0.0
    %5119 = vmatpush1.msra.mxu0 0.0
    %5120 = vmatprep.subr.mxu0 0.0
    %5121 = vmatpush1.msra.mxu0 0.0
    %5122 = vmatprep.subr.mxu0 0.0
    %5123 = vmatpush1.msra.mxu0 0.0
    %5124 = vmatprep.subr.mxu0 0.0
    %5125 = vmatpush1.msra.mxu0 0.0
    %5126 = vmatprep.subr.mxu0 0.0
    %5127 = vmatpush1.msra.mxu0 0.0
    %5128 = vmatprep.subr.mxu0 0.0
    %5129 = vmatpush1.msra.mxu0 0.0
    %5130 = vmatprep.subr.mxu0 0.0
    %5131 = vmatpush1.msra.mxu0 0.0
    %5132 = vmatprep.subr.mxu0 0.0
    %5133 = vmatpush1.msra.mxu0 0.0
    %5134 = vmatprep.subr.mxu0 0.0
    %5135 = vmatpush1.msra.mxu0 0.0
    %5136 = vmatprep.subr.mxu0 0.0
    %5137 = vmatpush1.msra.mxu0 0.0
    %5138 = vmatprep.subr.mxu0 0.0
    %5139 = vmatpush1.msra.mxu0 0.0
    %5140 = vmatprep.subr.mxu0 0.0
    %5141 = vmatpush1.msra.mxu0 0.0
    %5142 = vmatprep.subr.mxu0 0.0
    %5143 = vmatpush1.msra.mxu0 0.0
    %5144 = vmatprep.subr.mxu0 0.0
    %5145 = vmatpush1.msra.mxu0 0.0
    %5146 = vmatprep.subr.mxu0 0.0
    %5147 = vmatpush1.msra.mxu0 0.0
    %5148 = vmatprep.subr.mxu0 0.0
    %5149 = vmatpush1.msra.mxu0 0.0
    %5150 = vmatprep.subr.mxu0 0.0
    %5151 = vmatpush1.msra.mxu0 0.0
    %5152 = vmatprep.subr.mxu0 0.0
    %5153 = vmatpush1.msra.mxu0 0.0
    %5154 = vmatprep.subr.mxu0 0.0
    %5155 = vmatpush1.msra.mxu0 0.0
    %5156 = vmatprep.subr.mxu0 0.0
    %5157 = vmatpush1.msra.mxu0 0.0
    %5158 = vmatprep.mubr.f32.mxu0 0.0
    %v5159 = vand.u32 %v4755, 4294901760
    %5160 = vmatmul.mubr.f32.gmra.mrb[0].mxu0 %v5159
    %v5161 = vpop.f32.mrb[0].mxu0
    %v5162 = vadd.f32 %v5080, %v5161
    %v5163 = vpop.f32.mrb[0].mxu0
    %5164 = vmatprep.mubr.f32.mxu0 0.0
    %v5165 = vand.u32 %v4758, 4294901760
    %5166 = vmatmul.mubr.f32.gmra.mrb[0].mxu0 %v5165
    %v5167 = vpop.f32.mrb[0].mxu0
    %v5168 = vadd.f32 %v5088, %v5167
    %v5169 = vpop.f32.mrb[0].mxu0
    %5170 = vdwg.mxu0
    %5171 = vmatprep.subr.mxu0 0.0
    %v5172 = vand.u32 %v4752, 4294901760
    %5173 = vmatpush1.msra.mxu0 %v5172
    %5174 = vmatprep.subr.mxu0 0.0
    %5175 = vmatpush1.msra.mxu0 0.0
    %5176 = vmatprep.subr.mxu0 0.0
    %5177 = vmatpush1.msra.mxu0 0.0
    %5178 = vmatprep.subr.mxu0 0.0
    %5179 = vmatpush1.msra.mxu0 0.0
    %5180 = vmatprep.subr.mxu0 0.0
    %5181 = vmatpush1.msra.mxu0 0.0
    %5182 = vmatprep.subr.mxu0 0.0
    %5183 = vmatpush1.msra.mxu0 0.0
    %5184 = vmatprep.subr.mxu0 0.0
    %5185 = vmatpush1.msra.mxu0 0.0
    %5186 = vmatprep.subr.mxu0 0.0
    %5187 = vmatpush1.msra.mxu0 0.0
    %5188 = vmatprep.subr.mxu0 0.0
    %5189 = vmatpush1.msra.mxu0 0.0
    %5190 = vmatprep.subr.mxu0 0.0
    %5191 = vmatpush1.msra.mxu0 0.0
    %5192 = vmatprep.subr.mxu0 0.0
    %5193 = vmatpush1.msra.mxu0 0.0
    %5194 = vmatprep.subr.mxu0 0.0
    %5195 = vmatpush1.msra.mxu0 0.0
    %5196 = vmatprep.subr.mxu0 0.0
    %5197 = vmatpush1.msra.mxu0 0.0
    %5198 = vmatprep.subr.mxu0 0.0
    %5199 = vmatpush1.msra.mxu0 0.0
    %5200 = vmatprep.subr.mxu0 0.0
    %5201 = vmatpush1.msra.mxu0 0.0
    %5202 = vmatprep.subr.mxu0 0.0
    %5203 = vmatpush1.msra.mxu0 0.0
    %5204 = vmatprep.subr.mxu0 0.0
    %5205 = vmatpush1.msra.mxu0 0.0
    %5206 = vmatprep.subr.mxu0 0.0
    %5207 = vmatpush1.msra.mxu0 0.0
    %5208 = vmatprep.subr.mxu0 0.0
    %5209 = vmatpush1.msra.mxu0 0.0
    %5210 = vmatprep.subr.mxu0 0.0
    %5211 = vmatpush1.msra.mxu0 0.0
    %5212 = vmatprep.subr.mxu0 0.0
    %5213 = vmatpush1.msra.mxu0 0.0
    %5214 = vmatprep.subr.mxu0 0.0
    %5215 = vmatpush1.msra.mxu0 0.0
    %5216 = vmatprep.subr.mxu0 0.0
    %5217 = vmatpush1.msra.mxu0 0.0
    %5218 = vmatprep.subr.mxu0 0.0
    %5219 = vmatpush1.msra.mxu0 0.0
    %5220 = vmatprep.subr.mxu0 0.0
    %5221 = vmatpush1.msra.mxu0 0.0
    %5222 = vmatprep.subr.mxu0 0.0
    %5223 = vmatpush1.msra.mxu0 0.0
    %5224 = vmatprep.subr.mxu0 0.0
    %5225 = vmatpush1.msra.mxu0 0.0
    %5226 = vmatprep.subr.mxu0 0.0
    %5227 = vmatpush1.msra.mxu0 0.0
    %5228 = vmatprep.subr.mxu0 0.0
    %5229 = vmatpush1.msra.mxu0 0.0
    %5230 = vmatprep.subr.mxu0 0.0
    %5231 = vmatpush1.msra.mxu0 0.0
    %5232 = vmatprep.subr.mxu0 0.0
    %5233 = vmatpush1.msra.mxu0 0.0
    %5234 = vmatprep.subr.mxu0 0.0
    %5235 = vmatpush1.msra.mxu0 0.0
    %5236 = vmatprep.mubr.f32.mxu0 0.0
    %v5237 = vand.u32 %v4755, 4294901760
    %5238 = vmatmul.mubr.f32.gmra.mrb[0].mxu0 %v5237
    %v5239 = vpop.f32.mrb[0].mxu0
    %v5240 = vadd.f32 %v5162, %v5239
    %v5241 = vpop.f32.mrb[0].mxu0
    %5242 = vmatprep.mubr.f32.mxu0 0.0
    %v5243 = vand.u32 %v4758, 4294901760
    %5244 = vmatmul.mubr.f32.gmra.mrb[0].mxu0 %v5243
    %v5245 = vpop.f32.mrb[0].mxu0
    %v5246 = vadd.f32 %v5168, %v5245
    %v5247 = vpop.f32.mrb[0].mxu0
    %5248 = vdwg.mxu0
    %v5249 = vld [vmem:[%s1 + $0x30] sm:$0xff]
    %v5251 = vsel %vm2308, %v5240, 0
    %5253 = vmatprep.subr.mxu0 0.0
    %v5254 = vand.u32 %v5249, 4294901760
    %5255 = vmatpush1.msra.mxu0 %v5254
    %5256 = vmatprep.subr.mxu0 0.0
    %5257 = vmatpush1.msra.mxu0 0.0
    %5258 = vmatprep.subr.mxu0 0.0
    %5259 = vmatpush1.msra.mxu0 0.0
    %5260 = vmatprep.subr.mxu0 0.0
    %5261 = vmatpush1.msra.mxu0 0.0
    %5262 = vmatprep.subr.mxu0 0.0
    %5263 = vmatpush1.msra.mxu0 0.0
    %5264 = vmatprep.subr.mxu0 0.0
    %5265 = vmatpush1.msra.mxu0 0.0
    %5266 = vmatprep.subr.mxu0 0.0
    %5267 = vmatpush1.msra.mxu0 0.0
    %5268 = vmatprep.subr.mxu0 0.0
    %5269 = vmatpush1.msra.mxu0 0.0
    %5270 = vmatprep.subr.mxu0 0.0
    %5271 = vmatpush1.msra.mxu0 0.0
    %5272 = vmatprep.subr.mxu0 0.0
    %5273 = vmatpush1.msra.mxu0 0.0
    %5274 = vmatprep.subr.mxu0 0.0
    %5275 = vmatpush1.msra.mxu0 0.0
    %5276 = vmatprep.subr.mxu0 0.0
    %5277 = vmatpush1.msra.mxu0 0.0
    %5278 = vmatprep.subr.mxu0 0.0
    %5279 = vmatpush1.msra.mxu0 0.0
    %5280 = vmatprep.subr.mxu0 0.0
    %5281 = vmatpush1.msra.mxu0 0.0
    %5282 = vmatprep.subr.mxu0 0.0
    %5283 = vmatpush1.msra.mxu0 0.0
    %5284 = vmatprep.subr.mxu0 0.0
    %5285 = vmatpush1.msra.mxu0 0.0
    %5286 = vmatprep.subr.mxu0 0.0
    %5287 = vmatpush1.msra.mxu0 0.0
    %5288 = vmatprep.subr.mxu0 0.0
    %5289 = vmatpush1.msra.mxu0 0.0
    %5290 = vmatprep.subr.mxu0 0.0
    %5291 = vmatpush1.msra.mxu0 0.0
    %5292 = vmatprep.subr.mxu0 0.0
    %5293 = vmatpush1.msra.mxu0 0.0
    %5294 = vmatprep.subr.mxu0 0.0
    %5295 = vmatpush1.msra.mxu0 0.0
    %5296 = vmatprep.subr.mxu0 0.0
    %5297 = vmatpush1.msra.mxu0 0.0
    %5298 = vmatprep.subr.mxu0 0.0
    %5299 = vmatpush1.msra.mxu0 0.0
    %5300 = vmatprep.subr.mxu0 0.0
    %5301 = vmatpush1.msra.mxu0 0.0
    %5302 = vmatprep.subr.mxu0 0.0
    %5303 = vmatpush1.msra.mxu0 0.0
    %5304 = vmatprep.subr.mxu0 0.0
    %5305 = vmatpush1.msra.mxu0 0.0
    %5306 = vmatprep.subr.mxu0 0.0
    %5307 = vmatpush1.msra.mxu0 0.0
    %5308 = vmatprep.subr.mxu0 0.0
    %5309 = vmatpush1.msra.mxu0 0.0
    %5310 = vmatprep.subr.mxu0 0.0
    %5311 = vmatpush1.msra.mxu0 0.0
    %5312 = vmatprep.subr.mxu0 0.0
    %5313 = vmatpush1.msra.mxu0 0.0
    %5314 = vmatprep.subr.mxu0 0.0
    %5315 = vmatpush1.msra.mxu0 0.0
    %5316 = vmatprep.subr.mxu0 0.0
    %5317 = vmatpush1.msra.mxu0 0.0
    %5318 = vmatprep.mubr.f32.mxu0 0.0
    %v5319 = vand.u32 %v5251, 4294901760
    %v5320 = vsub.f32 %v5251, %v5319
    %v5321 = vand.u32 %v5320, 4294901760
    %v5322 = vsub.f32 %v5320, %v5321
    %v5323 = vand.u32 %v5322, 4294901760
    %5324 = vmatmul.mubr.f32.gmra.mrb[0].mxu0 %v5323
    %v5325 = vpop.f32.mrb[0].mxu0
    %v5326 = vadd.f32 0.0, %v5325
    %v5327 = vpop.f32.mrb[0].mxu0
    %5328 = vdwg.mxu0
    %5329 = vmatprep.subr.mxu0 0.0
    %v5330 = vand.u32 %v5249, 4294901760
    %v5331 = vsub.f32 %v5249, %v5330
    %v5332 = vand.u32 %v5331, 4294901760
    %v5333 = vsub.f32 %v5331, %v5332
    %v5334 = vand.u32 %v5333, 4294901760
    %5335 = vmatpush1.msra.mxu0 %v5334
    %5336 = vmatprep.subr.mxu0 0.0
    %5337 = vmatpush1.msra.mxu0 0.0
    %5338 = vmatprep.subr.mxu0 0.0
    %5339 = vmatpush1.msra.mxu0 0.0
    %5340 = vmatprep.subr.mxu0 0.0
    %5341 = vmatpush1.msra.mxu0 0.0
    %5342 = vmatprep.subr.mxu0 0.0
    %5343 = vmatpush1.msra.mxu0 0.0
    %5344 = vmatprep.subr.mxu0 0.0
    %5345 = vmatpush1.msra.mxu0 0.0
    %5346 = vmatprep.subr.mxu0 0.0
    %5347 = vmatpush1.msra.mxu0 0.0
    %5348 = vmatprep.subr.mxu0 0.0
    %5349 = vmatpush1.msra.mxu0 0.0
    %5350 = vmatprep.subr.mxu0 0.0
    %5351 = vmatpush1.msra.mxu0 0.0
    %5352 = vmatprep.subr.mxu0 0.0
    %5353 = vmatpush1.msra.mxu0 0.0
    %5354 = vmatprep.subr.mxu0 0.0
    %5355 = vmatpush1.msra.mxu0 0.0
    %5356 = vmatprep.subr.mxu0 0.0
    %5357 = vmatpush1.msra.mxu0 0.0
    %5358 = vmatprep.subr.mxu0 0.0
    %5359 = vmatpush1.msra.mxu0 0.0
    %5360 = vmatprep.subr.mxu0 0.0
    %5361 = vmatpush1.msra.mxu0 0.0
    %5362 = vmatprep.subr.mxu0 0.0
    %5363 = vmatpush1.msra.mxu0 0.0
    %5364 = vmatprep.subr.mxu0 0.0
    %5365 = vmatpush1.msra.mxu0 0.0
    %5366 = vmatprep.subr.mxu0 0.0
    %5367 = vmatpush1.msra.mxu0 0.0
    %5368 = vmatprep.subr.mxu0 0.0
    %5369 = vmatpush1.msra.mxu0 0.0
    %5370 = vmatprep.subr.mxu0 0.0
    %5371 = vmatpush1.msra.mxu0 0.0
    %5372 = vmatprep.subr.mxu0 0.0
    %5373 = vmatpush1.msra.mxu0 0.0
    %5374 = vmatprep.subr.mxu0 0.0
    %5375 = vmatpush1.msra.mxu0 0.0
    %5376 = vmatprep.subr.mxu0 0.0
    %5377 = vmatpush1.msra.mxu0 0.0
    %5378 = vmatprep.subr.mxu0 0.0
    %5379 = vmatpush1.msra.mxu0 0.0
    %5380 = vmatprep.subr.mxu0 0.0
    %5381 = vmatpush1.msra.mxu0 0.0
    %5382 = vmatprep.subr.mxu0 0.0
    %5383 = vmatpush1.msra.mxu0 0.0
    %5384 = vmatprep.subr.mxu0 0.0
    %5385 = vmatpush1.msra.mxu0 0.0
    %5386 = vmatprep.subr.mxu0 0.0
    %5387 = vmatpush1.msra.mxu0 0.0
    %5388 = vmatprep.subr.mxu0 0.0
    %5389 = vmatpush1.msra.mxu0 0.0
    %5390 = vmatprep.subr.mxu0 0.0
    %5391 = vmatpush1.msra.mxu0 0.0
    %5392 = vmatprep.subr.mxu0 0.0
    %5393 = vmatpush1.msra.mxu0 0.0
    %5394 = vmatprep.subr.mxu0 0.0
    %5395 = vmatpush1.msra.mxu0 0.0
    %5396 = vmatprep.subr.mxu0 0.0
    %5397 = vmatpush1.msra.mxu0 0.0
    %5398 = vmatprep.mubr.f32.mxu0 0.0
    %v5399 = vand.u32 %v5251, 4294901760
    %5400 = vmatmul.mubr.f32.gmra.mrb[0].mxu0 %v5399
    %v5401 = vpop.f32.mrb[0].mxu0
    %v5402 = vadd.f32 %v5326, %v5401
    %v5403 = vpop.f32.mrb[0].mxu0
    %5404 = vdwg.mxu0
    %5405 = vmatprep.subr.mxu0 0.0
    %v5406 = vand.u32 %v5249, 4294901760
    %v5407 = vsub.f32 %v5249, %v5406
    %5408 = vmatpush1.msra.mxu0 %v5407
    %5409 = vmatprep.subr.mxu0 0.0
    %5410 = vmatpush1.msra.mxu0 0.0
    %5411 = vmatprep.subr.mxu0 0.0
    %5412 = vmatpush1.msra.mxu0 0.0
    %5413 = vmatprep.subr.mxu0 0.0
    %5414 = vmatpush1.msra.mxu0 0.0
    %5415 = vmatprep.subr.mxu0 0.0
    %5416 = vmatpush1.msra.mxu0 0.0
    %5417 = vmatprep.subr.mxu0 0.0
    %5418 = vmatpush1.msra.mxu0 0.0
    %5419 = vmatprep.subr.mxu0 0.0
    %5420 = vmatpush1.msra.mxu0 0.0
    %5421 = vmatprep.subr.mxu0 0.0
    %5422 = vmatpush1.msra.mxu0 0.0
    %5423 = vmatprep.subr.mxu0 0.0
    %5424 = vmatpush1.msra.mxu0 0.0
    %5425 = vmatprep.subr.mxu0 0.0
    %5426 = vmatpush1.msra.mxu0 0.0
    %5427 = vmatprep.subr.mxu0 0.0
    %5428 = vmatpush1.msra.mxu0 0.0
    %5429 = vmatprep.subr.mxu0 0.0
    %5430 = vmatpush1.msra.mxu0 0.0
    %5431 = vmatprep.subr.mxu0 0.0
    %5432 = vmatpush1.msra.mxu0 0.0
    %5433 = vmatprep.subr.mxu0 0.0
    %5434 = vmatpush1.msra.mxu0 0.0
    %5435 = vmatprep.subr.mxu0 0.0
    %5436 = vmatpush1.msra.mxu0 0.0
    %5437 = vmatprep.subr.mxu0 0.0
    %5438 = vmatpush1.msra.mxu0 0.0
    %5439 = vmatprep.subr.mxu0 0.0
    %5440 = vmatpush1.msra.mxu0 0.0
    %5441 = vmatprep.subr.mxu0 0.0
    %5442 = vmatpush1.msra.mxu0 0.0
    %5443 = vmatprep.subr.mxu0 0.0
    %5444 = vmatpush1.msra.mxu0 0.0
    %5445 = vmatprep.subr.mxu0 0.0
    %5446 = vmatpush1.msra.mxu0 0.0
    %5447 = vmatprep.subr.mxu0 0.0
    %5448 = vmatpush1.msra.mxu0 0.0
    %5449 = vmatprep.subr.mxu0 0.0
    %5450 = vmatpush1.msra.mxu0 0.0
    %5451 = vmatprep.subr.mxu0 0.0
    %5452 = vmatpush1.msra.mxu0 0.0
    %5453 = vmatprep.subr.mxu0 0.0
    %5454 = vmatpush1.msra.mxu0 0.0
    %5455 = vmatprep.subr.mxu0 0.0
    %5456 = vmatpush1.msra.mxu0 0.0
    %5457 = vmatprep.subr.mxu0 0.0
    %5458 = vmatpush1.msra.mxu0 0.0
    %5459 = vmatprep.subr.mxu0 0.0
    %5460 = vmatpush1.msra.mxu0 0.0
    %5461 = vmatprep.subr.mxu0 0.0
    %5462 = vmatpush1.msra.mxu0 0.0
    %5463 = vmatprep.subr.mxu0 0.0
    %5464 = vmatpush1.msra.mxu0 0.0
    %5465 = vmatprep.subr.mxu0 0.0
    %5466 = vmatpush1.msra.mxu0 0.0
    %5467 = vmatprep.subr.mxu0 0.0
    %5468 = vmatpush1.msra.mxu0 0.0
    %5469 = vmatprep.subr.mxu0 0.0
    %5470 = vmatpush1.msra.mxu0 0.0
    %5471 = vmatprep.mubr.f32.mxu0 0.0
    %v5472 = vand.u32 %v5251, 4294901760
    %v5473 = vsub.f32 %v5251, %v5472
    %5474 = vmatmul.mubr.f32.gmra.mrb[0].mxu0 %v5473
    %v5475 = vpop.f32.mrb[0].mxu0
    %v5476 = vadd.f32 %v5402, %v5475
    %v5477 = vpop.f32.mrb[0].mxu0
    %5478 = vdwg.mxu0
    %5479 = vmatprep.subr.mxu0 0.0
    %v5480 = vand.u32 %v5249, 4294901760
    %5481 = vmatpush1.msra.mxu0 %v5480
    %5482 = vmatprep.subr.mxu0 0.0
    %5483 = vmatpush1.msra.mxu0 0.0
    %5484 = vmatprep.subr.mxu0 0.0
    %5485 = vmatpush1.msra.mxu0 0.0
    %5486 = vmatprep.subr.mxu0 0.0
    %5487 = vmatpush1.msra.mxu0 0.0
    %5488 = vmatprep.subr.mxu0 0.0
    %5489 = vmatpush1.msra.mxu0 0.0
    %5490 = vmatprep.subr.mxu0 0.0
    %5491 = vmatpush1.msra.mxu0 0.0
    %5492 = vmatprep.subr.mxu0 0.0
    %5493 = vmatpush1.msra.mxu0 0.0
    %5494 = vmatprep.subr.mxu0 0.0
    %5495 = vmatpush1.msra.mxu0 0.0
    %5496 = vmatprep.subr.mxu0 0.0
    %5497 = vmatpush1.msra.mxu0 0.0
    %5498 = vmatprep.subr.mxu0 0.0
    %5499 = vmatpush1.msra.mxu0 0.0
    %5500 = vmatprep.subr.mxu0 0.0
    %5501 = vmatpush1.msra.mxu0 0.0
    %5502 = vmatprep.subr.mxu0 0.0
    %5503 = vmatpush1.msra.mxu0 0.0
    %5504 = vmatprep.subr.mxu0 0.0
    %5505 = vmatpush1.msra.mxu0 0.0
    %5506 = vmatprep.subr.mxu0 0.0
    %5507 = vmatpush1.msra.mxu0 0.0
    %5508 = vmatprep.subr.mxu0 0.0
    %5509 = vmatpush1.msra.mxu0 0.0
    %5510 = vmatprep.subr.mxu0 0.0
    %5511 = vmatpush1.msra.mxu0 0.0
    %5512 = vmatprep.subr.mxu0 0.0
    %5513 = vmatpush1.msra.mxu0 0.0
    %5514 = vmatprep.subr.mxu0 0.0
    %5515 = vmatpush1.msra.mxu0 0.0
    %5516 = vmatprep.subr.mxu0 0.0
    %5517 = vmatpush1.msra.mxu0 0.0
    %5518 = vmatprep.subr.mxu0 0.0
    %5519 = vmatpush1.msra.mxu0 0.0
    %5520 = vmatprep.subr.mxu0 0.0
    %5521 = vmatpush1.msra.mxu0 0.0
    %5522 = vmatprep.subr.mxu0 0.0
    %5523 = vmatpush1.msra.mxu0 0.0
    %5524 = vmatprep.subr.mxu0 0.0
    %5525 = vmatpush1.msra.mxu0 0.0
    %5526 = vmatprep.subr.mxu0 0.0
    %5527 = vmatpush1.msra.mxu0 0.0
    %5528 = vmatprep.subr.mxu0 0.0
    %5529 = vmatpush1.msra.mxu0 0.0
    %5530 = vmatprep.subr.mxu0 0.0
    %5531 = vmatpush1.msra.mxu0 0.0
    %5532 = vmatprep.subr.mxu0 0.0
    %5533 = vmatpush1.msra.mxu0 0.0
    %5534 = vmatprep.subr.mxu0 0.0
    %5535 = vmatpush1.msra.mxu0 0.0
    %5536 = vmatprep.subr.mxu0 0.0
    %5537 = vmatpush1.msra.mxu0 0.0
    %5538 = vmatprep.subr.mxu0 0.0
    %5539 = vmatpush1.msra.mxu0 0.0
    %5540 = vmatprep.subr.mxu0 0.0
    %5541 = vmatpush1.msra.mxu0 0.0
    %5542 = vmatprep.subr.mxu0 0.0
    %5543 = vmatpush1.msra.mxu0 0.0
    %5544 = vmatprep.mubr.f32.mxu0 0.0
    %v5545 = vand.u32 %v5251, 4294901760
    %v5546 = vsub.f32 %v5251, %v5545
    %v5547 = vand.u32 %v5546, 4294901760
    %5548 = vmatmul.mubr.f32.gmra.mrb[0].mxu0 %v5547
    %v5549 = vpop.f32.mrb[0].mxu0
    %v5550 = vadd.f32 %v5476, %v5549
    %v5551 = vpop.f32.mrb[0].mxu0
    %5552 = vdwg.mxu0
    %5553 = vmatprep.subr.mxu0 0.0
    %v5554 = vand.u32 %v5249, 4294901760
    %v5555 = vsub.f32 %v5249, %v5554
    %v5556 = vand.u32 %v5555, 4294901760
    %5557 = vmatpush1.msra.mxu0 %v5556
    %5558 = vmatprep.subr.mxu0 0.0
    %5559 = vmatpush1.msra.mxu0 0.0
    %5560 = vmatprep.subr.mxu0 0.0
    %5561 = vmatpush1.msra.mxu0 0.0
    %5562 = vmatprep.subr.mxu0 0.0
    %5563 = vmatpush1.msra.mxu0 0.0
    %5564 = vmatprep.subr.mxu0 0.0
    %5565 = vmatpush1.msra.mxu0 0.0
    %5566 = vmatprep.subr.mxu0 0.0
    %5567 = vmatpush1.msra.mxu0 0.0
    %5568 = vmatprep.subr.mxu0 0.0
    %5569 = vmatpush1.msra.mxu0 0.0
    %5570 = vmatprep.subr.mxu0 0.0
    %5571 = vmatpush1.msra.mxu0 0.0
    %5572 = vmatprep.subr.mxu0 0.0
    %5573 = vmatpush1.msra.mxu0 0.0
    %5574 = vmatprep.subr.mxu0 0.0
    %5575 = vmatpush1.msra.mxu0 0.0
    %5576 = vmatprep.subr.mxu0 0.0
    %5577 = vmatpush1.msra.mxu0 0.0
    %5578 = vmatprep.subr.mxu0 0.0
    %5579 = vmatpush1.msra.mxu0 0.0
    %5580 = vmatprep.subr.mxu0 0.0
    %5581 = vmatpush1.msra.mxu0 0.0
    %5582 = vmatprep.subr.mxu0 0.0
    %5583 = vmatpush1.msra.mxu0 0.0
    %5584 = vmatprep.subr.mxu0 0.0
    %5585 = vmatpush1.msra.mxu0 0.0
    %5586 = vmatprep.subr.mxu0 0.0
    %5587 = vmatpush1.msra.mxu0 0.0
    %5588 = vmatprep.subr.mxu0 0.0
    %5589 = vmatpush1.msra.mxu0 0.0
    %5590 = vmatprep.subr.mxu0 0.0
    %5591 = vmatpush1.msra.mxu0 0.0
    %5592 = vmatprep.subr.mxu0 0.0
    %5593 = vmatpush1.msra.mxu0 0.0
    %5594 = vmatprep.subr.mxu0 0.0
    %5595 = vmatpush1.msra.mxu0 0.0
    %5596 = vmatprep.subr.mxu0 0.0
    %5597 = vmatpush1.msra.mxu0 0.0
    %5598 = vmatprep.subr.mxu0 0.0
    %5599 = vmatpush1.msra.mxu0 0.0
    %5600 = vmatprep.subr.mxu0 0.0
    %5601 = vmatpush1.msra.mxu0 0.0
    %5602 = vmatprep.subr.mxu0 0.0
    %5603 = vmatpush1.msra.mxu0 0.0
    %5604 = vmatprep.subr.mxu0 0.0
    %5605 = vmatpush1.msra.mxu0 0.0
    %5606 = vmatprep.subr.mxu0 0.0
    %5607 = vmatpush1.msra.mxu0 0.0
    %5608 = vmatprep.subr.mxu0 0.0
    %5609 = vmatpush1.msra.mxu0 0.0
    %5610 = vmatprep.subr.mxu0 0.0
    %5611 = vmatpush1.msra.mxu0 0.0
    %5612 = vmatprep.subr.mxu0 0.0
    %5613 = vmatpush1.msra.mxu0 0.0
    %5614 = vmatprep.subr.mxu0 0.0
    %5615 = vmatpush1.msra.mxu0 0.0
    %5616 = vmatprep.subr.mxu0 0.0
    %5617 = vmatpush1.msra.mxu0 0.0
    %5618 = vmatprep.subr.mxu0 0.0
    %5619 = vmatpush1.msra.mxu0 0.0
    %5620 = vmatprep.mubr.f32.mxu0 0.0
    %v5621 = vand.u32 %v5251, 4294901760
    %5622 = vmatmul.mubr.f32.gmra.mrb[0].mxu0 %v5621
    %v5623 = vpop.f32.mrb[0].mxu0
    %v5624 = vadd.f32 %v5550, %v5623
    %v5625 = vpop.f32.mrb[0].mxu0
    %5626 = vdwg.mxu0
    %5627 = vmatprep.subr.mxu0 0.0
    %v5628 = vand.u32 %v5249, 4294901760
    %5629 = vmatpush1.msra.mxu0 %v5628
    %5630 = vmatprep.subr.mxu0 0.0
    %5631 = vmatpush1.msra.mxu0 0.0
    %5632 = vmatprep.subr.mxu0 0.0
    %5633 = vmatpush1.msra.mxu0 0.0
    %5634 = vmatprep.subr.mxu0 0.0
    %5635 = vmatpush1.msra.mxu0 0.0
    %5636 = vmatprep.subr.mxu0 0.0
    %5637 = vmatpush1.msra.mxu0 0.0
    %5638 = vmatprep.subr.mxu0 0.0
    %5639 = vmatpush1.msra.mxu0 0.0
    %5640 = vmatprep.subr.mxu0 0.0
    %5641 = vmatpush1.msra.mxu0 0.0
    %5642 = vmatprep.subr.mxu0 0.0
    %5643 = vmatpush1.msra.mxu0 0.0
    %5644 = vmatprep.subr.mxu0 0.0
    %5645 = vmatpush1.msra.mxu0 0.0
    %5646 = vmatprep.subr.mxu0 0.0
    %5647 = vmatpush1.msra.mxu0 0.0
    %5648 = vmatprep.subr.mxu0 0.0
    %5649 = vmatpush1.msra.mxu0 0.0
    %5650 = vmatprep.subr.mxu0 0.0
    %5651 = vmatpush1.msra.mxu0 0.0
    %5652 = vmatprep.subr.mxu0 0.0
    %5653 = vmatpush1.msra.mxu0 0.0
    %5654 = vmatprep.subr.mxu0 0.0
    %5655 = vmatpush1.msra.mxu0 0.0
    %5656 = vmatprep.subr.mxu0 0.0
    %5657 = vmatpush1.msra.mxu0 0.0
    %5658 = vmatprep.subr.mxu0 0.0
    %5659 = vmatpush1.msra.mxu0 0.0
    %5660 = vmatprep.subr.mxu0 0.0
    %5661 = vmatpush1.msra.mxu0 0.0
    %5662 = vmatprep.subr.mxu0 0.0
    %5663 = vmatpush1.msra.mxu0 0.0
    %5664 = vmatprep.subr.mxu0 0.0
    %5665 = vmatpush1.msra.mxu0 0.0
    %5666 = vmatprep.subr.mxu0 0.0
    %5667 = vmatpush1.msra.mxu0 0.0
    %5668 = vmatprep.subr.mxu0 0.0
    %5669 = vmatpush1.msra.mxu0 0.0
    %5670 = vmatprep.subr.mxu0 0.0
    %5671 = vmatpush1.msra.mxu0 0.0
    %5672 = vmatprep.subr.mxu0 0.0
    %5673 = vmatpush1.msra.mxu0 0.0
    %5674 = vmatprep.subr.mxu0 0.0
    %5675 = vmatpush1.msra.mxu0 0.0
    %5676 = vmatprep.subr.mxu0 0.0
    %5677 = vmatpush1.msra.mxu0 0.0
    %5678 = vmatprep.subr.mxu0 0.0
    %5679 = vmatpush1.msra.mxu0 0.0
    %5680 = vmatprep.subr.mxu0 0.0
    %5681 = vmatpush1.msra.mxu0 0.0
    %5682 = vmatprep.subr.mxu0 0.0
    %5683 = vmatpush1.msra.mxu0 0.0
    %5684 = vmatprep.subr.mxu0 0.0
    %5685 = vmatpush1.msra.mxu0 0.0
    %5686 = vmatprep.subr.mxu0 0.0
    %5687 = vmatpush1.msra.mxu0 0.0
    %5688 = vmatprep.subr.mxu0 0.0
    %5689 = vmatpush1.msra.mxu0 0.0
    %5690 = vmatprep.subr.mxu0 0.0
    %5691 = vmatpush1.msra.mxu0 0.0
    %5692 = vmatprep.mubr.f32.mxu0 0.0
    %v5693 = vand.u32 %v5251, 4294901760
    %5694 = vmatmul.mubr.f32.gmra.mrb[0].mxu0 %v5693
    %v5695 = vpop.f32.mrb[0].mxu0
    %v5696 = vadd.f32 %v5624, %v5695
    %v5697 = vpop.f32.mrb[0].mxu0
    %5698 = vdwg.mxu0
    %v5699 = vadd.f32 %v4225, %v5696
    %v5700 = vld [vmem:[%s1 + $0x38] sm:$0xff]
    %v5702 = vsel %vm2308, %v5246, 0
    %5704 = vmatprep.subr.mxu0 0.0
    %v5705 = vand.u32 %v5700, 4294901760
    %5706 = vmatpush1.msra.mxu0 %v5705
    %5707 = vmatprep.subr.mxu0 0.0
    %5708 = vmatpush1.msra.mxu0 0.0
    %5709 = vmatprep.subr.mxu0 0.0
    %5710 = vmatpush1.msra.mxu0 0.0
    %5711 = vmatprep.subr.mxu0 0.0
    %5712 = vmatpush1.msra.mxu0 0.0
    %5713 = vmatprep.subr.mxu0 0.0
    %5714 = vmatpush1.msra.mxu0 0.0
    %5715 = vmatprep.subr.mxu0 0.0
    %5716 = vmatpush1.msra.mxu0 0.0
    %5717 = vmatprep.subr.mxu0 0.0
    %5718 = vmatpush1.msra.mxu0 0.0
    %5719 = vmatprep.subr.mxu0 0.0
    %5720 = vmatpush1.msra.mxu0 0.0
    %5721 = vmatprep.subr.mxu0 0.0
    %5722 = vmatpush1.msra.mxu0 0.0
    %5723 = vmatprep.subr.mxu0 0.0
    %5724 = vmatpush1.msra.mxu0 0.0
    %5725 = vmatprep.subr.mxu0 0.0
    %5726 = vmatpush1.msra.mxu0 0.0
    %5727 = vmatprep.subr.mxu0 0.0
    %5728 = vmatpush1.msra.mxu0 0.0
    %5729 = vmatprep.subr.mxu0 0.0
    %5730 = vmatpush1.msra.mxu0 0.0
    %5731 = vmatprep.subr.mxu0 0.0
    %5732 = vmatpush1.msra.mxu0 0.0
    %5733 = vmatprep.subr.mxu0 0.0
    %5734 = vmatpush1.msra.mxu0 0.0
    %5735 = vmatprep.subr.mxu0 0.0
    %5736 = vmatpush1.msra.mxu0 0.0
    %5737 = vmatprep.subr.mxu0 0.0
    %5738 = vmatpush1.msra.mxu0 0.0
    %5739 = vmatprep.subr.mxu0 0.0
    %5740 = vmatpush1.msra.mxu0 0.0
    %5741 = vmatprep.subr.mxu0 0.0
    %5742 = vmatpush1.msra.mxu0 0.0
    %5743 = vmatprep.subr.mxu0 0.0
    %5744 = vmatpush1.msra.mxu0 0.0
    %5745 = vmatprep.subr.mxu0 0.0
    %5746 = vmatpush1.msra.mxu0 0.0
    %5747 = vmatprep.subr.mxu0 0.0
    %5748 = vmatpush1.msra.mxu0 0.0
    %5749 = vmatprep.subr.mxu0 0.0
    %5750 = vmatpush1.msra.mxu0 0.0
    %5751 = vmatprep.subr.mxu0 0.0
    %5752 = vmatpush1.msra.mxu0 0.0
    %5753 = vmatprep.subr.mxu0 0.0
    %5754 = vmatpush1.msra.mxu0 0.0
    %5755 = vmatprep.subr.mxu0 0.0
    %5756 = vmatpush1.msra.mxu0 0.0
    %5757 = vmatprep.subr.mxu0 0.0
    %5758 = vmatpush1.msra.mxu0 0.0
    %5759 = vmatprep.subr.mxu0 0.0
    %5760 = vmatpush1.msra.mxu0 0.0
    %5761 = vmatprep.subr.mxu0 0.0
    %5762 = vmatpush1.msra.mxu0 0.0
    %5763 = vmatprep.subr.mxu0 0.0
    %5764 = vmatpush1.msra.mxu0 0.0
    %5765 = vmatprep.subr.mxu0 0.0
    %5766 = vmatpush1.msra.mxu0 0.0
    %5767 = vmatprep.subr.mxu0 0.0
    %5768 = vmatpush1.msra.mxu0 0.0
    %5769 = vmatprep.mubr.f32.mxu0 0.0
    %v5770 = vand.u32 %v5702, 4294901760
    %v5771 = vsub.f32 %v5702, %v5770
    %v5772 = vand.u32 %v5771, 4294901760
    %v5773 = vsub.f32 %v5771, %v5772
    %v5774 = vand.u32 %v5773, 4294901760
    %5775 = vmatmul.mubr.f32.gmra.mrb[0].mxu0 %v5774
    %v5776 = vpop.f32.mrb[0].mxu0
    %v5777 = vadd.f32 0.0, %v5776
    %v5778 = vpop.f32.mrb[0].mxu0
    %5779 = vdwg.mxu0
    %5780 = vmatprep.subr.mxu0 0.0
    %v5781 = vand.u32 %v5700, 4294901760
    %v5782 = vsub.f32 %v5700, %v5781
    %v5783 = vand.u32 %v5782, 4294901760
    %v5784 = vsub.f32 %v5782, %v5783
    %v5785 = vand.u32 %v5784, 4294901760
    %5786 = vmatpush1.msra.mxu0 %v5785
    %5787 = vmatprep.subr.mxu0 0.0
    %5788 = vmatpush1.msra.mxu0 0.0
    %5789 = vmatprep.subr.mxu0 0.0
    %5790 = vmatpush1.msra.mxu0 0.0
    %5791 = vmatprep.subr.mxu0 0.0
    %5792 = vmatpush1.msra.mxu0 0.0
    %5793 = vmatprep.subr.mxu0 0.0
    %5794 = vmatpush1.msra.mxu0 0.0
    %5795 = vmatprep.subr.mxu0 0.0
    %5796 = vmatpush1.msra.mxu0 0.0
    %5797 = vmatprep.subr.mxu0 0.0
    %5798 = vmatpush1.msra.mxu0 0.0
    %5799 = vmatprep.subr.mxu0 0.0
    %5800 = vmatpush1.msra.mxu0 0.0
    %5801 = vmatprep.subr.mxu0 0.0
    %5802 = vmatpush1.msra.mxu0 0.0
    %5803 = vmatprep.subr.mxu0 0.0
    %5804 = vmatpush1.msra.mxu0 0.0
    %5805 = vmatprep.subr.mxu0 0.0
    %5806 = vmatpush1.msra.mxu0 0.0
    %5807 = vmatprep.subr.mxu0 0.0
    %5808 = vmatpush1.msra.mxu0 0.0
    %5809 = vmatprep.subr.mxu0 0.0
    %5810 = vmatpush1.msra.mxu0 0.0
    %5811 = vmatprep.subr.mxu0 0.0
    %5812 = vmatpush1.msra.mxu0 0.0
    %5813 = vmatprep.subr.mxu0 0.0
    %5814 = vmatpush1.msra.mxu0 0.0
    %5815 = vmatprep.subr.mxu0 0.0
    %5816 = vmatpush1.msra.mxu0 0.0
    %5817 = vmatprep.subr.mxu0 0.0
    %5818 = vmatpush1.msra.mxu0 0.0
    %5819 = vmatprep.subr.mxu0 0.0
    %5820 = vmatpush1.msra.mxu0 0.0
    %5821 = vmatprep.subr.mxu0 0.0
    %5822 = vmatpush1.msra.mxu0 0.0
    %5823 = vmatprep.subr.mxu0 0.0
    %5824 = vmatpush1.msra.mxu0 0.0
    %5825 = vmatprep.subr.mxu0 0.0
    %5826 = vmatpush1.msra.mxu0 0.0
    %5827 = vmatprep.subr.mxu0 0.0
    %5828 = vmatpush1.msra.mxu0 0.0
    %5829 = vmatprep.subr.mxu0 0.0
    %5830 = vmatpush1.msra.mxu0 0.0
    %5831 = vmatprep.subr.mxu0 0.0
    %5832 = vmatpush1.msra.mxu0 0.0
    %5833 = vmatprep.subr.mxu0 0.0
    %5834 = vmatpush1.msra.mxu0 0.0
    %5835 = vmatprep.subr.mxu0 0.0
    %5836 = vmatpush1.msra.mxu0 0.0
    %5837 = vmatprep.subr.mxu0 0.0
    %5838 = vmatpush1.msra.mxu0 0.0
    %5839 = vmatprep.subr.mxu0 0.0
    %5840 = vmatpush1.msra.mxu0 0.0
    %5841 = vmatprep.subr.mxu0 0.0
    %5842 = vmatpush1.msra.mxu0 0.0
    %5843 = vmatprep.subr.mxu0 0.0
    %5844 = vmatpush1.msra.mxu0 0.0
    %5845 = vmatprep.subr.mxu0 0.0
    %5846 = vmatpush1.msra.mxu0 0.0
    %5847 = vmatprep.subr.mxu0 0.0
    %5848 = vmatpush1.msra.mxu0 0.0
    %5849 = vmatprep.mubr.f32.mxu0 0.0
    %v5850 = vand.u32 %v5702, 4294901760
    %5851 = vmatmul.mubr.f32.gmra.mrb[0].mxu0 %v5850
    %v5852 = vpop.f32.mrb[0].mxu0
    %v5853 = vadd.f32 %v5777, %v5852
    %v5854 = vpop.f32.mrb[0].mxu0
    %5855 = vdwg.mxu0
    %5856 = vmatprep.subr.mxu0 0.0
    %v5857 = vand.u32 %v5700, 4294901760
    %v5858 = vsub.f32 %v5700, %v5857
    %5859 = vmatpush1.msra.mxu0 %v5858
    %5860 = vmatprep.subr.mxu0 0.0
    %5861 = vmatpush1.msra.mxu0 0.0
    %5862 = vmatprep.subr.mxu0 0.0
    %5863 = vmatpush1.msra.mxu0 0.0
    %5864 = vmatprep.subr.mxu0 0.0
    %5865 = vmatpush1.msra.mxu0 0.0
    %5866 = vmatprep.subr.mxu0 0.0
    %5867 = vmatpush1.msra.mxu0 0.0
    %5868 = vmatprep.subr.mxu0 0.0
    %5869 = vmatpush1.msra.mxu0 0.0
    %5870 = vmatprep.subr.mxu0 0.0
    %5871 = vmatpush1.msra.mxu0 0.0
    %5872 = vmatprep.subr.mxu0 0.0
    %5873 = vmatpush1.msra.mxu0 0.0
    %5874 = vmatprep.subr.mxu0 0.0
    %5875 = vmatpush1.msra.mxu0 0.0
    %5876 = vmatprep.subr.mxu0 0.0
    %5877 = vmatpush1.msra.mxu0 0.0
    %5878 = vmatprep.subr.mxu0 0.0
    %5879 = vmatpush1.msra.mxu0 0.0
    %5880 = vmatprep.subr.mxu0 0.0
    %5881 = vmatpush1.msra.mxu0 0.0
    %5882 = vmatprep.subr.mxu0 0.0
    %5883 = vmatpush1.msra.mxu0 0.0
    %5884 = vmatprep.subr.mxu0 0.0
    %5885 = vmatpush1.msra.mxu0 0.0
    %5886 = vmatprep.subr.mxu0 0.0
    %5887 = vmatpush1.msra.mxu0 0.0
    %5888 = vmatprep.subr.mxu0 0.0
    %5889 = vmatpush1.msra.mxu0 0.0
    %5890 = vmatprep.subr.mxu0 0.0
    %5891 = vmatpush1.msra.mxu0 0.0
    %5892 = vmatprep.subr.mxu0 0.0
    %5893 = vmatpush1.msra.mxu0 0.0
    %5894 = vmatprep.subr.mxu0 0.0
    %5895 = vmatpush1.msra.mxu0 0.0
    %5896 = vmatprep.subr.mxu0 0.0
    %5897 = vmatpush1.msra.mxu0 0.0
    %5898 = vmatprep.subr.mxu0 0.0
    %5899 = vmatpush1.msra.mxu0 0.0
    %5900 = vmatprep.subr.mxu0 0.0
    %5901 = vmatpush1.msra.mxu0 0.0
    %5902 = vmatprep.subr.mxu0 0.0
    %5903 = vmatpush1.msra.mxu0 0.0
    %5904 = vmatprep.subr.mxu0 0.0
    %5905 = vmatpush1.msra.mxu0 0.0
    %5906 = vmatprep.subr.mxu0 0.0
    %5907 = vmatpush1.msra.mxu0 0.0
    %5908 = vmatprep.subr.mxu0 0.0
    %5909 = vmatpush1.msra.mxu0 0.0
    %5910 = vmatprep.subr.mxu0 0.0
    %5911 = vmatpush1.msra.mxu0 0.0
    %5912 = vmatprep.subr.mxu0 0.0
    %5913 = vmatpush1.msra.mxu0 0.0
    %5914 = vmatprep.subr.mxu0 0.0
    %5915 = vmatpush1.msra.mxu0 0.0
    %5916 = vmatprep.subr.mxu0 0.0
    %5917 = vmatpush1.msra.mxu0 0.0
    %5918 = vmatprep.subr.mxu0 0.0
    %5919 = vmatpush1.msra.mxu0 0.0
    %5920 = vmatprep.subr.mxu0 0.0
    %5921 = vmatpush1.msra.mxu0 0.0
    %5922 = vmatprep.mubr.f32.mxu0 0.0
    %v5923 = vand.u32 %v5702, 4294901760
    %v5924 = vsub.f32 %v5702, %v5923
    %5925 = vmatmul.mubr.f32.gmra.mrb[0].mxu0 %v5924
    %v5926 = vpop.f32.mrb[0].mxu0
    %v5927 = vadd.f32 %v5853, %v5926
    %v5928 = vpop.f32.mrb[0].mxu0
    %5929 = vdwg.mxu0
    %5930 = vmatprep.subr.mxu0 0.0
    %v5931 = vand.u32 %v5700, 4294901760
    %5932 = vmatpush1.msra.mxu0 %v5931
    %5933 = vmatprep.subr.mxu0 0.0
    %5934 = vmatpush1.msra.mxu0 0.0
    %5935 = vmatprep.subr.mxu0 0.0
    %5936 = vmatpush1.msra.mxu0 0.0
    %5937 = vmatprep.subr.mxu0 0.0
    %5938 = vmatpush1.msra.mxu0 0.0
    %5939 = vmatprep.subr.mxu0 0.0
    %5940 = vmatpush1.msra.mxu0 0.0
    %5941 = vmatprep.subr.mxu0 0.0
    %5942 = vmatpush1.msra.mxu0 0.0
    %5943 = vmatprep.subr.mxu0 0.0
    %5944 = vmatpush1.msra.mxu0 0.0
    %5945 = vmatprep.subr.mxu0 0.0
    %5946 = vmatpush1.msra.mxu0 0.0
    %5947 = vmatprep.subr.mxu0 0.0
    %5948 = vmatpush1.msra.mxu0 0.0
    %5949 = vmatprep.subr.mxu0 0.0
    %5950 = vmatpush1.msra.mxu0 0.0
    %5951 = vmatprep.subr.mxu0 0.0
    %5952 = vmatpush1.msra.mxu0 0.0
    %5953 = vmatprep.subr.mxu0 0.0
    %5954 = vmatpush1.msra.mxu0 0.0
    %5955 = vmatprep.subr.mxu0 0.0
    %5956 = vmatpush1.msra.mxu0 0.0
    %5957 = vmatprep.subr.mxu0 0.0
    %5958 = vmatpush1.msra.mxu0 0.0
    %5959 = vmatprep.subr.mxu0 0.0
    %5960 = vmatpush1.msra.mxu0 0.0
    %5961 = vmatprep.subr.mxu0 0.0
    %5962 = vmatpush1.msra.mxu0 0.0
    %5963 = vmatprep.subr.mxu0 0.0
    %5964 = vmatpush1.msra.mxu0 0.0
    %5965 = vmatprep.subr.mxu0 0.0
    %5966 = vmatpush1.msra.mxu0 0.0
    %5967 = vmatprep.subr.mxu0 0.0
    %5968 = vmatpush1.msra.mxu0 0.0
    %5969 = vmatprep.subr.mxu0 0.0
    %5970 = vmatpush1.msra.mxu0 0.0
    %5971 = vmatprep.subr.mxu0 0.0
    %5972 = vmatpush1.msra.mxu0 0.0
    %5973 = vmatprep.subr.mxu0 0.0
    %5974 = vmatpush1.msra.mxu0 0.0
    %5975 = vmatprep.subr.mxu0 0.0
    %5976 = vmatpush1.msra.mxu0 0.0
    %5977 = vmatprep.subr.mxu0 0.0
    %5978 = vmatpush1.msra.mxu0 0.0
    %5979 = vmatprep.subr.mxu0 0.0
    %5980 = vmatpush1.msra.mxu0 0.0
    %5981 = vmatprep.subr.mxu0 0.0
    %5982 = vmatpush1.msra.mxu0 0.0
    %5983 = vmatprep.subr.mxu0 0.0
    %5984 = vmatpush1.msra.mxu0 0.0
    %5985 = vmatprep.subr.mxu0 0.0
    %5986 = vmatpush1.msra.mxu0 0.0
    %5987 = vmatprep.subr.mxu0 0.0
    %5988 = vmatpush1.msra.mxu0 0.0
    %5989 = vmatprep.subr.mxu0 0.0
    %5990 = vmatpush1.msra.mxu0 0.0
    %5991 = vmatprep.subr.mxu0 0.0
    %5992 = vmatpush1.msra.mxu0 0.0
    %5993 = vmatprep.subr.mxu0 0.0
    %5994 = vmatpush1.msra.mxu0 0.0
    %5995 = vmatprep.mubr.f32.mxu0 0.0
    %v5996 = vand.u32 %v5702, 4294901760
    %v5997 = vsub.f32 %v5702, %v5996
    %v5998 = vand.u32 %v5997, 4294901760
    %5999 = vmatmul.mubr.f32.gmra.mrb[0].mxu0 %v5998
    %v6000 = vpop.f32.mrb[0].mxu0
    %v6001 = vadd.f32 %v5927, %v6000
    %v6002 = vpop.f32.mrb[0].mxu0
    %6003 = vdwg.mxu0
    %6004 = vmatprep.subr.mxu0 0.0
    %v6005 = vand.u32 %v5700, 4294901760
    %v6006 = vsub.f32 %v5700, %v6005
    %v6007 = vand.u32 %v6006, 4294901760
    %6008 = vmatpush1.msra.mxu0 %v6007
    %6009 = vmatprep.subr.mxu0 0.0
    %6010 = vmatpush1.msra.mxu0 0.0
    %6011 = vmatprep.subr.mxu0 0.0
    %6012 = vmatpush1.msra.mxu0 0.0
    %6013 = vmatprep.subr.mxu0 0.0
    %6014 = vmatpush1.msra.mxu0 0.0
    %6015 = vmatprep.subr.mxu0 0.0
    %6016 = vmatpush1.msra.mxu0 0.0
    %6017 = vmatprep.subr.mxu0 0.0
    %6018 = vmatpush1.msra.mxu0 0.0
    %6019 = vmatprep.subr.mxu0 0.0
    %6020 = vmatpush1.msra.mxu0 0.0
    %6021 = vmatprep.subr.mxu0 0.0
    %6022 = vmatpush1.msra.mxu0 0.0
    %6023 = vmatprep.subr.mxu0 0.0
    %6024 = vmatpush1.msra.mxu0 0.0
    %6025 = vmatprep.subr.mxu0 0.0
    %6026 = vmatpush1.msra.mxu0 0.0
    %6027 = vmatprep.subr.mxu0 0.0
    %6028 = vmatpush1.msra.mxu0 0.0
    %6029 = vmatprep.subr.mxu0 0.0
    %6030 = vmatpush1.msra.mxu0 0.0
    %6031 = vmatprep.subr.mxu0 0.0
    %6032 = vmatpush1.msra.mxu0 0.0
    %6033 = vmatprep.subr.mxu0 0.0
    %6034 = vmatpush1.msra.mxu0 0.0
    %6035 = vmatprep.subr.mxu0 0.0
    %6036 = vmatpush1.msra.mxu0 0.0
    %6037 = vmatprep.subr.mxu0 0.0
    %6038 = vmatpush1.msra.mxu0 0.0
    %6039 = vmatprep.subr.mxu0 0.0
    %6040 = vmatpush1.msra.mxu0 0.0
    %6041 = vmatprep.subr.mxu0 0.0
    %6042 = vmatpush1.msra.mxu0 0.0
    %6043 = vmatprep.subr.mxu0 0.0
    %6044 = vmatpush1.msra.mxu0 0.0
    %6045 = vmatprep.subr.mxu0 0.0
    %6046 = vmatpush1.msra.mxu0 0.0
    %6047 = vmatprep.subr.mxu0 0.0
    %6048 = vmatpush1.msra.mxu0 0.0
    %6049 = vmatprep.subr.mxu0 0.0
    %6050 = vmatpush1.msra.mxu0 0.0
    %6051 = vmatprep.subr.mxu0 0.0
    %6052 = vmatpush1.msra.mxu0 0.0
    %6053 = vmatprep.subr.mxu0 0.0
    %6054 = vmatpush1.msra.mxu0 0.0
    %6055 = vmatprep.subr.mxu0 0.0
    %6056 = vmatpush1.msra.mxu0 0.0
    %6057 = vmatprep.subr.mxu0 0.0
    %6058 = vmatpush1.msra.mxu0 0.0
    %6059 = vmatprep.subr.mxu0 0.0
    %6060 = vmatpush1.msra.mxu0 0.0
    %6061 = vmatprep.subr.mxu0 0.0
    %6062 = vmatpush1.msra.mxu0 0.0
    %6063 = vmatprep.subr.mxu0 0.0
    %6064 = vmatpush1.msra.mxu0 0.0
    %6065 = vmatprep.subr.mxu0 0.0
    %6066 = vmatpush1.msra.mxu0 0.0
    %6067 = vmatprep.subr.mxu0 0.0
    %6068 = vmatpush1.msra.mxu0 0.0
    %6069 = vmatprep.subr.mxu0 0.0
    %6070 = vmatpush1.msra.mxu0 0.0
    %6071 = vmatprep.mubr.f32.mxu0 0.0
    %v6072 = vand.u32 %v5702, 4294901760
    %6073 = vmatmul.mubr.f32.gmra.mrb[0].mxu0 %v6072
    %v6074 = vpop.f32.mrb[0].mxu0
    %v6075 = vadd.f32 %v6001, %v6074
    %v6076 = vpop.f32.mrb[0].mxu0
    %6077 = vdwg.mxu0
    %6078 = vmatprep.subr.mxu0 0.0
    %v6079 = vand.u32 %v5700, 4294901760
    %6080 = vmatpush1.msra.mxu0 %v6079
    %6081 = vmatprep.subr.mxu0 0.0
    %6082 = vmatpush1.msra.mxu0 0.0
    %6083 = vmatprep.subr.mxu0 0.0
    %6084 = vmatpush1.msra.mxu0 0.0
    %6085 = vmatprep.subr.mxu0 0.0
    %6086 = vmatpush1.msra.mxu0 0.0
    %6087 = vmatprep.subr.mxu0 0.0
    %6088 = vmatpush1.msra.mxu0 0.0
    %6089 = vmatprep.subr.mxu0 0.0
    %6090 = vmatpush1.msra.mxu0 0.0
    %6091 = vmatprep.subr.mxu0 0.0
    %6092 = vmatpush1.msra.mxu0 0.0
    %6093 = vmatprep.subr.mxu0 0.0
    %6094 = vmatpush1.msra.mxu0 0.0
    %6095 = vmatprep.subr.mxu0 0.0
    %6096 = vmatpush1.msra.mxu0 0.0
    %6097 = vmatprep.subr.mxu0 0.0
    %6098 = vmatpush1.msra.mxu0 0.0
    %6099 = vmatprep.subr.mxu0 0.0
    %6100 = vmatpush1.msra.mxu0 0.0
    %6101 = vmatprep.subr.mxu0 0.0
    %6102 = vmatpush1.msra.mxu0 0.0
    %6103 = vmatprep.subr.mxu0 0.0
    %6104 = vmatpush1.msra.mxu0 0.0
    %6105 = vmatprep.subr.mxu0 0.0
    %6106 = vmatpush1.msra.mxu0 0.0
    %6107 = vmatprep.subr.mxu0 0.0
    %6108 = vmatpush1.msra.mxu0 0.0
    %6109 = vmatprep.subr.mxu0 0.0
    %6110 = vmatpush1.msra.mxu0 0.0
    %6111 = vmatprep.subr.mxu0 0.0
    %6112 = vmatpush1.msra.mxu0 0.0
    %6113 = vmatprep.subr.mxu0 0.0
    %6114 = vmatpush1.msra.mxu0 0.0
    %6115 = vmatprep.subr.mxu0 0.0
    %6116 = vmatpush1.msra.mxu0 0.0
    %6117 = vmatprep.subr.mxu0 0.0
    %6118 = vmatpush1.msra.mxu0 0.0
    %6119 = vmatprep.subr.mxu0 0.0
    %6120 = vmatpush1.msra.mxu0 0.0
    %6121 = vmatprep.subr.mxu0 0.0
    %6122 = vmatpush1.msra.mxu0 0.0
    %6123 = vmatprep.subr.mxu0 0.0
    %6124 = vmatpush1.msra.mxu0 0.0
    %6125 = vmatprep.subr.mxu0 0.0
    %6126 = vmatpush1.msra.mxu0 0.0
    %6127 = vmatprep.subr.mxu0 0.0
    %6128 = vmatpush1.msra.mxu0 0.0
    %6129 = vmatprep.subr.mxu0 0.0
    %6130 = vmatpush1.msra.mxu0 0.0
    %6131 = vmatprep.subr.mxu0 0.0
    %6132 = vmatpush1.msra.mxu0 0.0
    %6133 = vmatprep.subr.mxu0 0.0
    %6134 = vmatpush1.msra.mxu0 0.0
    %6135 = vmatprep.subr.mxu0 0.0
    %6136 = vmatpush1.msra.mxu0 0.0
    %6137 = vmatprep.subr.mxu0 0.0
    %6138 = vmatpush1.msra.mxu0 0.0
    %6139 = vmatprep.subr.mxu0 0.0
    %6140 = vmatpush1.msra.mxu0 0.0
    %6141 = vmatprep.subr.mxu0 0.0
    %6142 = vmatpush1.msra.mxu0 0.0
    %6143 = vmatprep.mubr.f32.mxu0 0.0
    %v6144 = vand.u32 %v5702, 4294901760
    %6145 = vmatmul.mubr.f32.gmra.mrb[0].mxu0 %v6144
    %v6146 = vpop.f32.mrb[0].mxu0
    %v6147 = vadd.f32 %v6075, %v6146
    %v6148 = vpop.f32.mrb[0].mxu0
    %6149 = vdwg.mxu0
    %v6150 = vadd.f32 %v5699, %v6147
    %6151 = vst.msk [vmem:[#allocation2] sm:$0xff] %vm17, %v6150
    // Predicated region
    $region10: #{tpu_custom_call.1} parent=1 // pred_check
      _
    $region11: #{tpu_custom_call.1} parent=1 // pred_check_branch
      %6153 = sbr.rel (0) target = $region13
    $region12: #{tpu_custom_call.1} parent=1 // pred_region
      %s6155 = ssub.s32 128, 128
      %6156 = vsyncadd [#allocation3], %s6155
      %s6158 = sshll.u32 [#allocation2], 4
      %s6159 = int_to_ptr.vmem [resolvable:$true] %s6158
      %6161 = dma.vmem_to_hbm [thread:$0]  %s6159, 128, %s2, [#allocation3]
    $region13: #{tpu_custom_call.1} parent=1 // pred_fallthru
      _
    // Predicated region
    $region14: #{tpu_custom_call.1} parent=1 // pred_check
      _
    $region15: #{tpu_custom_call.1} parent=1 // pred_check_branch
      %6163 = sbr.rel (0) target = $region17
    $region16: #{tpu_custom_call.1} parent=1 // pred_region
      %6164 = dma.done [#allocation3], 128
    $region17: #{tpu_custom_call.1} parent=1 // pred_fallthru
      _
    %6165 = vsyncpa [#allocation3], 1

</llo_original>
